<compile_context>
chip_gen: v6e
topology: v6e:2x2x1
jax: 0.10.0
libtpu: 0.0.40
codegen_flags: <defaults>
</compile_context>

<pallas_src>
import numpy as np
import jax
import jax.numpy as jnp
from jax.experimental import pallas as pl
from jax.experimental.pallas import tpu as pltpu

POOL_PAD = 8  # sublane-aligned row count for the pooled output block


# -----------------------------------------------------------------------------
# Parameter init (host-side, done ONCE — hoisted out of the forward pass).
# Layer weights are stacked along a leading L axis so the fused kernel can
# index them statically per layer.
# -----------------------------------------------------------------------------
def init_params(key, input_dim, embedding_dim, seq_len, num_heads=8,
                dim_feedforward=512, num_layers=4):
    if embedding_dim % num_heads != 0:
        embedding_dim = embedding_dim // num_heads * num_heads
    E, FF, L, H = embedding_dim, dim_feedforward, num_layers, num_heads
    Dh = E // H

    keys = iter(jax.random.split(key, 16))

    def dense(k, fan_in, shape):
        return jax.random.normal(k, shape, jnp.float32) / np.sqrt(fan_in)

    p = {}
    # input_projection: Linear(input_dim, E), stored (in, out) so y = x @ W + b
    p["w_in"] = dense(next(keys), input_dim, (input_dim, E)).astype(jnp.bfloat16)
    p["b_in"] = 0.1 * jax.random.normal(next(keys), (1, E), jnp.float32)
    # positional_encoding: Parameter(randn(1, seq_len, E)) stored as (seq_len, E)
    p["pos"] = jax.random.normal(next(keys), (seq_len, E), jnp.float32)

    w_qkv = dense(next(keys), E, (L, E, 3 * E))
    b_qkv = 0.1 * jax.random.normal(next(keys), (L, 1, 3 * E), jnp.float32)
    # Fold the 1/sqrt(Dh) attention scale into the Q block (weights AND bias)
    # at init time — mathematically identical to scaling the scores, and it
    # deletes one full (S,E) VPU multiply per layer from the kernel.
    scale = 1.0 / np.sqrt(Dh)
    w_qkv = w_qkv.at[:, :, :E].multiply(scale)
    b_qkv = b_qkv.at[:, :, :E].multiply(scale)
    p["w_qkv"] = w_qkv.astype(jnp.bfloat16)
    p["b_qkv"] = b_qkv

    p["w_o"] = dense(next(keys), E, (L, E, E)).astype(jnp.bfloat16)
    p["b_o"] = 0.1 * jax.random.normal(next(keys), (L, 1, E), jnp.float32)
    p["w1"] = dense(next(keys), E, (L, E, FF)).astype(jnp.bfloat16)
    p["b1"] = 0.1 * jax.random.normal(next(keys), (L, 1, FF), jnp.float32)
    p["w2"] = dense(next(keys), FF, (L, FF, E)).astype(jnp.bfloat16)
    p["b2"] = 0.1 * jax.random.normal(next(keys), (L, 1, E), jnp.float32)
    p["ln1_g"] = jnp.ones((L, 1, E), jnp.float32)
    p["ln1_b"] = jnp.zeros((L, 1, E), jnp.float32)
    p["ln2_g"] = jnp.ones((L, 1, E), jnp.float32)
    p["ln2_b"] = jnp.zeros((L, 1, E), jnp.float32)

    # Block-diagonal head mask, shared by the K/V relayouts and the per-head
    # softmax denominator:  mask[h*S + j, h'*Dh + d] = 1 iff h == h'.
    rows = np.arange(H * seq_len) // seq_len
    cols = np.arange(E) // Dh
    p["head_mask"] = jnp.asarray(
        (rows[:, None] == cols[None, :]).astype(np.float32), dtype=jnp.bfloat16)
    return p


# -----------------------------------------------------------------------------
# Fused kernel: embed + 4 encoder layers + mean pool, one sequence per grid step
# -----------------------------------------------------------------------------
def make_fused_kernel(S, E, H, FF, L):
    def _layernorm(x, g, b, eps=1e-5):
        mu = jnp.mean(x, axis=-1, keepdims=True)
        xc = x - mu
        var = jnp.mean(xc * xc, axis=-1, keepdims=True)
        return xc * jax.lax.rsqrt(var + eps) * g + b

    def kernel(x_ref, w_in_ref, b_in_ref, pos_ref, mask_ref,
               wqkv_ref, bqkv_ref, wo_ref, bo_ref,
               w1_ref, b1_ref, w2_ref, b2_ref,
               g1_ref, be1_ref, g2_ref, be2_ref, o_ref):
        # ---- input projection + positional encoding -------------------------
        h = jnp.dot(x_ref[...].astype(jnp.bfloat16), w_in_ref[...],
                    preferred_element_type=jnp.float32) + b_in_ref[...] + pos_ref[...]
        mask = mask_ref[...]                                   # (H*S, E) bf16

        # ---- 4 fully-fused post-norm encoder layers (statically unrolled) ---
        # TODO(synk): PyTorch nn.TransformerEncoderLayer defaults to
        # batch_first=False; as in the original module's intent we attend over
        # dim 1 (the sequence) of the (B, S, E) activations.
        for l in range(L):
            x_bf = h.astype(jnp.bfloat16)                      # cast once, reuse
            qkv = jnp.dot(x_bf, wqkv_ref[l],
                          preferred_element_type=jnp.float32) + bqkv_ref[l]
            # 1/sqrt(Dh) already folded into the Q columns of w_qkv / b_qkv.
            q = qkv[:, :E].astype(jnp.bfloat16)                # (S, E)
            k = qkv[:, E:2 * E].astype(jnp.bfloat16)
            v = qkv[:, 2 * E:].astype(jnp.bfloat16)

            # Head-batched attention: replicate K/V along sublanes and mask
            # block-diagonally -> all heads in full-width lane-dense matmuls.
            kb = jnp.concatenate([k] * H, axis=0) * mask       # (H*S, E)
            vb = jnp.concatenate([v] * H, axis=0) * mask       # (H*S, E)
            # scores[i, h*S + j] = q_h[i] . k_h[j]
            s = jax.lax.dot_general(q, kb, (((1,), (1,)), ((), ())),
                                    preferred_element_type=jnp.float32)  # (S, H*S)
            # Row max is a per-row constant -> per-head softmax is unchanged.
            s = s - jnp.max(s, axis=-1, keepdims=True)
            p = jnp.exp(s).astype(jnp.bfloat16)
            # Per-head denominators, broadcast over each head's Dh columns.
            denom = jnp.dot(p, mask, preferred_element_type=jnp.float32)  # (S, E)
            ctx = jnp.dot(p, vb, preferred_element_type=jnp.float32)      # (S, E)
            attn = ctx * pl.reciprocal(denom + 1e-20, approx=True)
            # Single full-K out-projection (heads already concatenated in ctx).
            attn = jnp.dot(attn.astype(jnp.bfloat16), wo_ref[l],
                           preferred_element_type=jnp.float32) + bo_ref[l]
            # TODO(synk): nn.Dropout(p=0.1) is stochastic; inference-mode identity.
            h1 = _layernorm(h + attn, g1_ref[l], be1_ref[l])
            f = jnp.dot(h1.astype(jnp.bfloat16), w1_ref[l],
                        preferred_element_type=jnp.float32) + b1_ref[l]
            f = jnp.maximum(f, 0.0)                            # ReLU
            f = jnp.dot(f.astype(jnp.bfloat16), w2_ref[l],
                        preferred_element_type=jnp.float32) + b2_ref[l]
            h = _layernorm(h1 + f, g2_ref[l], be2_ref[l])

        # ---- mean pool over the sequence (permute + AdaptiveAvgPool1d(1)) ---
        pooled = jnp.mean(h, axis=0, keepdims=True)            # (1, E)
        o_ref[...] = jnp.broadcast_to(pooled, (POOL_PAD, E))   # lane-dense store

    return kernel


# -----------------------------------------------------------------------------
# Forward wrapper (jitted; parameters already prepared/cast/stacked at init).
# -----------------------------------------------------------------------------
def make_forward(input_dim, embedding_dim, seq_len, num_heads, dim_feedforward,
                 num_layers):
    if embedding_dim % num_heads != 0:
        embedding_dim = embedding_dim // num_heads * num_heads
    E, S, H, FF, Din, L = (embedding_dim, seq_len, num_heads, dim_feedforward,
                           input_dim, num_layers)

    kernel = make_fused_kernel(S, E, H, FF, L)

    def const_spec(shape):
        return pl.BlockSpec(shape, lambda b, n=len(shape): (0,) * n)

    @jax.jit
    def forward(x, params):
        # x: (B, S, input_dim) float32
        B = x.shape[0]
        out = pl.pallas_call(
            kernel,
            grid=(B,),
            in_specs=[
                pl.BlockSpec((None, S, Din), lambda b: (b, 0, 0)),   # x (per seq)
                const_spec((Din, E)),            # w_in
                const_spec((1, E)),              # b_in
                const_spec((S, E)),              # pos
                const_spec((H * S, E)),          # head mask
                const_spec((L, E, 3 * E)), const_spec((L, 1, 3 * E)),
                const_spec((L, E, E)), const_spec((L, 1, E)),
                const_spec((L, E, FF)), const_spec((L, 1, FF)),
                const_spec((L, FF, E)), const_spec((L, 1, E)),
                const_spec((L, 1, E)), const_spec((L, 1, E)),
                const_spec((L, 1, E)), const_spec((L, 1, E)),
            ],
            out_specs=pl.BlockSpec((None, POOL_PAD, E), lambda b: (b, 0, 0)),
            out_shape=jax.ShapeDtypeStruct((B, POOL_PAD, E), jnp.float32),
            # Batch-parallel: on v7x each TensorCore takes one sequence;
            # harmless (2 serial steps) on single-TC v5e/v6e.
            compiler_params=pltpu.CompilerParams(
                dimension_semantics=("parallel",)),
        )(x, params["w_in"], params["b_in"], params["pos"], params["head_mask"],
          params["w_qkv"], params["b_qkv"], params["w_o"], params["b_o"],
          params["w1"], params["b1"], params["w2"], params["b2"],
          params["ln1_g"], params["ln1_b"], params["ln2_g"], params["ln2_b"])
        # All POOL_PAD rows hold the same pooled vector; take row 0.
        return out[:, 0, :][..., None]                         # (B, E, 1)

    return forward


# -----------------------------------------------------------------------------
# Independent numpy (float32) reference for validation.
# Uses the same (bf16-quantized, scale-folded) parameters as the kernel.
# -----------------------------------------------------------------------------
def _f32(a):
    return np.asarray(jax.device_get(jnp.asarray(a, jnp.float32)))


def np_layernorm(x, g, b, eps=1e-5):
    mu = x.mean(-1, keepdims=True)
    var = ((x - mu) ** 2).mean(-1, keepdims=True)
    return (x - mu) / np.sqrt(var + eps) * g + b


def np_softmax(x):
    x = x - x.max(-1, keepdims=True)
    e = np.exp(x)
    return e / e.sum(-1, keepdims=True)


def np_forward(x, params, num_heads):
    w_in, b_in, pos = _f32(params["w_in"]), _f32(params["b_in"]), _f32(params["pos"])
    h = x @ w_in + b_in + pos[None]                            # (B, S, E)
    E = h.shape[-1]
    H = num_heads
    Dh = E // H
    L = params["w_qkv"].shape[0]
    for l in range(L):
        wqkv, bqkv = _f32(params["w_qkv"][l]), _f32(params["b_qkv"][l])
        wo, bo = _f32(params["w_o"][l]), _f32(params["b_o"][l])
        w1, b1 = _f32(params["w1"][l]), _f32(params["b1"][l])
        w2, b2 = _f32(params["w2"][l]), _f32(params["b2"][l])
        g1, be1 = _f32(params["ln1_g"][l]), _f32(params["ln1_b"][l])
        g2, be2 = _f32(params["ln2_g"][l]), _f32(params["ln2_b"][l])

        qkv = h @ wqkv + bqkv
        q, k, v = qkv[..., :E], qkv[..., E:2 * E], qkv[..., 2 * E:]
        ctx = np.zeros_like(h)
        for hd in range(H):
            sl = slice(hd * Dh, (hd + 1) * Dh)
            # NOTE: 1/sqrt(Dh) is folded into the Q weights at init.
            s = np.einsum("bqd,bkd->bqk", q[..., sl], k[..., sl])
            p = np_softmax(s)
            ctx[..., sl] = np.einsum("bqk,bkd->bqd", p, v[..., sl])
        attn = ctx @ wo + bo
        h = np_layernorm(h + attn, g1, be1)
        f = np.maximum(h @ w1 + b1, 0.0)
        f = f @ w2 + b2
        h = np_layernorm(h + f, g2, be2)
    out = h.mean(axis=1)                                       # (B, E)
    return out[:, :, None]                                     # (B, E, 1)


# -----------------------------------------------------------------------------
if __name__ == "__main__":
    # Small config consistent with the module:
    #   TransformerEncoderBlock(input_dim=32, embedding_dim=128, seq_len=16,
    #                           num_heads=8, dim_feedforward=256) -> 4 layers
    B, S, Din = 2, 16, 32
    E, H, FF, L = 128, 8, 256, 4

    key = jax.random.PRNGKey(0)
    kp, kx = jax.random.split(key)
    params = init_params(kp, Din, E, S, num_heads=H, dim_feedforward=FF,
                         num_layers=L)
    x = jax.random.normal(kx, (B, S, Din), jnp.float32)

    forward = make_forward(Din, E, S, H, FF, L)
    y = jax.block_until_ready(forward(x, params))

    y_ref = np_forward(np.asarray(x, np.float32), params, H)
    assert y.shape == (B, E, 1), y.shape
    max_err = float(np.max(np.abs(np.asarray(y) - y_ref)))
    assert np.allclose(np.asarray(y), y_ref, rtol=5e-2, atol=5e-2), \
        f"max_err={max_err}"

    print("KERNEL_OK")
</pallas_src>

<mosaic_0001>
module attributes {stable_mosaic.version = 11 : i64} {
  func.func @kernel(%arg0: i32, %arg1: memref<1x16x32xf32, #tpu.memory_space<vmem>>, %arg2: memref<32x128xbf16, #tpu.memory_space<vmem>>, %arg3: memref<1x128xf32, #tpu.memory_space<vmem>>, %arg4: memref<16x128xf32, #tpu.memory_space<vmem>>, %arg5: memref<128x128xbf16, #tpu.memory_space<vmem>>, %arg6: memref<4x128x384xbf16, #tpu.memory_space<vmem>>, %arg7: memref<4x1x384xf32, #tpu.memory_space<vmem>>, %arg8: memref<4x128x128xbf16, #tpu.memory_space<vmem>>, %arg9: memref<4x1x128xf32, #tpu.memory_space<vmem>>, %arg10: memref<4x128x256xbf16, #tpu.memory_space<vmem>>, %arg11: memref<4x1x256xf32, #tpu.memory_space<vmem>>, %arg12: memref<4x256x128xbf16, #tpu.memory_space<vmem>>, %arg13: memref<4x1x128xf32, #tpu.memory_space<vmem>>, %arg14: memref<4x1x128xf32, #tpu.memory_space<vmem>>, %arg15: memref<4x1x128xf32, #tpu.memory_space<vmem>>, %arg16: memref<4x1x128xf32, #tpu.memory_space<vmem>>, %arg17: memref<4x1x128xf32, #tpu.memory_space<vmem>>, %arg18: memref<1x8x128xf32, #tpu.memory_space<vmem>>) attributes {dimension_semantics = [#tpu.dimension_semantics<parallel>], iteration_bounds = array<i64: 2>, scalar_prefetch = 0 : i64, scratch_operands = 0 : i64, tpu.core_type = #tpu.core_type<tc>, window_params = [{transform_indices = @transform_0, window_bounds = array<i64: 1, 16, 32>}, {pipeline_mode = #tpu.pipeline_mode<synchronous>, transform_indices = @transform_1, window_bounds = array<i64: 32, 128>}, {pipeline_mode = #tpu.pipeline_mode<synchronous>, transform_indices = @transform_2, window_bounds = array<i64: 1, 128>}, {pipeline_mode = #tpu.pipeline_mode<synchronous>, transform_indices = @transform_3, window_bounds = array<i64: 16, 128>}, {pipeline_mode = #tpu.pipeline_mode<synchronous>, transform_indices = @transform_4, window_bounds = array<i64: 128, 128>}, {pipeline_mode = #tpu.pipeline_mode<synchronous>, transform_indices = @transform_5, window_bounds = array<i64: 4, 128, 384>}, {pipeline_mode = #tpu.pipeline_mode<synchronous>, transform_indices = @transform_6, window_bounds = array<i64: 4, 1, 384>}, {pipeline_mode = #tpu.pipeline_mode<synchronous>, transform_indices = @transform_7, window_bounds = array<i64: 4, 128, 128>}, {pipeline_mode = #tpu.pipeline_mode<synchronous>, transform_indices = @transform_8, window_bounds = array<i64: 4, 1, 128>}, {pipeline_mode = #tpu.pipeline_mode<synchronous>, transform_indices = @transform_9, window_bounds = array<i64: 4, 128, 256>}, {pipeline_mode = #tpu.pipeline_mode<synchronous>, transform_indices = @transform_10, window_bounds = array<i64: 4, 1, 256>}, {pipeline_mode = #tpu.pipeline_mode<synchronous>, transform_indices = @transform_11, window_bounds = array<i64: 4, 256, 128>}, {pipeline_mode = #tpu.pipeline_mode<synchronous>, transform_indices = @transform_12, window_bounds = array<i64: 4, 1, 128>}, {pipeline_mode = #tpu.pipeline_mode<synchronous>, transform_indices = @transform_13, window_bounds = array<i64: 4, 1, 128>}, {pipeline_mode = #tpu.pipeline_mode<synchronous>, transform_indices = @transform_14, window_bounds = array<i64: 4, 1, 128>}, {pipeline_mode = #tpu.pipeline_mode<synchronous>, transform_indices = @transform_15, window_bounds = array<i64: 4, 1, 128>}, {pipeline_mode = #tpu.pipeline_mode<synchronous>, transform_indices = @transform_16, window_bounds = array<i64: 4, 1, 128>}, {transform_indices = @transform_17, window_bounds = array<i64: 1, 8, 128>}]} {
    %c0 = arith.constant 0 : index
    %c0_0 = arith.constant 0 : index
    %c0_1 = arith.constant 0 : index
    %0 = vector.load %arg1[%c0, %c0_0, %c0_1] : memref<1x16x32xf32, #tpu.memory_space<vmem>>, vector<1x16x32xf32>
    %1 = vector.shape_cast %0 : vector<1x16x32xf32> to vector<16x32xf32>
    %2 = arith.truncf %1 : vector<16x32xf32> to vector<16x32xbf16>
    %c0_2 = arith.constant 0 : index
    %c0_3 = arith.constant 0 : index
    %3 = vector.load %arg2[%c0_2, %c0_3] : memref<32x128xbf16, #tpu.memory_space<vmem>>, vector<32x128xbf16>
    %cst = arith.constant dense<0.000000e+00> : vector<16x128xf32>
    %4 = tpu.matmul %2, %3, %cst {dimension_numbers = #tpu.dot_dimension_numbers<[1], [0], [0], [1], [0, 0, 1, 1], [], []>} : vector<16x32xbf16>, vector<32x128xbf16>, vector<16x128xf32> -> vector<16x128xf32>
    %c0_4 = arith.constant 0 : index
    %c0_5 = arith.constant 0 : index
    %5 = vector.load %arg3[%c0_4, %c0_5] : memref<1x128xf32, #tpu.memory_space<vmem>>, vector<1x128xf32>
    %6 = vector.broadcast %5 : vector<1x128xf32> to vector<16x128xf32>
    %7 = arith.addf %4, %6 : vector<16x128xf32>
    %c0_6 = arith.constant 0 : index
    %c0_7 = arith.constant 0 : index
    %8 = vector.load %arg4[%c0_6, %c0_7] : memref<16x128xf32, #tpu.memory_space<vmem>>, vector<16x128xf32>
    %9 = arith.addf %7, %8 : vector<16x128xf32>
    %c0_8 = arith.constant 0 : index
    %c0_9 = arith.constant 0 : index
    %10 = vector.load %arg5[%c0_8, %c0_9] : memref<128x128xbf16, #tpu.memory_space<vmem>>, vector<128x128xbf16>
    %11 = arith.truncf %9 : vector<16x128xf32> to vector<16x128xbf16>
    %c0_10 = arith.constant 0 : index
    %c0_11 = arith.constant 0 : index
    %c0_12 = arith.constant 0 : index
    %12 = vector.load %arg6[%c0_10, %c0_11, %c0_12] : memref<4x128x384xbf16, #tpu.memory_space<vmem>>, vector<1x128x384xbf16>
    %13 = vector.shape_cast %12 : vector<1x128x384xbf16> to vector<128x384xbf16>
    %cst_13 = arith.constant dense<0.000000e+00> : vector<16x384xf32>
    %14 = tpu.matmul %11, %13, %cst_13 {dimension_numbers = #tpu.dot_dimension_numbers<[1], [0], [0], [1], [0, 0, 1, 1], [], []>} : vector<16x128xbf16>, vector<128x384xbf16>, vector<16x384xf32> -> vector<16x384xf32>
    %c0_14 = arith.constant 0 : index
    %c0_15 = arith.constant 0 : index
    %c0_16 = arith.constant 0 : index
    %15 = vector.load %arg7[%c0_14, %c0_15, %c0_16] : memref<4x1x384xf32, #tpu.memory_space<vmem>>, vector<1x1x384xf32>
    %16 = vector.shape_cast %15 : vector<1x1x384xf32> to vector<1x384xf32>
    %17 = vector.broadcast %16 : vector<1x384xf32> to vector<16x384xf32>
    %18 = arith.addf %14, %17 : vector<16x384xf32>
    %19 = vector.extract_strided_slice %18 {offsets = [0, 0], sizes = [16, 128], strides = [1, 1]} : vector<16x384xf32> to vector<16x128xf32>
    %20 = arith.truncf %19 : vector<16x128xf32> to vector<16x128xbf16>
    %21 = vector.extract_strided_slice %18 {offsets = [0, 128], sizes = [16, 128], strides = [1, 1]} : vector<16x384xf32> to vector<16x128xf32>
    %22 = arith.truncf %21 : vector<16x128xf32> to vector<16x128xbf16>
    %23 = vector.extract_strided_slice %18 {offsets = [0, 256], sizes = [16, 128], strides = [1, 1]} : vector<16x384xf32> to vector<16x128xf32>
    %24 = arith.truncf %23 : vector<16x128xf32> to vector<16x128xbf16>
    %25 = tpu.concatenate %22, %22, %22, %22, %22, %22, %22, %22 in 0 : vector<16x128xbf16>, vector<16x128xbf16>, vector<16x128xbf16>, vector<16x128xbf16>, vector<16x128xbf16>, vector<16x128xbf16>, vector<16x128xbf16>, vector<16x128xbf16> -> vector<128x128xbf16>
    %26 = arith.mulf %25, %10 : vector<128x128xbf16>
    %27 = tpu.concatenate %24, %24, %24, %24, %24, %24, %24, %24 in 0 : vector<16x128xbf16>, vector<16x128xbf16>, vector<16x128xbf16>, vector<16x128xbf16>, vector<16x128xbf16>, vector<16x128xbf16>, vector<16x128xbf16>, vector<16x128xbf16> -> vector<128x128xbf16>
    %28 = arith.mulf %27, %10 : vector<128x128xbf16>
    %cst_17 = arith.constant dense<0.000000e+00> : vector<16x128xf32>
    %29 = tpu.matmul %20, %26, %cst_17 {dimension_numbers = #tpu.dot_dimension_numbers<[1], [1], [0], [0], [0, 0, 1, 0], [], []>} : vector<16x128xbf16>, vector<128x128xbf16>, vector<16x128xf32> -> vector<16x128xf32>
    %cst_18 = arith.constant dense<0xFF800000> : vector<16xf32>
    %30 = vector.multi_reduction <maximumf>, %29, %cst_18 [1] : vector<16x128xf32> to vector<16xf32>
    %31 = vector.shape_cast %30 : vector<16xf32> to vector<16x1xf32>
    %32 = vector.broadcast %31 : vector<16x1xf32> to vector<16x128xf32>
    %33 = arith.subf %29, %32 : vector<16x128xf32>
    %34 = math.exp %33 : vector<16x128xf32>
    %35 = arith.truncf %34 : vector<16x128xf32> to vector<16x128xbf16>
    %cst_19 = arith.constant dense<0.000000e+00> : vector<16x128xf32>
    %36 = tpu.matmul %35, %10, %cst_19 {dimension_numbers = #tpu.dot_dimension_numbers<[1], [0], [0], [1], [0, 0, 1, 1], [], []>} : vector<16x128xbf16>, vector<128x128xbf16>, vector<16x128xf32> -> vector<16x128xf32>
    %cst_20 = arith.constant dense<0.000000e+00> : vector<16x128xf32>
    %37 = tpu.matmul %35, %28, %cst_20 {dimension_numbers = #tpu.dot_dimension_numbers<[1], [0], [0], [1], [0, 0, 1, 1], [], []>} : vector<16x128xbf16>, vector<128x128xbf16>, vector<16x128xf32> -> vector<16x128xf32>
    %cst_21 = arith.constant 9.99999968E-21 : f32
    %38 = vector.broadcast %cst_21 : f32 to vector<16x128xf32>
    %39 = arith.addf %36, %38 : vector<16x128xf32>
    %40 = tpu.reciprocal %39 {approx = true} : vector<16x128xf32> -> vector<16x128xf32>
    %41 = arith.mulf %37, %40 : vector<16x128xf32>
    %42 = arith.truncf %41 : vector<16x128xf32> to vector<16x128xbf16>
    %c0_22 = arith.constant 0 : index
    %c0_23 = arith.constant 0 : index
    %c0_24 = arith.constant 0 : index
    %43 = vector.load %arg8[%c0_22, %c0_23, %c0_24] : memref<4x128x128xbf16, #tpu.memory_space<vmem>>, vector<1x128x128xbf16>
    %44 = vector.shape_cast %43 : vector<1x128x128xbf16> to vector<128x128xbf16>
    %cst_25 = arith.constant dense<0.000000e+00> : vector<16x128xf32>
    %45 = tpu.matmul %42, %44, %cst_25 {dimension_numbers = #tpu.dot_dimension_numbers<[1], [0], [0], [1], [0, 0, 1, 1], [], []>} : vector<16x128xbf16>, vector<128x128xbf16>, vector<16x128xf32> -> vector<16x128xf32>
    %c0_26 = arith.constant 0 : index
    %c0_27 = arith.constant 0 : index
    %c0_28 = arith.constant 0 : index
    %46 = vector.load %arg9[%c0_26, %c0_27, %c0_28] : memref<4x1x128xf32, #tpu.memory_space<vmem>>, vector<1x1x128xf32>
    %47 = vector.shape_cast %46 : vector<1x1x128xf32> to vector<1x128xf32>
    %48 = vector.broadcast %47 : vector<1x128xf32> to vector<16x128xf32>
    %49 = arith.addf %45, %48 : vector<16x128xf32>
    %50 = arith.addf %9, %49 : vector<16x128xf32>
    %c0_29 = arith.constant 0 : index
    %c0_30 = arith.constant 0 : index
    %c0_31 = arith.constant 0 : index
    %51 = vector.load %arg14[%c0_29, %c0_30, %c0_31] : memref<4x1x128xf32, #tpu.memory_space<vmem>>, vector<1x1x128xf32>
    %52 = vector.shape_cast %51 : vector<1x1x128xf32> to vector<1x128xf32>
    %c0_32 = arith.constant 0 : index
    %c0_33 = arith.constant 0 : index
    %c0_34 = arith.constant 0 : index
    %53 = vector.load %arg15[%c0_32, %c0_33, %c0_34] : memref<4x1x128xf32, #tpu.memory_space<vmem>>, vector<1x1x128xf32>
    %54 = vector.shape_cast %53 : vector<1x1x128xf32> to vector<1x128xf32>
    %cst_35 = arith.constant dense<0.000000e+00> : vector<16xf32>
    %55 = vector.multi_reduction <add>, %50, %cst_35 [1] : vector<16x128xf32> to vector<16xf32>
    %56 = vector.shape_cast %55 : vector<16xf32> to vector<16x1xf32>
    %cst_36 = arith.constant 1.280000e+02 : f32
    %57 = vector.broadcast %cst_36 : f32 to vector<16x1xf32>
    %58 = arith.divf %56, %57 : vector<16x1xf32>
    %59 = vector.broadcast %58 : vector<16x1xf32> to vector<16x128xf32>
    %60 = arith.subf %50, %59 : vector<16x128xf32>
    %61 = arith.mulf %60, %60 : vector<16x128xf32>
    %cst_37 = arith.constant dense<0.000000e+00> : vector<16xf32>
    %62 = vector.multi_reduction <add>, %61, %cst_37 [1] : vector<16x128xf32> to vector<16xf32>
    %63 = vector.shape_cast %62 : vector<16xf32> to vector<16x1xf32>
    %cst_38 = arith.constant 1.280000e+02 : f32
    %64 = vector.broadcast %cst_38 : f32 to vector<16x1xf32>
    %65 = arith.divf %63, %64 : vector<16x1xf32>
    %cst_39 = arith.constant 9.99999974E-6 : f32
    %66 = vector.broadcast %cst_39 : f32 to vector<16x1xf32>
    %67 = arith.addf %65, %66 : vector<16x1xf32>
    %68 = math.rsqrt %67 : vector<16x1xf32>
    %69 = vector.broadcast %68 : vector<16x1xf32> to vector<16x128xf32>
    %70 = arith.mulf %60, %69 : vector<16x128xf32>
    %71 = vector.broadcast %52 : vector<1x128xf32> to vector<16x128xf32>
    %72 = arith.mulf %70, %71 : vector<16x128xf32>
    %73 = vector.broadcast %54 : vector<1x128xf32> to vector<16x128xf32>
    %74 = arith.addf %72, %73 : vector<16x128xf32>
    %75 = arith.truncf %74 : vector<16x128xf32> to vector<16x128xbf16>
    %c0_40 = arith.constant 0 : index
    %c0_41 = arith.constant 0 : index
    %c0_42 = arith.constant 0 : index
    %76 = vector.load %arg10[%c0_40, %c0_41, %c0_42] : memref<4x128x256xbf16, #tpu.memory_space<vmem>>, vector<1x128x256xbf16>
    %77 = vector.shape_cast %76 : vector<1x128x256xbf16> to vector<128x256xbf16>
    %cst_43 = arith.constant dense<0.000000e+00> : vector<16x256xf32>
    %78 = tpu.matmul %75, %77, %cst_43 {dimension_numbers = #tpu.dot_dimension_numbers<[1], [0], [0], [1], [0, 0, 1, 1], [], []>} : vector<16x128xbf16>, vector<128x256xbf16>, vector<16x256xf32> -> vector<16x256xf32>
    %c0_44 = arith.constant 0 : index
    %c0_45 = arith.constant 0 : index
    %c0_46 = arith.constant 0 : index
    %79 = vector.load %arg11[%c0_44, %c0_45, %c0_46] : memref<4x1x256xf32, #tpu.memory_space<vmem>>, vector<1x1x256xf32>
    %80 = vector.shape_cast %79 : vector<1x1x256xf32> to vector<1x256xf32>
    %81 = vector.broadcast %80 : vector<1x256xf32> to vector<16x256xf32>
    %82 = arith.addf %78, %81 : vector<16x256xf32>
    %cst_47 = arith.constant 0.000000e+00 : f32
    %83 = vector.broadcast %cst_47 : f32 to vector<16x256xf32>
    %84 = arith.maximumf %82, %83 : vector<16x256xf32>
    %85 = arith.truncf %84 : vector<16x256xf32> to vector<16x256xbf16>
    %c0_48 = arith.constant 0 : index
    %c0_49 = arith.constant 0 : index
    %c0_50 = arith.constant 0 : index
    %86 = vector.load %arg12[%c0_48, %c0_49, %c0_50] : memref<4x256x128xbf16, #tpu.memory_space<vmem>>, vector<1x256x128xbf16>
    %87 = vector.shape_cast %86 : vector<1x256x128xbf16> to vector<256x128xbf16>
    %cst_51 = arith.constant dense<0.000000e+00> : vector<16x128xf32>
    %88 = tpu.matmul %85, %87, %cst_51 {dimension_numbers = #tpu.dot_dimension_numbers<[1], [0], [0], [1], [0, 0, 1, 1], [], []>} : vector<16x256xbf16>, vector<256x128xbf16>, vector<16x128xf32> -> vector<16x128xf32>
    %c0_52 = arith.constant 0 : index
    %c0_53 = arith.constant 0 : index
    %c0_54 = arith.constant 0 : index
    %89 = vector.load %arg13[%c0_52, %c0_53, %c0_54] : memref<4x1x128xf32, #tpu.memory_space<vmem>>, vector<1x1x128xf32>
    %90 = vector.shape_cast %89 : vector<1x1x128xf32> to vector<1x128xf32>
    %91 = vector.broadcast %90 : vector<1x128xf32> to vector<16x128xf32>
    %92 = arith.addf %88, %91 : vector<16x128xf32>
    %93 = arith.addf %74, %92 : vector<16x128xf32>
    %c0_55 = arith.constant 0 : index
    %c0_56 = arith.constant 0 : index
    %c0_57 = arith.constant 0 : index
    %94 = vector.load %arg16[%c0_55, %c0_56, %c0_57] : memref<4x1x128xf32, #tpu.memory_space<vmem>>, vector<1x1x128xf32>
    %95 = vector.shape_cast %94 : vector<1x1x128xf32> to vector<1x128xf32>
    %c0_58 = arith.constant 0 : index
    %c0_59 = arith.constant 0 : index
    %c0_60 = arith.constant 0 : index
    %96 = vector.load %arg17[%c0_58, %c0_59, %c0_60] : memref<4x1x128xf32, #tpu.memory_space<vmem>>, vector<1x1x128xf32>
    %97 = vector.shape_cast %96 : vector<1x1x128xf32> to vector<1x128xf32>
    %cst_61 = arith.constant dense<0.000000e+00> : vector<16xf32>
    %98 = vector.multi_reduction <add>, %93, %cst_61 [1] : vector<16x128xf32> to vector<16xf32>
    %99 = vector.shape_cast %98 : vector<16xf32> to vector<16x1xf32>
    %cst_62 = arith.constant 1.280000e+02 : f32
    %100 = vector.broadcast %cst_62 : f32 to vector<16x1xf32>
    %101 = arith.divf %99, %100 : vector<16x1xf32>
    %102 = vector.broadcast %101 : vector<16x1xf32> to vector<16x128xf32>
    %103 = arith.subf %93, %102 : vector<16x128xf32>
    %104 = arith.mulf %103, %103 : vector<16x128xf32>
    %cst_63 = arith.constant dense<0.000000e+00> : vector<16xf32>
    %105 = vector.multi_reduction <add>, %104, %cst_63 [1] : vector<16x128xf32> to vector<16xf32>
    %106 = vector.shape_cast %105 : vector<16xf32> to vector<16x1xf32>
    %cst_64 = arith.constant 1.280000e+02 : f32
    %107 = vector.broadcast %cst_64 : f32 to vector<16x1xf32>
    %108 = arith.divf %106, %107 : vector<16x1xf32>
    %cst_65 = arith.constant 9.99999974E-6 : f32
    %109 = vector.broadcast %cst_65 : f32 to vector<16x1xf32>
    %110 = arith.addf %108, %109 : vector<16x1xf32>
    %111 = math.rsqrt %110 : vector<16x1xf32>
    %112 = vector.broadcast %111 : vector<16x1xf32> to vector<16x128xf32>
    %113 = arith.mulf %103, %112 : vector<16x128xf32>
    %114 = vector.broadcast %95 : vector<1x128xf32> to vector<16x128xf32>
    %115 = arith.mulf %113, %114 : vector<16x128xf32>
    %116 = vector.broadcast %97 : vector<1x128xf32> to vector<16x128xf32>
    %117 = arith.addf %115, %116 : vector<16x128xf32>
    %118 = arith.truncf %117 : vector<16x128xf32> to vector<16x128xbf16>
    %c1 = arith.constant 1 : index
    %c0_66 = arith.constant 0 : index
    %c0_67 = arith.constant 0 : index
    %119 = vector.load %arg6[%c1, %c0_66, %c0_67] : memref<4x128x384xbf16, #tpu.memory_space<vmem>>, vector<1x128x384xbf16>
    %120 = vector.shape_cast %119 : vector<1x128x384xbf16> to vector<128x384xbf16>
    %cst_68 = arith.constant dense<0.000000e+00> : vector<16x384xf32>
    %121 = tpu.matmul %118, %120, %cst_68 {dimension_numbers = #tpu.dot_dimension_numbers<[1], [0], [0], [1], [0, 0, 1, 1], [], []>} : vector<16x128xbf16>, vector<128x384xbf16>, vector<16x384xf32> -> vector<16x384xf32>
    %c1_69 = arith.constant 1 : index
    %c0_70 = arith.constant 0 : index
    %c0_71 = arith.constant 0 : index
    %122 = vector.load %arg7[%c1_69, %c0_70, %c0_71] : memref<4x1x384xf32, #tpu.memory_space<vmem>>, vector<1x1x384xf32>
    %123 = vector.shape_cast %122 : vector<1x1x384xf32> to vector<1x384xf32>
    %124 = vector.broadcast %123 : vector<1x384xf32> to vector<16x384xf32>
    %125 = arith.addf %121, %124 : vector<16x384xf32>
    %126 = vector.extract_strided_slice %125 {offsets = [0, 0], sizes = [16, 128], strides = [1, 1]} : vector<16x384xf32> to vector<16x128xf32>
    %127 = arith.truncf %126 : vector<16x128xf32> to vector<16x128xbf16>
    %128 = vector.extract_strided_slice %125 {offsets = [0, 128], sizes = [16, 128], strides = [1, 1]} : vector<16x384xf32> to vector<16x128xf32>
    %129 = arith.truncf %128 : vector<16x128xf32> to vector<16x128xbf16>
    %130 = vector.extract_strided_slice %125 {offsets = [0, 256], sizes = [16, 128], strides = [1, 1]} : vector<16x384xf32> to vector<16x128xf32>
    %131 = arith.truncf %130 : vector<16x128xf32> to vector<16x128xbf16>
    %132 = tpu.concatenate %129, %129, %129, %129, %129, %129, %129, %129 in 0 : vector<16x128xbf16>, vector<16x128xbf16>, vector<16x128xbf16>, vector<16x128xbf16>, vector<16x128xbf16>, vector<16x128xbf16>, vector<16x128xbf16>, vector<16x128xbf16> -> vector<128x128xbf16>
    %133 = arith.mulf %132, %10 : vector<128x128xbf16>
    %134 = tpu.concatenate %131, %131, %131, %131, %131, %131, %131, %131 in 0 : vector<16x128xbf16>, vector<16x128xbf16>, vector<16x128xbf16>, vector<16x128xbf16>, vector<16x128xbf16>, vector<16x128xbf16>, vector<16x128xbf16>, vector<16x128xbf16> -> vector<128x128xbf16>
    %135 = arith.mulf %134, %10 : vector<128x128xbf16>
    %cst_72 = arith.constant dense<0.000000e+00> : vector<16x128xf32>
    %136 = tpu.matmul %127, %133, %cst_72 {dimension_numbers = #tpu.dot_dimension_numbers<[1], [1], [0], [0], [0, 0, 1, 0], [], []>} : vector<16x128xbf16>, vector<128x128xbf16>, vector<16x128xf32> -> vector<16x128xf32>
    %cst_73 = arith.constant dense<0xFF800000> : vector<16xf32>
    %137 = vector.multi_reduction <maximumf>, %136, %cst_73 [1] : vector<16x128xf32> to vector<16xf32>
    %138 = vector.shape_cast %137 : vector<16xf32> to vector<16x1xf32>
    %139 = vector.broadcast %138 : vector<16x1xf32> to vector<16x128xf32>
    %140 = arith.subf %136, %139 : vector<16x128xf32>
    %141 = math.exp %140 : vector<16x128xf32>
    %142 = arith.truncf %141 : vector<16x128xf32> to vector<16x128xbf16>
    %cst_74 = arith.constant dense<0.000000e+00> : vector<16x128xf32>
    %143 = tpu.matmul %142, %10, %cst_74 {dimension_numbers = #tpu.dot_dimension_numbers<[1], [0], [0], [1], [0, 0, 1, 1], [], []>} : vector<16x128xbf16>, vector<128x128xbf16>, vector<16x128xf32> -> vector<16x128xf32>
    %cst_75 = arith.constant dense<0.000000e+00> : vector<16x128xf32>
    %144 = tpu.matmul %142, %135, %cst_75 {dimension_numbers = #tpu.dot_dimension_numbers<[1], [0], [0], [1], [0, 0, 1, 1], [], []>} : vector<16x128xbf16>, vector<128x128xbf16>, vector<16x128xf32> -> vector<16x128xf32>
    %cst_76 = arith.constant 9.99999968E-21 : f32
    %145 = vector.broadcast %cst_76 : f32 to vector<16x128xf32>
    %146 = arith.addf %143, %145 : vector<16x128xf32>
    %147 = tpu.reciprocal %146 {approx = true} : vector<16x128xf32> -> vector<16x128xf32>
    %148 = arith.mulf %144, %147 : vector<16x128xf32>
    %149 = arith.truncf %148 : vector<16x128xf32> to vector<16x128xbf16>
    %c1_77 = arith.constant 1 : index
    %c0_78 = arith.constant 0 : index
    %c0_79 = arith.constant 0 : index
    %150 = vector.load %arg8[%c1_77, %c0_78, %c0_79] : memref<4x128x128xbf16, #tpu.memory_space<vmem>>, vector<1x128x128xbf16>
    %151 = vector.shape_cast %150 : vector<1x128x128xbf16> to vector<128x128xbf16>
    %cst_80 = arith.constant dense<0.000000e+00> : vector<16x128xf32>
    %152 = tpu.matmul %149, %151, %cst_80 {dimension_numbers = #tpu.dot_dimension_numbers<[1], [0], [0], [1], [0, 0, 1, 1], [], []>} : vector<16x128xbf16>, vector<128x128xbf16>, vector<16x128xf32> -> vector<16x128xf32>
    %c1_81 = arith.constant 1 : index
    %c0_82 = arith.constant 0 : index
    %c0_83 = arith.constant 0 : index
    %153 = vector.load %arg9[%c1_81, %c0_82, %c0_83] : memref<4x1x128xf32, #tpu.memory_space<vmem>>, vector<1x1x128xf32>
    %154 = vector.shape_cast %153 : vector<1x1x128xf32> to vector<1x128xf32>
    %155 = vector.broadcast %154 : vector<1x128xf32> to vector<16x128xf32>
    %156 = arith.addf %152, %155 : vector<16x128xf32>
    %157 = arith.addf %117, %156 : vector<16x128xf32>
    %c1_84 = arith.constant 1 : index
    %c0_85 = arith.constant 0 : index
    %c0_86 = arith.constant 0 : index
    %158 = vector.load %arg14[%c1_84, %c0_85, %c0_86] : memref<4x1x128xf32, #tpu.memory_space<vmem>>, vector<1x1x128xf32>
    %159 = vector.shape_cast %158 : vector<1x1x128xf32> to vector<1x128xf32>
    %c1_87 = arith.constant 1 : index
    %c0_88 = arith.constant 0 : index
    %c0_89 = arith.constant 0 : index
    %160 = vector.load %arg15[%c1_87, %c0_88, %c0_89] : memref<4x1x128xf32, #tpu.memory_space<vmem>>, vector<1x1x128xf32>
    %161 = vector.shape_cast %160 : vector<1x1x128xf32> to vector<1x128xf32>
    %cst_90 = arith.constant dense<0.000000e+00> : vector<16xf32>
    %162 = vector.multi_reduction <add>, %157, %cst_90 [1] : vector<16x128xf32> to vector<16xf32>
    %163 = vector.shape_cast %162 : vector<16xf32> to vector<16x1xf32>
    %cst_91 = arith.constant 1.280000e+02 : f32
    %164 = vector.broadcast %cst_91 : f32 to vector<16x1xf32>
    %165 = arith.divf %163, %164 : vector<16x1xf32>
    %166 = vector.broadcast %165 : vector<16x1xf32> to vector<16x128xf32>
    %167 = arith.subf %157, %166 : vector<16x128xf32>
    %168 = arith.mulf %167, %167 : vector<16x128xf32>
    %cst_92 = arith.constant dense<0.000000e+00> : vector<16xf32>
    %169 = vector.multi_reduction <add>, %168, %cst_92 [1] : vector<16x128xf32> to vector<16xf32>
    %170 = vector.shape_cast %169 : vector<16xf32> to vector<16x1xf32>
    %cst_93 = arith.constant 1.280000e+02 : f32
    %171 = vector.broadcast %cst_93 : f32 to vector<16x1xf32>
    %172 = arith.divf %170, %171 : vector<16x1xf32>
    %cst_94 = arith.constant 9.99999974E-6 : f32
    %173 = vector.broadcast %cst_94 : f32 to vector<16x1xf32>
    %174 = arith.addf %172, %173 : vector<16x1xf32>
    %175 = math.rsqrt %174 : vector<16x1xf32>
    %176 = vector.broadcast %175 : vector<16x1xf32> to vector<16x128xf32>
    %177 = arith.mulf %167, %176 : vector<16x128xf32>
    %178 = vector.broadcast %159 : vector<1x128xf32> to vector<16x128xf32>
    %179 = arith.mulf %177, %178 : vector<16x128xf32>
    %180 = vector.broadcast %161 : vector<1x128xf32> to vector<16x128xf32>
    %181 = arith.addf %179, %180 : vector<16x128xf32>
    %182 = arith.truncf %181 : vector<16x128xf32> to vector<16x128xbf16>
    %c1_95 = arith.constant 1 : index
    %c0_96 = arith.constant 0 : index
    %c0_97 = arith.constant 0 : index
    %183 = vector.load %arg10[%c1_95, %c0_96, %c0_97] : memref<4x128x256xbf16, #tpu.memory_space<vmem>>, vector<1x128x256xbf16>
    %184 = vector.shape_cast %183 : vector<1x128x256xbf16> to vector<128x256xbf16>
    %cst_98 = arith.constant dense<0.000000e+00> : vector<16x256xf32>
    %185 = tpu.matmul %182, %184, %cst_98 {dimension_numbers = #tpu.dot_dimension_numbers<[1], [0], [0], [1], [0, 0, 1, 1], [], []>} : vector<16x128xbf16>, vector<128x256xbf16>, vector<16x256xf32> -> vector<16x256xf32>
    %c1_99 = arith.constant 1 : index
    %c0_100 = arith.constant 0 : index
    %c0_101 = arith.constant 0 : index
    %186 = vector.load %arg11[%c1_99, %c0_100, %c0_101] : memref<4x1x256xf32, #tpu.memory_space<vmem>>, vector<1x1x256xf32>
    %187 = vector.shape_cast %186 : vector<1x1x256xf32> to vector<1x256xf32>
    %188 = vector.broadcast %187 : vector<1x256xf32> to vector<16x256xf32>
    %189 = arith.addf %185, %188 : vector<16x256xf32>
    %cst_102 = arith.constant 0.000000e+00 : f32
    %190 = vector.broadcast %cst_102 : f32 to vector<16x256xf32>
    %191 = arith.maximumf %189, %190 : vector<16x256xf32>
    %192 = arith.truncf %191 : vector<16x256xf32> to vector<16x256xbf16>
    %c1_103 = arith.constant 1 : index
    %c0_104 = arith.constant 0 : index
    %c0_105 = arith.constant 0 : index
    %193 = vector.load %arg12[%c1_103, %c0_104, %c0_105] : memref<4x256x128xbf16, #tpu.memory_space<vmem>>, vector<1x256x128xbf16>
    %194 = vector.shape_cast %193 : vector<1x256x128xbf16> to vector<256x128xbf16>
    %cst_106 = arith.constant dense<0.000000e+00> : vector<16x128xf32>
    %195 = tpu.matmul %192, %194, %cst_106 {dimension_numbers = #tpu.dot_dimension_numbers<[1], [0], [0], [1], [0, 0, 1, 1], [], []>} : vector<16x256xbf16>, vector<256x128xbf16>, vector<16x128xf32> -> vector<16x128xf32>
    %c1_107 = arith.constant 1 : index
    %c0_108 = arith.constant 0 : index
    %c0_109 = arith.constant 0 : index
    %196 = vector.load %arg13[%c1_107, %c0_108, %c0_109] : memref<4x1x128xf32, #tpu.memory_space<vmem>>, vector<1x1x128xf32>
    %197 = vector.shape_cast %196 : vector<1x1x128xf32> to vector<1x128xf32>
    %198 = vector.broadcast %197 : vector<1x128xf32> to vector<16x128xf32>
    %199 = arith.addf %195, %198 : vector<16x128xf32>
    %200 = arith.addf %181, %199 : vector<16x128xf32>
    %c1_110 = arith.constant 1 : index
    %c0_111 = arith.constant 0 : index
    %c0_112 = arith.constant 0 : index
    %201 = vector.load %arg16[%c1_110, %c0_111, %c0_112] : memref<4x1x128xf32, #tpu.memory_space<vmem>>, vector<1x1x128xf32>
    %202 = vector.shape_cast %201 : vector<1x1x128xf32> to vector<1x128xf32>
    %c1_113 = arith.constant 1 : index
    %c0_114 = arith.constant 0 : index
    %c0_115 = arith.constant 0 : index
    %203 = vector.load %arg17[%c1_113, %c0_114, %c0_115] : memref<4x1x128xf32, #tpu.memory_space<vmem>>, vector<1x1x128xf32>
    %204 = vector.shape_cast %203 : vector<1x1x128xf32> to vector<1x128xf32>
    %cst_116 = arith.constant dense<0.000000e+00> : vector<16xf32>
    %205 = vector.multi_reduction <add>, %200, %cst_116 [1] : vector<16x128xf32> to vector<16xf32>
    %206 = vector.shape_cast %205 : vector<16xf32> to vector<16x1xf32>
    %cst_117 = arith.constant 1.280000e+02 : f32
    %207 = vector.broadcast %cst_117 : f32 to vector<16x1xf32>
    %208 = arith.divf %206, %207 : vector<16x1xf32>
    %209 = vector.broadcast %208 : vector<16x1xf32> to vector<16x128xf32>
    %210 = arith.subf %200, %209 : vector<16x128xf32>
    %211 = arith.mulf %210, %210 : vector<16x128xf32>
    %cst_118 = arith.constant dense<0.000000e+00> : vector<16xf32>
    %212 = vector.multi_reduction <add>, %211, %cst_118 [1] : vector<16x128xf32> to vector<16xf32>
    %213 = vector.shape_cast %212 : vector<16xf32> to vector<16x1xf32>
    %cst_119 = arith.constant 1.280000e+02 : f32
    %214 = vector.broadcast %cst_119 : f32 to vector<16x1xf32>
    %215 = arith.divf %213, %214 : vector<16x1xf32>
    %cst_120 = arith.constant 9.99999974E-6 : f32
    %216 = vector.broadcast %cst_120 : f32 to vector<16x1xf32>
    %217 = arith.addf %215, %216 : vector<16x1xf32>
    %218 = math.rsqrt %217 : vector<16x1xf32>
    %219 = vector.broadcast %218 : vector<16x1xf32> to vector<16x128xf32>
    %220 = arith.mulf %210, %219 : vector<16x128xf32>
    %221 = vector.broadcast %202 : vector<1x128xf32> to vector<16x128xf32>
    %222 = arith.mulf %220, %221 : vector<16x128xf32>
    %223 = vector.broadcast %204 : vector<1x128xf32> to vector<16x128xf32>
    %224 = arith.addf %222, %223 : vector<16x128xf32>
    %225 = arith.truncf %224 : vector<16x128xf32> to vector<16x128xbf16>
    %c2 = arith.constant 2 : index
    %c0_121 = arith.constant 0 : index
    %c0_122 = arith.constant 0 : index
    %226 = vector.load %arg6[%c2, %c0_121, %c0_122] : memref<4x128x384xbf16, #tpu.memory_space<vmem>>, vector<1x128x384xbf16>
    %227 = vector.shape_cast %226 : vector<1x128x384xbf16> to vector<128x384xbf16>
    %cst_123 = arith.constant dense<0.000000e+00> : vector<16x384xf32>
    %228 = tpu.matmul %225, %227, %cst_123 {dimension_numbers = #tpu.dot_dimension_numbers<[1], [0], [0], [1], [0, 0, 1, 1], [], []>} : vector<16x128xbf16>, vector<128x384xbf16>, vector<16x384xf32> -> vector<16x384xf32>
    %c2_124 = arith.constant 2 : index
    %c0_125 = arith.constant 0 : index
    %c0_126 = arith.constant 0 : index
    %229 = vector.load %arg7[%c2_124, %c0_125, %c0_126] : memref<4x1x384xf32, #tpu.memory_space<vmem>>, vector<1x1x384xf32>
    %230 = vector.shape_cast %229 : vector<1x1x384xf32> to vector<1x384xf32>
    %231 = vector.broadcast %230 : vector<1x384xf32> to vector<16x384xf32>
    %232 = arith.addf %228, %231 : vector<16x384xf32>
    %233 = vector.extract_strided_slice %232 {offsets = [0, 0], sizes = [16, 128], strides = [1, 1]} : vector<16x384xf32> to vector<16x128xf32>
    %234 = arith.truncf %233 : vector<16x128xf32> to vector<16x128xbf16>
    %235 = vector.extract_strided_slice %232 {offsets = [0, 128], sizes = [16, 128], strides = [1, 1]} : vector<16x384xf32> to vector<16x128xf32>
    %236 = arith.truncf %235 : vector<16x128xf32> to vector<16x128xbf16>
    %237 = vector.extract_strided_slice %232 {offsets = [0, 256], sizes = [16, 128], strides = [1, 1]} : vector<16x384xf32> to vector<16x128xf32>
    %238 = arith.truncf %237 : vector<16x128xf32> to vector<16x128xbf16>
    %239 = tpu.concatenate %236, %236, %236, %236, %236, %236, %236, %236 in 0 : vector<16x128xbf16>, vector<16x128xbf16>, vector<16x128xbf16>, vector<16x128xbf16>, vector<16x128xbf16>, vector<16x128xbf16>, vector<16x128xbf16>, vector<16x128xbf16> -> vector<128x128xbf16>
    %240 = arith.mulf %239, %10 : vector<128x128xbf16>
    %241 = tpu.concatenate %238, %238, %238, %238, %238, %238, %238, %238 in 0 : vector<16x128xbf16>, vector<16x128xbf16>, vector<16x128xbf16>, vector<16x128xbf16>, vector<16x128xbf16>, vector<16x128xbf16>, vector<16x128xbf16>, vector<16x128xbf16> -> vector<128x128xbf16>
    %242 = arith.mulf %241, %10 : vector<128x128xbf16>
    %cst_127 = arith.constant dense<0.000000e+00> : vector<16x128xf32>
    %243 = tpu.matmul %234, %240, %cst_127 {dimension_numbers = #tpu.dot_dimension_numbers<[1], [1], [0], [0], [0, 0, 1, 0], [], []>} : vector<16x128xbf16>, vector<128x128xbf16>, vector<16x128xf32> -> vector<16x128xf32>
    %cst_128 = arith.constant dense<0xFF800000> : vector<16xf32>
    %244 = vector.multi_reduction <maximumf>, %243, %cst_128 [1] : vector<16x128xf32> to vector<16xf32>
    %245 = vector.shape_cast %244 : vector<16xf32> to vector<16x1xf32>
    %246 = vector.broadcast %245 : vector<16x1xf32> to vector<16x128xf32>
    %247 = arith.subf %243, %246 : vector<16x128xf32>
    %248 = math.exp %247 : vector<16x128xf32>
    %249 = arith.truncf %248 : vector<16x128xf32> to vector<16x128xbf16>
    %cst_129 = arith.constant dense<0.000000e+00> : vector<16x128xf32>
    %250 = tpu.matmul %249, %10, %cst_129 {dimension_numbers = #tpu.dot_dimension_numbers<[1], [0], [0], [1], [0, 0, 1, 1], [], []>} : vector<16x128xbf16>, vector<128x128xbf16>, vector<16x128xf32> -> vector<16x128xf32>
    %cst_130 = arith.constant dense<0.000000e+00> : vector<16x128xf32>
    %251 = tpu.matmul %249, %242, %cst_130 {dimension_numbers = #tpu.dot_dimension_numbers<[1], [0], [0], [1], [0, 0, 1, 1], [], []>} : vector<16x128xbf16>, vector<128x128xbf16>, vector<16x128xf32> -> vector<16x128xf32>
    %cst_131 = arith.constant 9.99999968E-21 : f32
    %252 = vector.broadcast %cst_131 : f32 to vector<16x128xf32>
    %253 = arith.addf %250, %252 : vector<16x128xf32>
    %254 = tpu.reciprocal %253 {approx = true} : vector<16x128xf32> -> vector<16x128xf32>
    %255 = arith.mulf %251, %254 : vector<16x128xf32>
    %256 = arith.truncf %255 : vector<16x128xf32> to vector<16x128xbf16>
    %c2_132 = arith.constant 2 : index
    %c0_133 = arith.constant 0 : index
    %c0_134 = arith.constant 0 : index
    %257 = vector.load %arg8[%c2_132, %c0_133, %c0_134] : memref<4x128x128xbf16, #tpu.memory_space<vmem>>, vector<1x128x128xbf16>
    %258 = vector.shape_cast %257 : vector<1x128x128xbf16> to vector<128x128xbf16>
    %cst_135 = arith.constant dense<0.000000e+00> : vector<16x128xf32>
    %259 = tpu.matmul %256, %258, %cst_135 {dimension_numbers = #tpu.dot_dimension_numbers<[1], [0], [0], [1], [0, 0, 1, 1], [], []>} : vector<16x128xbf16>, vector<128x128xbf16>, vector<16x128xf32> -> vector<16x128xf32>
    %c2_136 = arith.constant 2 : index
    %c0_137 = arith.constant 0 : index
    %c0_138 = arith.constant 0 : index
    %260 = vector.load %arg9[%c2_136, %c0_137, %c0_138] : memref<4x1x128xf32, #tpu.memory_space<vmem>>, vector<1x1x128xf32>
    %261 = vector.shape_cast %260 : vector<1x1x128xf32> to vector<1x128xf32>
    %262 = vector.broadcast %261 : vector<1x128xf32> to vector<16x128xf32>
    %263 = arith.addf %259, %262 : vector<16x128xf32>
    %264 = arith.addf %224, %263 : vector<16x128xf32>
    %c2_139 = arith.constant 2 : index
    %c0_140 = arith.constant 0 : index
    %c0_141 = arith.constant 0 : index
    %265 = vector.load %arg14[%c2_139, %c0_140, %c0_141] : memref<4x1x128xf32, #tpu.memory_space<vmem>>, vector<1x1x128xf32>
    %266 = vector.shape_cast %265 : vector<1x1x128xf32> to vector<1x128xf32>
    %c2_142 = arith.constant 2 : index
    %c0_143 = arith.constant 0 : index
    %c0_144 = arith.constant 0 : index
    %267 = vector.load %arg15[%c2_142, %c0_143, %c0_144] : memref<4x1x128xf32, #tpu.memory_space<vmem>>, vector<1x1x128xf32>
    %268 = vector.shape_cast %267 : vector<1x1x128xf32> to vector<1x128xf32>
    %cst_145 = arith.constant dense<0.000000e+00> : vector<16xf32>
    %269 = vector.multi_reduction <add>, %264, %cst_145 [1] : vector<16x128xf32> to vector<16xf32>
    %270 = vector.shape_cast %269 : vector<16xf32> to vector<16x1xf32>
    %cst_146 = arith.constant 1.280000e+02 : f32
    %271 = vector.broadcast %cst_146 : f32 to vector<16x1xf32>
    %272 = arith.divf %270, %271 : vector<16x1xf32>
    %273 = vector.broadcast %272 : vector<16x1xf32> to vector<16x128xf32>
    %274 = arith.subf %264, %273 : vector<16x128xf32>
    %275 = arith.mulf %274, %274 : vector<16x128xf32>
    %cst_147 = arith.constant dense<0.000000e+00> : vector<16xf32>
    %276 = vector.multi_reduction <add>, %275, %cst_147 [1] : vector<16x128xf32> to vector<16xf32>
    %277 = vector.shape_cast %276 : vector<16xf32> to vector<16x1xf32>
    %cst_148 = arith.constant 1.280000e+02 : f32
    %278 = vector.broadcast %cst_148 : f32 to vector<16x1xf32>
    %279 = arith.divf %277, %278 : vector<16x1xf32>
    %cst_149 = arith.constant 9.99999974E-6 : f32
    %280 = vector.broadcast %cst_149 : f32 to vector<16x1xf32>
    %281 = arith.addf %279, %280 : vector<16x1xf32>
    %282 = math.rsqrt %281 : vector<16x1xf32>
    %283 = vector.broadcast %282 : vector<16x1xf32> to vector<16x128xf32>
    %284 = arith.mulf %274, %283 : vector<16x128xf32>
    %285 = vector.broadcast %266 : vector<1x128xf32> to vector<16x128xf32>
    %286 = arith.mulf %284, %285 : vector<16x128xf32>
    %287 = vector.broadcast %268 : vector<1x128xf32> to vector<16x128xf32>
    %288 = arith.addf %286, %287 : vector<16x128xf32>
    %289 = arith.truncf %288 : vector<16x128xf32> to vector<16x128xbf16>
    %c2_150 = arith.constant 2 : index
    %c0_151 = arith.constant 0 : index
    %c0_152 = arith.constant 0 : index
    %290 = vector.load %arg10[%c2_150, %c0_151, %c0_152] : memref<4x128x256xbf16, #tpu.memory_space<vmem>>, vector<1x128x256xbf16>
    %291 = vector.shape_cast %290 : vector<1x128x256xbf16> to vector<128x256xbf16>
    %cst_153 = arith.constant dense<0.000000e+00> : vector<16x256xf32>
    %292 = tpu.matmul %289, %291, %cst_153 {dimension_numbers = #tpu.dot_dimension_numbers<[1], [0], [0], [1], [0, 0, 1, 1], [], []>} : vector<16x128xbf16>, vector<128x256xbf16>, vector<16x256xf32> -> vector<16x256xf32>
    %c2_154 = arith.constant 2 : index
    %c0_155 = arith.constant 0 : index
    %c0_156 = arith.constant 0 : index
    %293 = vector.load %arg11[%c2_154, %c0_155, %c0_156] : memref<4x1x256xf32, #tpu.memory_space<vmem>>, vector<1x1x256xf32>
    %294 = vector.shape_cast %293 : vector<1x1x256xf32> to vector<1x256xf32>
    %295 = vector.broadcast %294 : vector<1x256xf32> to vector<16x256xf32>
    %296 = arith.addf %292, %295 : vector<16x256xf32>
    %cst_157 = arith.constant 0.000000e+00 : f32
    %297 = vector.broadcast %cst_157 : f32 to vector<16x256xf32>
    %298 = arith.maximumf %296, %297 : vector<16x256xf32>
    %299 = arith.truncf %298 : vector<16x256xf32> to vector<16x256xbf16>
    %c2_158 = arith.constant 2 : index
    %c0_159 = arith.constant 0 : index
    %c0_160 = arith.constant 0 : index
    %300 = vector.load %arg12[%c2_158, %c0_159, %c0_160] : memref<4x256x128xbf16, #tpu.memory_space<vmem>>, vector<1x256x128xbf16>
    %301 = vector.shape_cast %300 : vector<1x256x128xbf16> to vector<256x128xbf16>
    %cst_161 = arith.constant dense<0.000000e+00> : vector<16x128xf32>
    %302 = tpu.matmul %299, %301, %cst_161 {dimension_numbers = #tpu.dot_dimension_numbers<[1], [0], [0], [1], [0, 0, 1, 1], [], []>} : vector<16x256xbf16>, vector<256x128xbf16>, vector<16x128xf32> -> vector<16x128xf32>
    %c2_162 = arith.constant 2 : index
    %c0_163 = arith.constant 0 : index
    %c0_164 = arith.constant 0 : index
    %303 = vector.load %arg13[%c2_162, %c0_163, %c0_164] : memref<4x1x128xf32, #tpu.memory_space<vmem>>, vector<1x1x128xf32>
    %304 = vector.shape_cast %303 : vector<1x1x128xf32> to vector<1x128xf32>
    %305 = vector.broadcast %304 : vector<1x128xf32> to vector<16x128xf32>
    %306 = arith.addf %302, %305 : vector<16x128xf32>
    %307 = arith.addf %288, %306 : vector<16x128xf32>
    %c2_165 = arith.constant 2 : index
    %c0_166 = arith.constant 0 : index
    %c0_167 = arith.constant 0 : index
    %308 = vector.load %arg16[%c2_165, %c0_166, %c0_167] : memref<4x1x128xf32, #tpu.memory_space<vmem>>, vector<1x1x128xf32>
    %309 = vector.shape_cast %308 : vector<1x1x128xf32> to vector<1x128xf32>
    %c2_168 = arith.constant 2 : index
    %c0_169 = arith.constant 0 : index
    %c0_170 = arith.constant 0 : index
    %310 = vector.load %arg17[%c2_168, %c0_169, %c0_170] : memref<4x1x128xf32, #tpu.memory_space<vmem>>, vector<1x1x128xf32>
    %311 = vector.shape_cast %310 : vector<1x1x128xf32> to vector<1x128xf32>
    %cst_171 = arith.constant dense<0.000000e+00> : vector<16xf32>
    %312 = vector.multi_reduction <add>, %307, %cst_171 [1] : vector<16x128xf32> to vector<16xf32>
    %313 = vector.shape_cast %312 : vector<16xf32> to vector<16x1xf32>
    %cst_172 = arith.constant 1.280000e+02 : f32
    %314 = vector.broadcast %cst_172 : f32 to vector<16x1xf32>
    %315 = arith.divf %313, %314 : vector<16x1xf32>
    %316 = vector.broadcast %315 : vector<16x1xf32> to vector<16x128xf32>
    %317 = arith.subf %307, %316 : vector<16x128xf32>
    %318 = arith.mulf %317, %317 : vector<16x128xf32>
    %cst_173 = arith.constant dense<0.000000e+00> : vector<16xf32>
    %319 = vector.multi_reduction <add>, %318, %cst_173 [1] : vector<16x128xf32> to vector<16xf32>
    %320 = vector.shape_cast %319 : vector<16xf32> to vector<16x1xf32>
    %cst_174 = arith.constant 1.280000e+02 : f32
    %321 = vector.broadcast %cst_174 : f32 to vector<16x1xf32>
    %322 = arith.divf %320, %321 : vector<16x1xf32>
    %cst_175 = arith.constant 9.99999974E-6 : f32
    %323 = vector.broadcast %cst_175 : f32 to vector<16x1xf32>
    %324 = arith.addf %322, %323 : vector<16x1xf32>
    %325 = math.rsqrt %324 : vector<16x1xf32>
    %326 = vector.broadcast %325 : vector<16x1xf32> to vector<16x128xf32>
    %327 = arith.mulf %317, %326 : vector<16x128xf32>
    %328 = vector.broadcast %309 : vector<1x128xf32> to vector<16x128xf32>
    %329 = arith.mulf %327, %328 : vector<16x128xf32>
    %330 = vector.broadcast %311 : vector<1x128xf32> to vector<16x128xf32>
    %331 = arith.addf %329, %330 : vector<16x128xf32>
    %332 = arith.truncf %331 : vector<16x128xf32> to vector<16x128xbf16>
    %c3 = arith.constant 3 : index
    %c0_176 = arith.constant 0 : index
    %c0_177 = arith.constant 0 : index
    %333 = vector.load %arg6[%c3, %c0_176, %c0_177] : memref<4x128x384xbf16, #tpu.memory_space<vmem>>, vector<1x128x384xbf16>
    %334 = vector.shape_cast %333 : vector<1x128x384xbf16> to vector<128x384xbf16>
    %cst_178 = arith.constant dense<0.000000e+00> : vector<16x384xf32>
    %335 = tpu.matmul %332, %334, %cst_178 {dimension_numbers = #tpu.dot_dimension_numbers<[1], [0], [0], [1], [0, 0, 1, 1], [], []>} : vector<16x128xbf16>, vector<128x384xbf16>, vector<16x384xf32> -> vector<16x384xf32>
    %c3_179 = arith.constant 3 : index
    %c0_180 = arith.constant 0 : index
    %c0_181 = arith.constant 0 : index
    %336 = vector.load %arg7[%c3_179, %c0_180, %c0_181] : memref<4x1x384xf32, #tpu.memory_space<vmem>>, vector<1x1x384xf32>
    %337 = vector.shape_cast %336 : vector<1x1x384xf32> to vector<1x384xf32>
    %338 = vector.broadcast %337 : vector<1x384xf32> to vector<16x384xf32>
    %339 = arith.addf %335, %338 : vector<16x384xf32>
    %340 = vector.extract_strided_slice %339 {offsets = [0, 0], sizes = [16, 128], strides = [1, 1]} : vector<16x384xf32> to vector<16x128xf32>
    %341 = arith.truncf %340 : vector<16x128xf32> to vector<16x128xbf16>
    %342 = vector.extract_strided_slice %339 {offsets = [0, 128], sizes = [16, 128], strides = [1, 1]} : vector<16x384xf32> to vector<16x128xf32>
    %343 = arith.truncf %342 : vector<16x128xf32> to vector<16x128xbf16>
    %344 = vector.extract_strided_slice %339 {offsets = [0, 256], sizes = [16, 128], strides = [1, 1]} : vector<16x384xf32> to vector<16x128xf32>
    %345 = arith.truncf %344 : vector<16x128xf32> to vector<16x128xbf16>
    %346 = tpu.concatenate %343, %343, %343, %343, %343, %343, %343, %343 in 0 : vector<16x128xbf16>, vector<16x128xbf16>, vector<16x128xbf16>, vector<16x128xbf16>, vector<16x128xbf16>, vector<16x128xbf16>, vector<16x128xbf16>, vector<16x128xbf16> -> vector<128x128xbf16>
    %347 = arith.mulf %346, %10 : vector<128x128xbf16>
    %348 = tpu.concatenate %345, %345, %345, %345, %345, %345, %345, %345 in 0 : vector<16x128xbf16>, vector<16x128xbf16>, vector<16x128xbf16>, vector<16x128xbf16>, vector<16x128xbf16>, vector<16x128xbf16>, vector<16x128xbf16>, vector<16x128xbf16> -> vector<128x128xbf16>
    %349 = arith.mulf %348, %10 : vector<128x128xbf16>
    %cst_182 = arith.constant dense<0.000000e+00> : vector<16x128xf32>
    %350 = tpu.matmul %341, %347, %cst_182 {dimension_numbers = #tpu.dot_dimension_numbers<[1], [1], [0], [0], [0, 0, 1, 0], [], []>} : vector<16x128xbf16>, vector<128x128xbf16>, vector<16x128xf32> -> vector<16x128xf32>
    %cst_183 = arith.constant dense<0xFF800000> : vector<16xf32>
    %351 = vector.multi_reduction <maximumf>, %350, %cst_183 [1] : vector<16x128xf32> to vector<16xf32>
    %352 = vector.shape_cast %351 : vector<16xf32> to vector<16x1xf32>
    %353 = vector.broadcast %352 : vector<16x1xf32> to vector<16x128xf32>
    %354 = arith.subf %350, %353 : vector<16x128xf32>
    %355 = math.exp %354 : vector<16x128xf32>
    %356 = arith.truncf %355 : vector<16x128xf32> to vector<16x128xbf16>
    %cst_184 = arith.constant dense<0.000000e+00> : vector<16x128xf32>
    %357 = tpu.matmul %356, %10, %cst_184 {dimension_numbers = #tpu.dot_dimension_numbers<[1], [0], [0], [1], [0, 0, 1, 1], [], []>} : vector<16x128xbf16>, vector<128x128xbf16>, vector<16x128xf32> -> vector<16x128xf32>
    %cst_185 = arith.constant dense<0.000000e+00> : vector<16x128xf32>
    %358 = tpu.matmul %356, %349, %cst_185 {dimension_numbers = #tpu.dot_dimension_numbers<[1], [0], [0], [1], [0, 0, 1, 1], [], []>} : vector<16x128xbf16>, vector<128x128xbf16>, vector<16x128xf32> -> vector<16x128xf32>
    %cst_186 = arith.constant 9.99999968E-21 : f32
    %359 = vector.broadcast %cst_186 : f32 to vector<16x128xf32>
    %360 = arith.addf %357, %359 : vector<16x128xf32>
    %361 = tpu.reciprocal %360 {approx = true} : vector<16x128xf32> -> vector<16x128xf32>
    %362 = arith.mulf %358, %361 : vector<16x128xf32>
    %363 = arith.truncf %362 : vector<16x128xf32> to vector<16x128xbf16>
    %c3_187 = arith.constant 3 : index
    %c0_188 = arith.constant 0 : index
    %c0_189 = arith.constant 0 : index
    %364 = vector.load %arg8[%c3_187, %c0_188, %c0_189] : memref<4x128x128xbf16, #tpu.memory_space<vmem>>, vector<1x128x128xbf16>
    %365 = vector.shape_cast %364 : vector<1x128x128xbf16> to vector<128x128xbf16>
    %cst_190 = arith.constant dense<0.000000e+00> : vector<16x128xf32>
    %366 = tpu.matmul %363, %365, %cst_190 {dimension_numbers = #tpu.dot_dimension_numbers<[1], [0], [0], [1], [0, 0, 1, 1], [], []>} : vector<16x128xbf16>, vector<128x128xbf16>, vector<16x128xf32> -> vector<16x128xf32>
    %c3_191 = arith.constant 3 : index
    %c0_192 = arith.constant 0 : index
    %c0_193 = arith.constant 0 : index
    %367 = vector.load %arg9[%c3_191, %c0_192, %c0_193] : memref<4x1x128xf32, #tpu.memory_space<vmem>>, vector<1x1x128xf32>
    %368 = vector.shape_cast %367 : vector<1x1x128xf32> to vector<1x128xf32>
    %369 = vector.broadcast %368 : vector<1x128xf32> to vector<16x128xf32>
    %370 = arith.addf %366, %369 : vector<16x128xf32>
    %371 = arith.addf %331, %370 : vector<16x128xf32>
    %c3_194 = arith.constant 3 : index
    %c0_195 = arith.constant 0 : index
    %c0_196 = arith.constant 0 : index
    %372 = vector.load %arg14[%c3_194, %c0_195, %c0_196] : memref<4x1x128xf32, #tpu.memory_space<vmem>>, vector<1x1x128xf32>
    %373 = vector.shape_cast %372 : vector<1x1x128xf32> to vector<1x128xf32>
    %c3_197 = arith.constant 3 : index
    %c0_198 = arith.constant 0 : index
    %c0_199 = arith.constant 0 : index
    %374 = vector.load %arg15[%c3_197, %c0_198, %c0_199] : memref<4x1x128xf32, #tpu.memory_space<vmem>>, vector<1x1x128xf32>
    %375 = vector.shape_cast %374 : vector<1x1x128xf32> to vector<1x128xf32>
    %cst_200 = arith.constant dense<0.000000e+00> : vector<16xf32>
    %376 = vector.multi_reduction <add>, %371, %cst_200 [1] : vector<16x128xf32> to vector<16xf32>
    %377 = vector.shape_cast %376 : vector<16xf32> to vector<16x1xf32>
    %cst_201 = arith.constant 1.280000e+02 : f32
    %378 = vector.broadcast %cst_201 : f32 to vector<16x1xf32>
    %379 = arith.divf %377, %378 : vector<16x1xf32>
    %380 = vector.broadcast %379 : vector<16x1xf32> to vector<16x128xf32>
    %381 = arith.subf %371, %380 : vector<16x128xf32>
    %382 = arith.mulf %381, %381 : vector<16x128xf32>
    %cst_202 = arith.constant dense<0.000000e+00> : vector<16xf32>
    %383 = vector.multi_reduction <add>, %382, %cst_202 [1] : vector<16x128xf32> to vector<16xf32>
    %384 = vector.shape_cast %383 : vector<16xf32> to vector<16x1xf32>
    %cst_203 = arith.constant 1.280000e+02 : f32
    %385 = vector.broadcast %cst_203 : f32 to vector<16x1xf32>
    %386 = arith.divf %384, %385 : vector<16x1xf32>
    %cst_204 = arith.constant 9.99999974E-6 : f32
    %387 = vector.broadcast %cst_204 : f32 to vector<16x1xf32>
    %388 = arith.addf %386, %387 : vector<16x1xf32>
    %389 = math.rsqrt %388 : vector<16x1xf32>
    %390 = vector.broadcast %389 : vector<16x1xf32> to vector<16x128xf32>
    %391 = arith.mulf %381, %390 : vector<16x128xf32>
    %392 = vector.broadcast %373 : vector<1x128xf32> to vector<16x128xf32>
    %393 = arith.mulf %391, %392 : vector<16x128xf32>
    %394 = vector.broadcast %375 : vector<1x128xf32> to vector<16x128xf32>
    %395 = arith.addf %393, %394 : vector<16x128xf32>
    %396 = arith.truncf %395 : vector<16x128xf32> to vector<16x128xbf16>
    %c3_205 = arith.constant 3 : index
    %c0_206 = arith.constant 0 : index
    %c0_207 = arith.constant 0 : index
    %397 = vector.load %arg10[%c3_205, %c0_206, %c0_207] : memref<4x128x256xbf16, #tpu.memory_space<vmem>>, vector<1x128x256xbf16>
    %398 = vector.shape_cast %397 : vector<1x128x256xbf16> to vector<128x256xbf16>
    %cst_208 = arith.constant dense<0.000000e+00> : vector<16x256xf32>
    %399 = tpu.matmul %396, %398, %cst_208 {dimension_numbers = #tpu.dot_dimension_numbers<[1], [0], [0], [1], [0, 0, 1, 1], [], []>} : vector<16x128xbf16>, vector<128x256xbf16>, vector<16x256xf32> -> vector<16x256xf32>
    %c3_209 = arith.constant 3 : index
    %c0_210 = arith.constant 0 : index
    %c0_211 = arith.constant 0 : index
    %400 = vector.load %arg11[%c3_209, %c0_210, %c0_211] : memref<4x1x256xf32, #tpu.memory_space<vmem>>, vector<1x1x256xf32>
    %401 = vector.shape_cast %400 : vector<1x1x256xf32> to vector<1x256xf32>
    %402 = vector.broadcast %401 : vector<1x256xf32> to vector<16x256xf32>
    %403 = arith.addf %399, %402 : vector<16x256xf32>
    %cst_212 = arith.constant 0.000000e+00 : f32
    %404 = vector.broadcast %cst_212 : f32 to vector<16x256xf32>
    %405 = arith.maximumf %403, %404 : vector<16x256xf32>
    %406 = arith.truncf %405 : vector<16x256xf32> to vector<16x256xbf16>
    %c3_213 = arith.constant 3 : index
    %c0_214 = arith.constant 0 : index
    %c0_215 = arith.constant 0 : index
    %407 = vector.load %arg12[%c3_213, %c0_214, %c0_215] : memref<4x256x128xbf16, #tpu.memory_space<vmem>>, vector<1x256x128xbf16>
    %408 = vector.shape_cast %407 : vector<1x256x128xbf16> to vector<256x128xbf16>
    %cst_216 = arith.constant dense<0.000000e+00> : vector<16x128xf32>
    %409 = tpu.matmul %406, %408, %cst_216 {dimension_numbers = #tpu.dot_dimension_numbers<[1], [0], [0], [1], [0, 0, 1, 1], [], []>} : vector<16x256xbf16>, vector<256x128xbf16>, vector<16x128xf32> -> vector<16x128xf32>
    %c3_217 = arith.constant 3 : index
    %c0_218 = arith.constant 0 : index
    %c0_219 = arith.constant 0 : index
    %410 = vector.load %arg13[%c3_217, %c0_218, %c0_219] : memref<4x1x128xf32, #tpu.memory_space<vmem>>, vector<1x1x128xf32>
    %411 = vector.shape_cast %410 : vector<1x1x128xf32> to vector<1x128xf32>
    %412 = vector.broadcast %411 : vector<1x128xf32> to vector<16x128xf32>
    %413 = arith.addf %409, %412 : vector<16x128xf32>
    %414 = arith.addf %395, %413 : vector<16x128xf32>
    %c3_220 = arith.constant 3 : index
    %c0_221 = arith.constant 0 : index
    %c0_222 = arith.constant 0 : index
    %415 = vector.load %arg16[%c3_220, %c0_221, %c0_222] : memref<4x1x128xf32, #tpu.memory_space<vmem>>, vector<1x1x128xf32>
    %416 = vector.shape_cast %415 : vector<1x1x128xf32> to vector<1x128xf32>
    %c3_223 = arith.constant 3 : index
    %c0_224 = arith.constant 0 : index
    %c0_225 = arith.constant 0 : index
    %417 = vector.load %arg17[%c3_223, %c0_224, %c0_225] : memref<4x1x128xf32, #tpu.memory_space<vmem>>, vector<1x1x128xf32>
    %418 = vector.shape_cast %417 : vector<1x1x128xf32> to vector<1x128xf32>
    %cst_226 = arith.constant dense<0.000000e+00> : vector<16xf32>
    %419 = vector.multi_reduction <add>, %414, %cst_226 [1] : vector<16x128xf32> to vector<16xf32>
    %420 = vector.shape_cast %419 : vector<16xf32> to vector<16x1xf32>
    %cst_227 = arith.constant 1.280000e+02 : f32
    %421 = vector.broadcast %cst_227 : f32 to vector<16x1xf32>
    %422 = arith.divf %420, %421 : vector<16x1xf32>
    %423 = vector.broadcast %422 : vector<16x1xf32> to vector<16x128xf32>
    %424 = arith.subf %414, %423 : vector<16x128xf32>
    %425 = arith.mulf %424, %424 : vector<16x128xf32>
    %cst_228 = arith.constant dense<0.000000e+00> : vector<16xf32>
    %426 = vector.multi_reduction <add>, %425, %cst_228 [1] : vector<16x128xf32> to vector<16xf32>
    %427 = vector.shape_cast %426 : vector<16xf32> to vector<16x1xf32>
    %cst_229 = arith.constant 1.280000e+02 : f32
    %428 = vector.broadcast %cst_229 : f32 to vector<16x1xf32>
    %429 = arith.divf %427, %428 : vector<16x1xf32>
    %cst_230 = arith.constant 9.99999974E-6 : f32
    %430 = vector.broadcast %cst_230 : f32 to vector<16x1xf32>
    %431 = arith.addf %429, %430 : vector<16x1xf32>
    %432 = math.rsqrt %431 : vector<16x1xf32>
    %433 = vector.broadcast %432 : vector<16x1xf32> to vector<16x128xf32>
    %434 = arith.mulf %424, %433 : vector<16x128xf32>
    %435 = vector.broadcast %416 : vector<1x128xf32> to vector<16x128xf32>
    %436 = arith.mulf %434, %435 : vector<16x128xf32>
    %437 = vector.broadcast %418 : vector<1x128xf32> to vector<16x128xf32>
    %438 = arith.addf %436, %437 : vector<16x128xf32>
    %cst_231 = arith.constant dense<0.000000e+00> : vector<128xf32>
    %439 = vector.multi_reduction <add>, %438, %cst_231 [0] : vector<16x128xf32> to vector<128xf32>
    %440 = vector.shape_cast %439 : vector<128xf32> to vector<1x128xf32>
    %cst_232 = arith.constant 1.600000e+01 : f32
    %441 = vector.broadcast %cst_232 : f32 to vector<1x128xf32>
    %442 = arith.divf %440, %441 : vector<1x128xf32>
    %443 = vector.shape_cast %442 : vector<1x128xf32> to vector<1x128xf32>
    %444 = vector.broadcast %443 : vector<1x128xf32> to vector<8x128xf32>
    %c0_233 = arith.constant 0 : index
    %c0_234 = arith.constant 0 : index
    %c0_235 = arith.constant 0 : index
    %445 = vector.load %arg18[%c0_233, %c0_234, %c0_235] : memref<1x8x128xf32, #tpu.memory_space<vmem>>, vector<1x8x128xf32>
    %446 = vector.shape_cast %445 : vector<1x8x128xf32> to vector<8x128xf32>
    %447 = vector.shape_cast %444 : vector<8x128xf32> to vector<1x8x128xf32>
    tpu.vector_store %arg18[%c0_233, %c0_234, %c0_235], %447 {strides = array<i32>} : memref<1x8x128xf32, #tpu.memory_space<vmem>>, vector<1x8x128xf32>,
    return
  }
  func.func @transform_0(%arg0: i32) -> (i32, i32, i32) {
    %c0_i32 = arith.constant 0 : i32
    %c0_i32_0 = arith.constant 0 : i32
    %c0_i32_1 = arith.constant 0 : i32
    return %arg0, %c0_i32, %c0_i32_0 : i32, i32, i32
  }
  func.func @transform_1(%arg0: i32) -> (i32, i32) {
    %c0_i32 = arith.constant 0 : i32
    %c0_i32_0 = arith.constant 0 : i32
    %c0_i32_1 = arith.constant 0 : i32
    return %c0_i32, %c0_i32_0 : i32, i32
  }
  func.func @transform_2(%arg0: i32) -> (i32, i32) {
    %c0_i32 = arith.constant 0 : i32
    %c0_i32_0 = arith.constant 0 : i32
    %c0_i32_1 = arith.constant 0 : i32
    return %c0_i32, %c0_i32_0 : i32, i32
  }
  func.func @transform_3(%arg0: i32) -> (i32, i32) {
    %c0_i32 = arith.constant 0 : i32
    %c0_i32_0 = arith.constant 0 : i32
    %c0_i32_1 = arith.constant 0 : i32
    return %c0_i32, %c0_i32_0 : i32, i32
  }
  func.func @transform_4(%arg0: i32) -> (i32, i32) {
    %c0_i32 = arith.constant 0 : i32
    %c0_i32_0 = arith.constant 0 : i32
    %c0_i32_1 = arith.constant 0 : i32
    return %c0_i32, %c0_i32_0 : i32, i32
  }
  func.func @transform_5(%arg0: i32) -> (i32, i32, i32) {
    %c0_i32 = arith.constant 0 : i32
    %c0_i32_0 = arith.constant 0 : i32
    %c0_i32_1 = arith.constant 0 : i32
    %c0_i32_2 = arith.constant 0 : i32
    return %c0_i32, %c0_i32_0, %c0_i32_1 : i32, i32, i32
  }
  func.func @transform_6(%arg0: i32) -> (i32, i32, i32) {
    %c0_i32 = arith.constant 0 : i32
    %c0_i32_0 = arith.constant 0 : i32
    %c0_i32_1 = arith.constant 0 : i32
    %c0_i32_2 = arith.constant 0 : i32
    return %c0_i32, %c0_i32_0, %c0_i32_1 : i32, i32, i32
  }
  func.func @transform_7(%arg0: i32) -> (i32, i32, i32) {
    %c0_i32 = arith.constant 0 : i32
    %c0_i32_0 = arith.constant 0 : i32
    %c0_i32_1 = arith.constant 0 : i32
    %c0_i32_2 = arith.constant 0 : i32
    return %c0_i32, %c0_i32_0, %c0_i32_1 : i32, i32, i32
  }
  func.func @transform_8(%arg0: i32) -> (i32, i32, i32) {
    %c0_i32 = arith.constant 0 : i32
    %c0_i32_0 = arith.constant 0 : i32
    %c0_i32_1 = arith.constant 0 : i32
    %c0_i32_2 = arith.constant 0 : i32
    return %c0_i32, %c0_i32_0, %c0_i32_1 : i32, i32, i32
  }
  func.func @transform_9(%arg0: i32) -> (i32, i32, i32) {
    %c0_i32 = arith.constant 0 : i32
    %c0_i32_0 = arith.constant 0 : i32
    %c0_i32_1 = arith.constant 0 : i32
    %c0_i32_2 = arith.constant 0 : i32
    return %c0_i32, %c0_i32_0, %c0_i32_1 : i32, i32, i32
  }
  func.func @transform_10(%arg0: i32) -> (i32, i32, i32) {
    %c0_i32 = arith.constant 0 : i32
    %c0_i32_0 = arith.constant 0 : i32
    %c0_i32_1 = arith.constant 0 : i32
    %c0_i32_2 = arith.constant 0 : i32
    return %c0_i32, %c0_i32_0, %c0_i32_1 : i32, i32, i32
  }
  func.func @transform_11(%arg0: i32) -> (i32, i32, i32) {
    %c0_i32 = arith.constant 0 : i32
    %c0_i32_0 = arith.constant 0 : i32
    %c0_i32_1 = arith.constant 0 : i32
    %c0_i32_2 = arith.constant 0 : i32
    return %c0_i32, %c0_i32_0, %c0_i32_1 : i32, i32, i32
  }
  func.func @transform_12(%arg0: i32) -> (i32, i32, i32) {
    %c0_i32 = arith.constant 0 : i32
    %c0_i32_0 = arith.constant 0 : i32
    %c0_i32_1 = arith.constant 0 : i32
    %c0_i32_2 = arith.constant 0 : i32
    return %c0_i32, %c0_i32_0, %c0_i32_1 : i32, i32, i32
  }
  func.func @transform_13(%arg0: i32) -> (i32, i32, i32) {
    %c0_i32 = arith.constant 0 : i32
    %c0_i32_0 = arith.constant 0 : i32
    %c0_i32_1 = arith.constant 0 : i32
    %c0_i32_2 = arith.constant 0 : i32
    return %c0_i32, %c0_i32_0, %c0_i32_1 : i32, i32, i32
  }
  func.func @transform_14(%arg0: i32) -> (i32, i32, i32) {
    %c0_i32 = arith.constant 0 : i32
    %c0_i32_0 = arith.constant 0 : i32
    %c0_i32_1 = arith.constant 0 : i32
    %c0_i32_2 = arith.constant 0 : i32
    return %c0_i32, %c0_i32_0, %c0_i32_1 : i32, i32, i32
  }
  func.func @transform_15(%arg0: i32) -> (i32, i32, i32) {
    %c0_i32 = arith.constant 0 : i32
    %c0_i32_0 = arith.constant 0 : i32
    %c0_i32_1 = arith.constant 0 : i32
    %c0_i32_2 = arith.constant 0 : i32
    return %c0_i32, %c0_i32_0, %c0_i32_1 : i32, i32, i32
  }
  func.func @transform_16(%arg0: i32) -> (i32, i32, i32) {
    %c0_i32 = arith.constant 0 : i32
    %c0_i32_0 = arith.constant 0 : i32
    %c0_i32_1 = arith.constant 0 : i32
    %c0_i32_2 = arith.constant 0 : i32
    return %c0_i32, %c0_i32_0, %c0_i32_1 : i32, i32, i32
  }
  func.func @transform_17(%arg0: i32) -> (i32, i32, i32) {
    %c0_i32 = arith.constant 0 : i32
    %c0_i32_0 = arith.constant 0 : i32
    %c0_i32_1 = arith.constant 0 : i32
    return %arg0, %c0_i32, %c0_i32_0 : i32, i32, i32
  }
}

</mosaic_0001>

<llo_original>
// kernel: forward.1
$region0: #{forward.1}
  #allocation0 [shape = 'u32[]', space=smem, size = 0x4, offset = 0x4, fixed_abs, tag = 'smem constant byte address 0x4 - core index']
  #allocation1 [shape = 'u32[144,128]{1,0:T(1,128)}', space=vmem, size = 0x12000, scoped, tag = 'internal scratch']
  %s0 = inlined_call_operand.hbm [shape: f32[2,16,32], index: 0, kind: input, shape index: {}]
  %s1 = inlined_call_operand.vmem [shape: bf16[32,128], index: 1, kind: input, shape index: {}]
  %s2 = inlined_call_operand.vmem [shape: f32[1,128], index: 2, kind: input, shape index: {}]
  %s3 = inlined_call_operand.hbm [shape: f32[16,128], index: 3, kind: input, shape index: {}]
  %s4 = inlined_call_operand.hbm [shape: bf16[128,128], index: 4, kind: input, shape index: {}]
  %s5 = inlined_call_operand.hbm [shape: bf16[4,128,384], index: 5, kind: input, shape index: {}]
  %s6 = inlined_call_operand.hbm [shape: f32[4,1,384], index: 6, kind: input, shape index: {}]
  %s7 = inlined_call_operand.hbm [shape: bf16[4,128,128], index: 7, kind: input, shape index: {}]
  %s8 = inlined_call_operand.vmem [shape: f32[4,1,128], index: 8, kind: input, shape index: {}]
  %s9 = inlined_call_operand.hbm [shape: bf16[4,128,256], index: 9, kind: input, shape index: {}]
  %s10 = inlined_call_operand.hbm [shape: f32[4,1,256], index: 10, kind: input, shape index: {}]
  %s11 = inlined_call_operand.hbm [shape: bf16[4,256,128], index: 11, kind: input, shape index: {}]
  %s12 = inlined_call_operand.hbm [shape: f32[4,1,128], index: 12, kind: input, shape index: {}]
  %s13 = inlined_call_operand.vmem [shape: f32[4,1,128], index: 13, kind: input, shape index: {}]
  %s14 = inlined_call_operand.hbm [shape: f32[4,1,128], index: 14, kind: input, shape index: {}]
  %s15 = inlined_call_operand.hbm [shape: f32[4,1,128], index: 15, kind: input, shape index: {}]
  %s16 = inlined_call_operand.hbm [shape: f32[4,1,128], index: 16, kind: input, shape index: {}]
  %s17 = inlined_call_operand.vmem [shape: f32[2,8,128], index: 17, kind: output, shape index: {}]
  %s18 = sld [smem:[#allocation0]]
  $region153: #{forward.1} parent=0
    _
  %s20 = ssub.s32 1, %s18
  %s21 = scalar_select 0, %s20, %s18
  $region1: #{forward.1} parent=0
    #allocation2 [shape = 'u8[16384]{0}', space=vmem, size = 0x4000, scoped, tag = 'input window, operand 0']
    #allocation3 [shape = 's32[2]{0}', space=sflag, size = 0x8, scoped, tag = 'scoped memory for forward.1']
    #allocation4 [shape = 'u8[8192]{0}', space=vmem, size = 0x2000, scoped, tag = 'input window, operand 3, single buffered']
    #allocation5 [shape = 's32[1]{0}', space=sflag, size = 0x4, scoped, tag = 'scoped memory for forward.1']
    #allocation6 [shape = 'u8[32768]{0}', space=vmem, size = 0x8000, scoped, tag = 'input window, operand 4, single buffered']
    #allocation7 [shape = 'u8[393216]{0}', space=vmem, size = 0x60000, scoped, tag = 'input window, operand 5, single buffered']
    #allocation8 [shape = 's32[1]{0}', space=sflag, size = 0x4, scoped, tag = 'scoped memory for forward.1']
    #allocation9 [shape = 'u8[6144]{0}', space=vmem, size = 0x1800, scoped, tag = 'input window, operand 6, single buffered']
    #allocation10 [shape = 'u8[131072]{0}', space=vmem, size = 0x20000, scoped, tag = 'input window, operand 7, single buffered']
    #allocation11 [shape = 's32[1]{0}', space=sflag, size = 0x4, scoped, tag = 'scoped memory for forward.1']
    #allocation12 [shape = 'u8[262144]{0}', space=vmem, size = 0x40000, scoped, tag = 'input window, operand 9, single buffered']
    #allocation13 [shape = 'u8[4096]{0}', space=vmem, size = 0x1000, scoped, tag = 'input window, operand 10, single buffered']
    #allocation14 [shape = 's32[1]{0}', space=sflag, size = 0x4, scoped, tag = 'scoped memory for forward.1']
    #allocation15 [shape = 'u8[262144]{0}', space=vmem, size = 0x40000, scoped, tag = 'input window, operand 11, single buffered']
    #allocation16 [shape = 'u8[2048]{0}', space=vmem, size = 0x800, scoped, tag = 'input window, operand 12, single buffered']
    #allocation17 [shape = 's32[1]{0}', space=sflag, size = 0x4, scoped, tag = 'scoped memory for forward.1']
    #allocation18 [shape = 'u8[2048]{0}', space=vmem, size = 0x800, scoped, tag = 'input window, operand 14, single buffered']
    #allocation19 [shape = 'u8[2048]{0}', space=vmem, size = 0x800, scoped, tag = 'input window, operand 15, single buffered']
    #allocation20 [shape = 's32[1]{0}', space=sflag, size = 0x4, scoped, tag = 'scoped memory for forward.1']
    #allocation21 [shape = 'u8[2048]{0}', space=vmem, size = 0x800, scoped, tag = 'input window, operand 16, single buffered']
    %22 = vsyncpa [#allocation3], 0
    %s23 = scalar_lea.sflag [#allocation3], 1
    %24 = vsyncpa %s23, 0
    %25 = vsyncpa [#allocation5], 0
    %26 = vsyncpa [#allocation8], 0
    %27 = vsyncpa [#allocation11], 0
    %28 = vsyncpa [#allocation14], 0
    %29 = vsyncpa [#allocation17], 0
    %30 = vsyncpa [#allocation20], 0
    loop: start=0, step=1, limit=4
    $region2: #{forward.1} parent=1 // loop_pre_header
      _
    $region3: #{forward.1} parent=1 // loop_header
      %s32 = sphi 0, %s36
      %p33 = scmp.ge.s32.totalorder %s32, 4
      %s42 = sphi 0, %s44
      %s45 = sphi 0, %s42
      %s46 = sphi 0, %s45
      %s62 = sphi 0, %s46
      %s66 = sphi 0, %s66
      %s68 = sphi 0, %s66
      %s69 = sphi 0, %s68
      %s83 = sphi 0, %s69
      %s87 = sphi 0, %s87
      %s89 = sphi 0, %s87
      %s90 = sphi 0, %s89
      %s104 = sphi 0, %s90
      %s108 = sphi 0, %s108
      %s110 = sphi 0, %s108
      %s111 = sphi 0, %s110
      %s125 = sphi 0, %s111
      %s129 = sphi 0, %s129
      %s131 = sphi 0, %s129
      %s132 = sphi 0, %s131
      %s146 = sphi 0, %s132
      %s150 = sphi 0, %s150
      %s152 = sphi 0, %s150
      %s153 = sphi 0, %s152
      %s167 = sphi 0, %s153
      %s171 = sphi 0, %s171
      %s173 = sphi 0, %s171
      %s174 = sphi 0, %s173
      %s188 = sphi 0, %s174
      %s192 = sphi 0, %s192
      %s194 = sphi 0, %s192
      %s195 = sphi 0, %s194
      %s209 = sphi 0, %s195
      %s213 = sphi 0, %s213
      %s215 = sphi 0, %s213
      %s216 = sphi 0, %s215
      %s230 = sphi 0, %s216
      %s234 = sphi 0, %s234
      %s236 = sphi 0, %s234
      %s237 = sphi 0, %s236
      %s251 = sphi 0, %s237
      %s255 = sphi 0, %s255
      %s257 = sphi 0, %s255
      %s258 = sphi 0, %s257
      %s272 = sphi 0, %s258
      %s276 = sphi 0, %s276
      %s278 = sphi 0, %s276
      %s279 = sphi 0, %s278
      %s293 = sphi 0, %s279
      %s297 = sphi 0, %s297
      %s299 = sphi 0, %s297
      %s300 = sphi 0, %s299
      %s314 = sphi 0, %s300
      %s318 = sphi 0, %s318
      %s320 = sphi 0, %s318
      %s321 = sphi 0, %s320
      %s335 = sphi 0, %s321
      %s339 = sphi 0, %s339
      %s341 = sphi 0, %s339
      %s342 = sphi 0, %s341
      %s356 = sphi 0, %s342
      %s360 = sphi 0, %s360
      %s362 = sphi 0, %s360
      %s363 = sphi 0, %s362
      %s377 = sphi 0, %s363
      %s381 = sphi 0, %s381
      %s383 = sphi 0, %s381
      %s384 = sphi 0, %s383
      %s398 = sphi 0, %s384
      %s404 = sphi 0, %s406
      %s407 = sphi 0, %s404
      %s408 = sphi 0, %s407
      %s424 = sphi 0, %s408
    $region4: #{forward.1} parent=1 // loop_header_branch
      %35 = sbr.rel (%p33) target = $region8
    $region5: #{forward.1} parent=1 // loop_body
      %s37 = ssub.s32 %s32, 1
      %s38 = ssub.s32 %s32, 2
      %s39 = sadd.s32 %s32, 1
      %s40 = ssub.s32 %s32, %s39
      %p41 = scmp.eq.s32.totalorder %s40, 0
      %s43 = sadd.s32 %s42, 1
      %s44 = scalar_select %p41, %s42, %s43
      %p47 = pneg %p41
      %p48 = scmp.eq.s32.totalorder %s32, 1
      %p49 = por %p47, %p48
      %p50 = scmp.ne.s32.totalorder %s42, %s45
      %p51 = scmp.eq.s32.totalorder %s32, 0
      %p52 = por %p50, %p51
      %p53 = scmp.ne.s32.totalorder %s42, %s45
      %p54 = scmp.eq.s32.totalorder %s37, 1
      %p55 = por %p53, %p54
      %p56 = scmp.ne.s32.totalorder %s45, %s46
      %p57 = scmp.eq.s32.totalorder %s37, 0
      %p58 = por %p56, %p57
      %p59 = scmp.ne.s32.totalorder %s45, %s46
      %p60 = scmp.eq.s32.totalorder %s38, 1
      %p61 = por %p59, %p60
      %p63 = scmp.ne.s32.totalorder %s46, %s62
      %p64 = scmp.eq.s32.totalorder %s38, 0
      %p65 = por %p63, %p64
      %s67 = sadd.s32 %s66, 1
      %p70 = scmp.eq.s32.totalorder %s32, 1
      %p71 = scmp.ne.s32.totalorder %s66, %s68
      %p72 = scmp.eq.s32.totalorder %s32, 0
      %p73 = por %p71, %p72
      %p74 = scmp.ne.s32.totalorder %s66, %s68
      %p75 = scmp.eq.s32.totalorder %s37, 1
      %p76 = por %p74, %p75
      %p77 = scmp.ne.s32.totalorder %s68, %s69
      %p78 = scmp.eq.s32.totalorder %s37, 0
      %p79 = por %p77, %p78
      %p80 = scmp.ne.s32.totalorder %s68, %s69
      %p81 = scmp.eq.s32.totalorder %s38, 1
      %p82 = por %p80, %p81
      %p84 = scmp.ne.s32.totalorder %s69, %s83
      %p85 = scmp.eq.s32.totalorder %s38, 0
      %p86 = por %p84, %p85
      %s88 = sadd.s32 %s87, 1
      %p91 = scmp.eq.s32.totalorder %s32, 1
      %p92 = scmp.ne.s32.totalorder %s87, %s89
      %p93 = scmp.eq.s32.totalorder %s32, 0
      %p94 = por %p92, %p93
      %p95 = scmp.ne.s32.totalorder %s87, %s89
      %p96 = scmp.eq.s32.totalorder %s37, 1
      %p97 = por %p95, %p96
      %p98 = scmp.ne.s32.totalorder %s89, %s90
      %p99 = scmp.eq.s32.totalorder %s37, 0
      %p100 = por %p98, %p99
      %p101 = scmp.ne.s32.totalorder %s89, %s90
      %p102 = scmp.eq.s32.totalorder %s38, 1
      %p103 = por %p101, %p102
      %p105 = scmp.ne.s32.totalorder %s90, %s104
      %p106 = scmp.eq.s32.totalorder %s38, 0
      %p107 = por %p105, %p106
      %s109 = sadd.s32 %s108, 1
      %p112 = scmp.eq.s32.totalorder %s32, 1
      %p113 = scmp.ne.s32.totalorder %s108, %s110
      %p114 = scmp.eq.s32.totalorder %s32, 0
      %p115 = por %p113, %p114
      %p116 = scmp.ne.s32.totalorder %s108, %s110
      %p117 = scmp.eq.s32.totalorder %s37, 1
      %p118 = por %p116, %p117
      %p119 = scmp.ne.s32.totalorder %s110, %s111
      %p120 = scmp.eq.s32.totalorder %s37, 0
      %p121 = por %p119, %p120
      %p122 = scmp.ne.s32.totalorder %s110, %s111
      %p123 = scmp.eq.s32.totalorder %s38, 1
      %p124 = por %p122, %p123
      %p126 = scmp.ne.s32.totalorder %s111, %s125
      %p127 = scmp.eq.s32.totalorder %s38, 0
      %p128 = por %p126, %p127
      %s130 = sadd.s32 %s129, 1
      %p133 = scmp.eq.s32.totalorder %s32, 1
      %p134 = scmp.ne.s32.totalorder %s129, %s131
      %p135 = scmp.eq.s32.totalorder %s32, 0
      %p136 = por %p134, %p135
      %p137 = scmp.ne.s32.totalorder %s129, %s131
      %p138 = scmp.eq.s32.totalorder %s37, 1
      %p139 = por %p137, %p138
      %p140 = scmp.ne.s32.totalorder %s131, %s132
      %p141 = scmp.eq.s32.totalorder %s37, 0
      %p142 = por %p140, %p141
      %p143 = scmp.ne.s32.totalorder %s131, %s132
      %p144 = scmp.eq.s32.totalorder %s38, 1
      %p145 = por %p143, %p144
      %p147 = scmp.ne.s32.totalorder %s132, %s146
      %p148 = scmp.eq.s32.totalorder %s38, 0
      %p149 = por %p147, %p148
      %s151 = sadd.s32 %s150, 1
      %p154 = scmp.eq.s32.totalorder %s32, 1
      %p155 = scmp.ne.s32.totalorder %s150, %s152
      %p156 = scmp.eq.s32.totalorder %s32, 0
      %p157 = por %p155, %p156
      %p158 = scmp.ne.s32.totalorder %s150, %s152
      %p159 = scmp.eq.s32.totalorder %s37, 1
      %p160 = por %p158, %p159
      %p161 = scmp.ne.s32.totalorder %s152, %s153
      %p162 = scmp.eq.s32.totalorder %s37, 0
      %p163 = por %p161, %p162
      %p164 = scmp.ne.s32.totalorder %s152, %s153
      %p165 = scmp.eq.s32.totalorder %s38, 1
      %p166 = por %p164, %p165
      %p168 = scmp.ne.s32.totalorder %s153, %s167
      %p169 = scmp.eq.s32.totalorder %s38, 0
      %p170 = por %p168, %p169
      %s172 = sadd.s32 %s171, 1
      %p175 = scmp.eq.s32.totalorder %s32, 1
      %p176 = scmp.ne.s32.totalorder %s171, %s173
      %p177 = scmp.eq.s32.totalorder %s32, 0
      %p178 = por %p176, %p177
      %p179 = scmp.ne.s32.totalorder %s171, %s173
      %p180 = scmp.eq.s32.totalorder %s37, 1
      %p181 = por %p179, %p180
      %p182 = scmp.ne.s32.totalorder %s173, %s174
      %p183 = scmp.eq.s32.totalorder %s37, 0
      %p184 = por %p182, %p183
      %p185 = scmp.ne.s32.totalorder %s173, %s174
      %p186 = scmp.eq.s32.totalorder %s38, 1
      %p187 = por %p185, %p186
      %p189 = scmp.ne.s32.totalorder %s174, %s188
      %p190 = scmp.eq.s32.totalorder %s38, 0
      %p191 = por %p189, %p190
      %s193 = sadd.s32 %s192, 1
      %p196 = scmp.eq.s32.totalorder %s32, 1
      %p197 = scmp.ne.s32.totalorder %s192, %s194
      %p198 = scmp.eq.s32.totalorder %s32, 0
      %p199 = por %p197, %p198
      %p200 = scmp.ne.s32.totalorder %s192, %s194
      %p201 = scmp.eq.s32.totalorder %s37, 1
      %p202 = por %p200, %p201
      %p203 = scmp.ne.s32.totalorder %s194, %s195
      %p204 = scmp.eq.s32.totalorder %s37, 0
      %p205 = por %p203, %p204
      %p206 = scmp.ne.s32.totalorder %s194, %s195
      %p207 = scmp.eq.s32.totalorder %s38, 1
      %p208 = por %p206, %p207
      %p210 = scmp.ne.s32.totalorder %s195, %s209
      %p211 = scmp.eq.s32.totalorder %s38, 0
      %p212 = por %p210, %p211
      %s214 = sadd.s32 %s213, 1
      %p217 = scmp.eq.s32.totalorder %s32, 1
      %p218 = scmp.ne.s32.totalorder %s213, %s215
      %p219 = scmp.eq.s32.totalorder %s32, 0
      %p220 = por %p218, %p219
      %p221 = scmp.ne.s32.totalorder %s213, %s215
      %p222 = scmp.eq.s32.totalorder %s37, 1
      %p223 = por %p221, %p222
      %p224 = scmp.ne.s32.totalorder %s215, %s216
      %p225 = scmp.eq.s32.totalorder %s37, 0
      %p226 = por %p224, %p225
      %p227 = scmp.ne.s32.totalorder %s215, %s216
      %p228 = scmp.eq.s32.totalorder %s38, 1
      %p229 = por %p227, %p228
      %p231 = scmp.ne.s32.totalorder %s216, %s230
      %p232 = scmp.eq.s32.totalorder %s38, 0
      %p233 = por %p231, %p232
      %s235 = sadd.s32 %s234, 1
      %p238 = scmp.eq.s32.totalorder %s32, 1
      %p239 = scmp.ne.s32.totalorder %s234, %s236
      %p240 = scmp.eq.s32.totalorder %s32, 0
      %p241 = por %p239, %p240
      %p242 = scmp.ne.s32.totalorder %s234, %s236
      %p243 = scmp.eq.s32.totalorder %s37, 1
      %p244 = por %p242, %p243
      %p245 = scmp.ne.s32.totalorder %s236, %s237
      %p246 = scmp.eq.s32.totalorder %s37, 0
      %p247 = por %p245, %p246
      %p248 = scmp.ne.s32.totalorder %s236, %s237
      %p249 = scmp.eq.s32.totalorder %s38, 1
      %p250 = por %p248, %p249
      %p252 = scmp.ne.s32.totalorder %s237, %s251
      %p253 = scmp.eq.s32.totalorder %s38, 0
      %p254 = por %p252, %p253
      %s256 = sadd.s32 %s255, 1
      %p259 = scmp.eq.s32.totalorder %s32, 1
      %p260 = scmp.ne.s32.totalorder %s255, %s257
      %p261 = scmp.eq.s32.totalorder %s32, 0
      %p262 = por %p260, %p261
      %p263 = scmp.ne.s32.totalorder %s255, %s257
      %p264 = scmp.eq.s32.totalorder %s37, 1
      %p265 = por %p263, %p264
      %p266 = scmp.ne.s32.totalorder %s257, %s258
      %p267 = scmp.eq.s32.totalorder %s37, 0
      %p268 = por %p266, %p267
      %p269 = scmp.ne.s32.totalorder %s257, %s258
      %p270 = scmp.eq.s32.totalorder %s38, 1
      %p271 = por %p269, %p270
      %p273 = scmp.ne.s32.totalorder %s258, %s272
      %p274 = scmp.eq.s32.totalorder %s38, 0
      %p275 = por %p273, %p274
      %s277 = sadd.s32 %s276, 1
      %p280 = scmp.eq.s32.totalorder %s32, 1
      %p281 = scmp.ne.s32.totalorder %s276, %s278
      %p282 = scmp.eq.s32.totalorder %s32, 0
      %p283 = por %p281, %p282
      %p284 = scmp.ne.s32.totalorder %s276, %s278
      %p285 = scmp.eq.s32.totalorder %s37, 1
      %p286 = por %p284, %p285
      %p287 = scmp.ne.s32.totalorder %s278, %s279
      %p288 = scmp.eq.s32.totalorder %s37, 0
      %p289 = por %p287, %p288
      %p290 = scmp.ne.s32.totalorder %s278, %s279
      %p291 = scmp.eq.s32.totalorder %s38, 1
      %p292 = por %p290, %p291
      %p294 = scmp.ne.s32.totalorder %s279, %s293
      %p295 = scmp.eq.s32.totalorder %s38, 0
      %p296 = por %p294, %p295
      %s298 = sadd.s32 %s297, 1
      %p301 = scmp.eq.s32.totalorder %s32, 1
      %p302 = scmp.ne.s32.totalorder %s297, %s299
      %p303 = scmp.eq.s32.totalorder %s32, 0
      %p304 = por %p302, %p303
      %p305 = scmp.ne.s32.totalorder %s297, %s299
      %p306 = scmp.eq.s32.totalorder %s37, 1
      %p307 = por %p305, %p306
      %p308 = scmp.ne.s32.totalorder %s299, %s300
      %p309 = scmp.eq.s32.totalorder %s37, 0
      %p310 = por %p308, %p309
      %p311 = scmp.ne.s32.totalorder %s299, %s300
      %p312 = scmp.eq.s32.totalorder %s38, 1
      %p313 = por %p311, %p312
      %p315 = scmp.ne.s32.totalorder %s300, %s314
      %p316 = scmp.eq.s32.totalorder %s38, 0
      %p317 = por %p315, %p316
      %s319 = sadd.s32 %s318, 1
      %p322 = scmp.eq.s32.totalorder %s32, 1
      %p323 = scmp.ne.s32.totalorder %s318, %s320
      %p324 = scmp.eq.s32.totalorder %s32, 0
      %p325 = por %p323, %p324
      %p326 = scmp.ne.s32.totalorder %s318, %s320
      %p327 = scmp.eq.s32.totalorder %s37, 1
      %p328 = por %p326, %p327
      %p329 = scmp.ne.s32.totalorder %s320, %s321
      %p330 = scmp.eq.s32.totalorder %s37, 0
      %p331 = por %p329, %p330
      %p332 = scmp.ne.s32.totalorder %s320, %s321
      %p333 = scmp.eq.s32.totalorder %s38, 1
      %p334 = por %p332, %p333
      %p336 = scmp.ne.s32.totalorder %s321, %s335
      %p337 = scmp.eq.s32.totalorder %s38, 0
      %p338 = por %p336, %p337
      %s340 = sadd.s32 %s339, 1
      %p343 = scmp.eq.s32.totalorder %s32, 1
      %p344 = scmp.ne.s32.totalorder %s339, %s341
      %p345 = scmp.eq.s32.totalorder %s32, 0
      %p346 = por %p344, %p345
      %p347 = scmp.ne.s32.totalorder %s339, %s341
      %p348 = scmp.eq.s32.totalorder %s37, 1
      %p349 = por %p347, %p348
      %p350 = scmp.ne.s32.totalorder %s341, %s342
      %p351 = scmp.eq.s32.totalorder %s37, 0
      %p352 = por %p350, %p351
      %p353 = scmp.ne.s32.totalorder %s341, %s342
      %p354 = scmp.eq.s32.totalorder %s38, 1
      %p355 = por %p353, %p354
      %p357 = scmp.ne.s32.totalorder %s342, %s356
      %p358 = scmp.eq.s32.totalorder %s38, 0
      %p359 = por %p357, %p358
      %s361 = sadd.s32 %s360, 1
      %p364 = scmp.eq.s32.totalorder %s32, 1
      %p365 = scmp.ne.s32.totalorder %s360, %s362
      %p366 = scmp.eq.s32.totalorder %s32, 0
      %p367 = por %p365, %p366
      %p368 = scmp.ne.s32.totalorder %s360, %s362
      %p369 = scmp.eq.s32.totalorder %s37, 1
      %p370 = por %p368, %p369
      %p371 = scmp.ne.s32.totalorder %s362, %s363
      %p372 = scmp.eq.s32.totalorder %s37, 0
      %p373 = por %p371, %p372
      %p374 = scmp.ne.s32.totalorder %s362, %s363
      %p375 = scmp.eq.s32.totalorder %s38, 1
      %p376 = por %p374, %p375
      %p378 = scmp.ne.s32.totalorder %s363, %s377
      %p379 = scmp.eq.s32.totalorder %s38, 0
      %p380 = por %p378, %p379
      %s382 = sadd.s32 %s381, 1
      %p385 = scmp.eq.s32.totalorder %s32, 1
      %p386 = scmp.ne.s32.totalorder %s381, %s383
      %p387 = scmp.eq.s32.totalorder %s32, 0
      %p388 = por %p386, %p387
      %p389 = scmp.ne.s32.totalorder %s381, %s383
      %p390 = scmp.eq.s32.totalorder %s37, 1
      %p391 = por %p389, %p390
      %p392 = scmp.ne.s32.totalorder %s383, %s384
      %p393 = scmp.eq.s32.totalorder %s37, 0
      %p394 = por %p392, %p393
      %p395 = scmp.ne.s32.totalorder %s383, %s384
      %p396 = scmp.eq.s32.totalorder %s38, 1
      %p397 = por %p395, %p396
      %p399 = scmp.ne.s32.totalorder %s384, %s398
      %p400 = scmp.eq.s32.totalorder %s38, 0
      %p401 = por %p399, %p400
      %s402 = ssub.s32 %s32, %s39
      %p403 = scmp.eq.s32.totalorder %s402, 0
      %s405 = sadd.s32 %s404, 1
      %s406 = scalar_select %p403, %s404, %s405
      %p409 = pneg %p403
      %p410 = scmp.eq.s32.totalorder %s32, 1
      %p411 = por %p409, %p410
      %p412 = scmp.ne.s32.totalorder %s404, %s407
      %p413 = scmp.eq.s32.totalorder %s32, 0
      %p414 = por %p412, %p413
      %p415 = scmp.ne.s32.totalorder %s404, %s407
      %p416 = scmp.eq.s32.totalorder %s37, 1
      %p417 = por %p415, %p416
      %p418 = scmp.ne.s32.totalorder %s407, %s408
      %p419 = scmp.eq.s32.totalorder %s37, 0
      %p420 = por %p418, %p419
      %p421 = scmp.ne.s32.totalorder %s407, %s408
      %p422 = scmp.eq.s32.totalorder %s38, 1
      %p423 = por %p421, %p422
      %p425 = scmp.ne.s32.totalorder %s408, %s424
      %p426 = scmp.eq.s32.totalorder %s38, 0
      %p427 = por %p425, %p426
      %p428 = scmp.le.s32.totalorder 1, %s32
      %p429 = scmp.lt.s32.totalorder %s32, 3
      %p430 = pnand %p428, %p429
      %p431 = pneg %p430
      // Predicated region
      $region9: #{forward.1} parent=5 // pred_check
        _
      $region10: #{forward.1} parent=5 // pred_check_branch
        %433 = sbr.rel (%p430) target = $region12
      $region11: #{forward.1} parent=5 // pred_region
        %s434 = ssub.s32 %s32, 1
        // Predicated region
        $region13: #{forward.1} parent=11 // pred_check
          %p435 = pneg %p79
        $region14: #{forward.1} parent=11 // pred_check_branch
          %437 = sbr.rel (%p435) target = $region16
        $region15: #{forward.1} parent=11 // pred_region
          _
        $region16: #{forward.1} parent=11 // pred_fallthru
          _
        // Predicated region
        $region17: #{forward.1} parent=11 // pred_check
          %p438 = pneg %p100
        $region18: #{forward.1} parent=11 // pred_check_branch
          %440 = sbr.rel (%p438) target = $region20
        $region19: #{forward.1} parent=11 // pred_region
          _
        $region20: #{forward.1} parent=11 // pred_fallthru
          _
        // Predicated region
        $region21: #{forward.1} parent=11 // pred_check
          %p441 = pneg %p121
        $region22: #{forward.1} parent=11 // pred_check_branch
          %443 = sbr.rel (%p441) target = $region24
        $region23: #{forward.1} parent=11 // pred_region
          %s445 = ssub.s32 256, 256
          %446 = vsyncadd [#allocation5], %s445
          %s447 = sshll.u32 [#allocation4], 4
          %s448 = int_to_ptr.vmem [resolvable:$true] %s447
          %453 = dma.hbm_to_vmem [thread:$0]  %s3, 256, %s448, [#allocation5], 128, 128, 8
        $region24: #{forward.1} parent=11 // pred_fallthru
          _
        // Predicated region
        $region25: #{forward.1} parent=11 // pred_check
          %p454 = pneg %p142
        $region26: #{forward.1} parent=11 // pred_check_branch
          %456 = sbr.rel (%p454) target = $region28
        $region27: #{forward.1} parent=11 // pred_region
          %s458 = ssub.s32 1024, 1024
          %459 = vsyncadd [#allocation5], %s458
          %s460 = sshll.u32 [#allocation6], 4
          %s461 = int_to_ptr.vmem [resolvable:$true] %s460
          %466 = dma.hbm_to_vmem [thread:$0]  %s4, 1024, %s461, [#allocation5], 64, 64, 4
        $region28: #{forward.1} parent=11 // pred_fallthru
          _
        // Predicated region
        $region29: #{forward.1} parent=11 // pred_check
          %p467 = pneg %p163
        $region30: #{forward.1} parent=11 // pred_check_branch
          %469 = sbr.rel (%p467) target = $region32
        $region31: #{forward.1} parent=11 // pred_region
          %s471 = ssub.s32 12288, 12288
          %472 = vsyncadd [#allocation8], %s471
          %s473 = sshll.u32 [#allocation7], 4
          %s474 = int_to_ptr.vmem [resolvable:$true] %s473
          %479 = dma.hbm_to_vmem [thread:$0]  %s5, 12288, %s474, [#allocation8], 192, 192, 12
        $region32: #{forward.1} parent=11 // pred_fallthru
          _
        // Predicated region
        $region33: #{forward.1} parent=11 // pred_check
          %p480 = pneg %p184
        $region34: #{forward.1} parent=11 // pred_check_branch
          %482 = sbr.rel (%p480) target = $region36
        $region35: #{forward.1} parent=11 // pred_region
          %s484 = ssub.s32 192, 192
          %485 = vsyncadd [#allocation8], %s484
          %s486 = sshll.u32 [#allocation9], 4
          %s487 = int_to_ptr.vmem [resolvable:$true] %s486
          %492 = dma.hbm_to_vmem [thread:$0]  %s6, 192, %s487, [#allocation8], 48, 48, 3
        $region36: #{forward.1} parent=11 // pred_fallthru
          _
        // Predicated region
        $region37: #{forward.1} parent=11 // pred_check
          %p493 = pneg %p205
        $region38: #{forward.1} parent=11 // pred_check_branch
          %495 = sbr.rel (%p493) target = $region40
        $region39: #{forward.1} parent=11 // pred_region
          %s497 = ssub.s32 4096, 4096
          %498 = vsyncadd [#allocation11], %s497
          %s499 = sshll.u32 [#allocation10], 4
          %s500 = int_to_ptr.vmem [resolvable:$true] %s499
          %505 = dma.hbm_to_vmem [thread:$0]  %s7, 4096, %s500, [#allocation11], 64, 64, 4
        $region40: #{forward.1} parent=11 // pred_fallthru
          _
        // Predicated region
        $region41: #{forward.1} parent=11 // pred_check
          %p506 = pneg %p226
        $region42: #{forward.1} parent=11 // pred_check_branch
          %508 = sbr.rel (%p506) target = $region44
        $region43: #{forward.1} parent=11 // pred_region
          _
        $region44: #{forward.1} parent=11 // pred_fallthru
          _
        // Predicated region
        $region45: #{forward.1} parent=11 // pred_check
          %p509 = pneg %p247
        $region46: #{forward.1} parent=11 // pred_check_branch
          %511 = sbr.rel (%p509) target = $region48
        $region47: #{forward.1} parent=11 // pred_region
          %s513 = ssub.s32 8192, 8192
          %514 = vsyncadd [#allocation11], %s513
          %s515 = sshll.u32 [#allocation12], 4
          %s516 = int_to_ptr.vmem [resolvable:$true] %s515
          %521 = dma.hbm_to_vmem [thread:$0]  %s9, 8192, %s516, [#allocation11], 128, 128, 8
        $region48: #{forward.1} parent=11 // pred_fallthru
          _
        // Predicated region
        $region49: #{forward.1} parent=11 // pred_check
          %p522 = pneg %p268
        $region50: #{forward.1} parent=11 // pred_check_branch
          %524 = sbr.rel (%p522) target = $region52
        $region51: #{forward.1} parent=11 // pred_region
          %s526 = ssub.s32 128, 128
          %527 = vsyncadd [#allocation14], %s526
          %s528 = sshll.u32 [#allocation13], 4
          %s529 = int_to_ptr.vmem [resolvable:$true] %s528
          %534 = dma.hbm_to_vmem [thread:$0]  %s10, 128, %s529, [#allocation14], 32, 32, 2
        $region52: #{forward.1} parent=11 // pred_fallthru
          _
        // Predicated region
        $region53: #{forward.1} parent=11 // pred_check
          %p535 = pneg %p289
        $region54: #{forward.1} parent=11 // pred_check_branch
          %537 = sbr.rel (%p535) target = $region56
        $region55: #{forward.1} parent=11 // pred_region
          %s539 = ssub.s32 8192, 8192
          %540 = vsyncadd [#allocation14], %s539
          %s541 = sshll.u32 [#allocation15], 4
          %s542 = int_to_ptr.vmem [resolvable:$true] %s541
          %547 = dma.hbm_to_vmem [thread:$0]  %s11, 8192, %s542, [#allocation14], 64, 64, 4
        $region56: #{forward.1} parent=11 // pred_fallthru
          _
        // Predicated region
        $region57: #{forward.1} parent=11 // pred_check
          %p548 = pneg %p310
        $region58: #{forward.1} parent=11 // pred_check_branch
          %550 = sbr.rel (%p548) target = $region60
        $region59: #{forward.1} parent=11 // pred_region
          %s552 = ssub.s32 64, 64
          %553 = vsyncadd [#allocation17], %s552
          %s554 = sshll.u32 [#allocation16], 4
          %s555 = int_to_ptr.vmem [resolvable:$true] %s554
          %560 = dma.hbm_to_vmem [thread:$0]  %s12, 64, %s555, [#allocation17], 16, 16, 1
        $region60: #{forward.1} parent=11 // pred_fallthru
          _
        // Predicated region
        $region61: #{forward.1} parent=11 // pred_check
          %p561 = pneg %p331
        $region62: #{forward.1} parent=11 // pred_check_branch
          %563 = sbr.rel (%p561) target = $region64
        $region63: #{forward.1} parent=11 // pred_region
          _
        $region64: #{forward.1} parent=11 // pred_fallthru
          _
        // Predicated region
        $region65: #{forward.1} parent=11 // pred_check
          %p564 = pneg %p352
        $region66: #{forward.1} parent=11 // pred_check_branch
          %566 = sbr.rel (%p564) target = $region68
        $region67: #{forward.1} parent=11 // pred_region
          %s568 = ssub.s32 64, 64
          %569 = vsyncadd [#allocation17], %s568
          %s570 = sshll.u32 [#allocation18], 4
          %s571 = int_to_ptr.vmem [resolvable:$true] %s570
          %576 = dma.hbm_to_vmem [thread:$0]  %s14, 64, %s571, [#allocation17], 16, 16, 1
        $region68: #{forward.1} parent=11 // pred_fallthru
          _
        // Predicated region
        $region69: #{forward.1} parent=11 // pred_check
          %p577 = pneg %p373
        $region70: #{forward.1} parent=11 // pred_check_branch
          %579 = sbr.rel (%p577) target = $region72
        $region71: #{forward.1} parent=11 // pred_region
          %s581 = ssub.s32 64, 64
          %582 = vsyncadd [#allocation20], %s581
          %s583 = sshll.u32 [#allocation19], 4
          %s584 = int_to_ptr.vmem [resolvable:$true] %s583
          %589 = dma.hbm_to_vmem [thread:$0]  %s15, 64, %s584, [#allocation20], 16, 16, 1
        $region72: #{forward.1} parent=11 // pred_fallthru
          _
        // Predicated region
        $region73: #{forward.1} parent=11 // pred_check
          %p590 = pneg %p394
        $region74: #{forward.1} parent=11 // pred_check_branch
          %592 = sbr.rel (%p590) target = $region76
        $region75: #{forward.1} parent=11 // pred_region
          %s594 = ssub.s32 64, 64
          %595 = vsyncadd [#allocation20], %s594
          %s596 = sshll.u32 [#allocation21], 4
          %s597 = int_to_ptr.vmem [resolvable:$true] %s596
          %602 = dma.hbm_to_vmem [thread:$0]  %s16, 64, %s597, [#allocation20], 16, 16, 1
        $region76: #{forward.1} parent=11 // pred_fallthru
          _
      $region12: #{forward.1} parent=5 // pred_fallthru
        _
      %p603 = scmp.lt.s32.totalorder %s32, 2
      // Predicated region
      $region77: #{forward.1} parent=5 // pred_check
        %p604 = pneg %p603
      $region78: #{forward.1} parent=5 // pred_check_branch
        %606 = sbr.rel (%p604) target = $region80
      $region79: #{forward.1} parent=5 // pred_region
        // Predicated region
        $region81: #{forward.1} parent=79 // pred_check
          %p607 = pneg %p52
        $region82: #{forward.1} parent=79 // pred_check_branch
          %609 = sbr.rel (%p607) target = $region84
        $region83: #{forward.1} parent=79 // pred_region
          %s610 = sand.u32 %s42, 1
          %s611 = scalar_lea.sflag [#allocation3], %s610
          %s612 = sand.u32 %s42, 1
          %s613 = smul.addr %s612, 16
          %s614 = scalar_lea.vmem [#allocation2], %s613
          %s616 = ssub.s32 256, 256
          %617 = vsyncadd %s611, %s616
          %s618 = smul.addr %s32, 2
          %s619 = smul.addr %s618, 128
          %s620 = scalar_lea.hbm %s0, %s619
          %s621 = sshll.u32 %s614, 4
          %s622 = int_to_ptr.vmem [resolvable:$true] %s621
          %627 = dma.hbm_to_vmem [thread:$0]  %s620, 256, %s622, %s611, 128, 128, 8
        $region84: #{forward.1} parent=79 // pred_fallthru
          _
      $region80: #{forward.1} parent=5 // pred_fallthru
        _
      %p628 = scmp.le.s32.totalorder 1, %s32
      %p629 = scmp.lt.s32.totalorder %s32, 3
      %p630 = pnand %p628, %p629
      %p631 = pneg %p630
      // Predicated region
      $region85: #{forward.1} parent=5 // pred_check
        _
      $region86: #{forward.1} parent=5 // pred_check_branch
        %633 = sbr.rel (%p630) target = $region88
      $region87: #{forward.1} parent=5 // pred_region
        %s634 = ssub.s32 %s32, 1
        %s635 = sand.u32 %s45, 1
        %s636 = scalar_lea.sflag [#allocation3], %s635
        %s637 = sand.u32 %s45, 1
        %s638 = smul.addr %s637, 16
        %s639 = scalar_lea.vmem [#allocation2], %s638
        // Predicated region
        $region89: #{forward.1} parent=87 // pred_check
          %p640 = pneg %p58
        $region90: #{forward.1} parent=87 // pred_check_branch
          %642 = sbr.rel (%p640) target = $region92
        $region91: #{forward.1} parent=87 // pred_region
          %643 = dma.done %s636, 256
        $region92: #{forward.1} parent=87 // pred_fallthru
          _
        // Predicated region
        $region93: #{forward.1} parent=87 // pred_check
          %p644 = pneg %p121
        $region94: #{forward.1} parent=87 // pred_check_branch
          %646 = sbr.rel (%p644) target = $region96
        $region95: #{forward.1} parent=87 // pred_region
          %647 = dma.done [#allocation5], 256
        $region96: #{forward.1} parent=87 // pred_fallthru
          _
        // Predicated region
        $region97: #{forward.1} parent=87 // pred_check
          %p648 = pneg %p142
        $region98: #{forward.1} parent=87 // pred_check_branch
          %650 = sbr.rel (%p648) target = $region100
        $region99: #{forward.1} parent=87 // pred_region
          %651 = dma.done [#allocation5], 1024
        $region100: #{forward.1} parent=87 // pred_fallthru
          _
        // Predicated region
        $region101: #{forward.1} parent=87 // pred_check
          %p652 = pneg %p163
        $region102: #{forward.1} parent=87 // pred_check_branch
          %654 = sbr.rel (%p652) target = $region104
        $region103: #{forward.1} parent=87 // pred_region
          %655 = dma.done [#allocation8], 12288
        $region104: #{forward.1} parent=87 // pred_fallthru
          _
        // Predicated region
        $region105: #{forward.1} parent=87 // pred_check
          %p656 = pneg %p184
        $region106: #{forward.1} parent=87 // pred_check_branch
          %658 = sbr.rel (%p656) target = $region108
        $region107: #{forward.1} parent=87 // pred_region
          %659 = dma.done [#allocation8], 192
        $region108: #{forward.1} parent=87 // pred_fallthru
          _
        // Predicated region
        $region109: #{forward.1} parent=87 // pred_check
          %p660 = pneg %p205
        $region110: #{forward.1} parent=87 // pred_check_branch
          %662 = sbr.rel (%p660) target = $region112
        $region111: #{forward.1} parent=87 // pred_region
          %663 = dma.done [#allocation11], 4096
        $region112: #{forward.1} parent=87 // pred_fallthru
          _
        // Predicated region
        $region113: #{forward.1} parent=87 // pred_check
          %p664 = pneg %p247
        $region114: #{forward.1} parent=87 // pred_check_branch
          %666 = sbr.rel (%p664) target = $region116
        $region115: #{forward.1} parent=87 // pred_region
          %667 = dma.done [#allocation11], 8192
        $region116: #{forward.1} parent=87 // pred_fallthru
          _
        // Predicated region
        $region117: #{forward.1} parent=87 // pred_check
          %p668 = pneg %p268
        $region118: #{forward.1} parent=87 // pred_check_branch
          %670 = sbr.rel (%p668) target = $region120
        $region119: #{forward.1} parent=87 // pred_region
          %671 = dma.done [#allocation14], 128
        $region120: #{forward.1} parent=87 // pred_fallthru
          _
        // Predicated region
        $region121: #{forward.1} parent=87 // pred_check
          %p672 = pneg %p289
        $region122: #{forward.1} parent=87 // pred_check_branch
          %674 = sbr.rel (%p672) target = $region124
        $region123: #{forward.1} parent=87 // pred_region
          %675 = dma.done [#allocation14], 8192
        $region124: #{forward.1} parent=87 // pred_fallthru
          _
        // Predicated region
        $region125: #{forward.1} parent=87 // pred_check
          %p676 = pneg %p310
        $region126: #{forward.1} parent=87 // pred_check_branch
          %678 = sbr.rel (%p676) target = $region128
        $region127: #{forward.1} parent=87 // pred_region
          %679 = dma.done [#allocation17], 64
        $region128: #{forward.1} parent=87 // pred_fallthru
          _
        // Predicated region
        $region129: #{forward.1} parent=87 // pred_check
          %p680 = pneg %p352
        $region130: #{forward.1} parent=87 // pred_check_branch
          %682 = sbr.rel (%p680) target = $region132
        $region131: #{forward.1} parent=87 // pred_region
          %683 = dma.done [#allocation17], 64
        $region132: #{forward.1} parent=87 // pred_fallthru
          _
        // Predicated region
        $region133: #{forward.1} parent=87 // pred_check
          %p684 = pneg %p373
        $region134: #{forward.1} parent=87 // pred_check_branch
          %686 = sbr.rel (%p684) target = $region136
        $region135: #{forward.1} parent=87 // pred_region
          %687 = dma.done [#allocation20], 64
        $region136: #{forward.1} parent=87 // pred_fallthru
          _
        // Predicated region
        $region137: #{forward.1} parent=87 // pred_check
          %p688 = pneg %p394
        $region138: #{forward.1} parent=87 // pred_check_branch
          %690 = sbr.rel (%p688) target = $region140
        $region139: #{forward.1} parent=87 // pred_region
          %691 = dma.done [#allocation20], 64
        $region140: #{forward.1} parent=87 // pred_fallthru
          _
        %s692 = sand.u32 %s45, 1
        %s693 = scalar_lea.sflag [#allocation3], %s692
        %s694 = sand.u32 %s45, 1
        %s695 = smul.addr %s694, 16
        %s696 = scalar_lea.vmem [#allocation2], %s695
        %p697 = pneg %p58
        %p698 = pneg %p55
        %p699 = pneg %p79
        %p700 = pneg %p76
        %p701 = pneg %p100
        %p702 = pneg %p97
        %p703 = pneg %p121
        %p704 = pneg %p118
        %p705 = pneg %p142
        %p706 = pneg %p139
        %p707 = pneg %p163
        %p708 = pneg %p160
        %p709 = pneg %p184
        %p710 = pneg %p181
        %p711 = pneg %p205
        %p712 = pneg %p202
        %p713 = pneg %p226
        %p714 = pneg %p223
        %p715 = pneg %p247
        %p716 = pneg %p244
        %p717 = pneg %p268
        %p718 = pneg %p265
        %p719 = pneg %p289
        %p720 = pneg %p286
        %p721 = pneg %p310
        %p722 = pneg %p307
        %p723 = pneg %p331
        %p724 = pneg %p328
        %p725 = pneg %p352
        %p726 = pneg %p349
        %p727 = pneg %p373
        %p728 = pneg %p370
        %p729 = pneg %p394
        %p730 = pneg %p391
        %p731 = pneg %p420
        %p732 = pneg %p417
        %p733 = scmp.lt.s32.totalorder %s37, 1
        %s734 = scalar_select %p733, %s37, 1
        %s735 = smul.addr %s734, 8
        %s736 = scalar_lea.vmem %s17, %s735
        %p737 = scmp.lt.s32.totalorder %s37, 1
        %s738 = scalar_select %p737, %s37, 1
        %s739 = smul.addr %s738, 8
        %s740 = scalar_lea.vmem %s17, %s739
        %v742 = vld [vmem:[%s639] sm:$0xff]
        %v743 = vld [vmem:[%s639 + $0x8] sm:$0xff]
        %v744 = vpack.c.bf16 %v743, %v742
        %v745 = vld [vmem:[%s1] sm:$0xf]
        %v746 = vld [vmem:[%s1 + $0x4] sm:$0xf]
        %v747 = vld [vmem:[%s1 + $0x8] sm:$0xf]
        %v748 = vld [vmem:[%s1 + $0xc] sm:$0xf]
        %v749 = vld [vmem:[%s2] sm:$0x1]
        %v751 = vlaneseq
        %v752 = vshrl.u32 %v751, 7
        %v753 = vsub.s32 0, %v752
        %v754 = vrot.slane %v749, %v753
        %v760 = vunpack.c.l.b16 %v745
        %v761 = vunpack.c.l.b16 %v746
        %v762 = vunpack.c.l.b16 %v747
        %v763 = vunpack.c.l.b16 %v748
        %v764 = vpack.c.b16 %v761, %v760
        %v765 = vpack.c.b16 %v763, %v762
        %vm768 = vcmask 261120
        %v770 = vsel %vm768, %v744, 0
        %772 = vmatprep.subr.bf16.mxu0 0
        %773 = vmatpush1.bf16.msra.mxu0 0
        %774 = vmatprep.subr.bf16.mxu0 0
        %775 = vmatpush1.bf16.msra.mxu0 0
        %776 = vmatprep.subr.bf16.mxu0 0
        %777 = vmatpush1.bf16.msra.mxu0 0
        %778 = vmatprep.subr.bf16.mxu0 0
        %779 = vmatpush1.bf16.msra.mxu0 0
        %780 = vmatprep.subr.bf16.mxu0 0
        %781 = vmatpush1.bf16.msra.mxu0 0
        %782 = vmatprep.subr.bf16.mxu0 0
        %783 = vmatpush1.bf16.msra.mxu0 0
        %784 = vmatprep.subr.bf16.mxu0 0
        %785 = vmatpush1.bf16.msra.mxu0 %v765
        %786 = vmatprep.subr.bf16.mxu0 0
        %787 = vmatpush1.bf16.msra.mxu0 %v764
        %788 = vmatprep.subr.bf16.mxu0 0
        %789 = vmatpush2.bf16.msra.mxu0 0
        %790 = vmatprep.subr.bf16.mxu0 0
        %791 = vmatpush2.bf16.msra.mxu0 0
        %792 = vmatprep.subr.bf16.mxu0 0
        %793 = vmatpush2.bf16.msra.mxu0 0
        %794 = vmatprep.subr.bf16.mxu0 0
        %795 = vmatpush2.bf16.msra.mxu0 0
        %796 = vmatprep.subr.bf16.mxu0 0
        %797 = vmatpush2.bf16.msra.mxu0 0
        %798 = vmatprep.subr.bf16.mxu0 0
        %799 = vmatpush2.bf16.msra.mxu0 0
        %800 = vmatprep.subr.bf16.mxu0 0
        %801 = vmatpush2.bf16.msra.mxu0 0
        %802 = vmatprep.subr.bf16.mxu0 0
        %803 = vmatpush2.bf16.msra.mxu0 0
        %804 = vmatprep.mubr.bf16.mxu0 0
        %805 = vmatmul.mubr.bf16.gmra.mxu0 %v770
        %v806 = vpop.f32.mrf.mxu0
        %v807 = vadd.f32 %v754, %v806
        %v808 = vpop.f32.mrf.mxu0
        %v809 = vpop.f32.mrf.mxu0
        %v810 = vadd.f32 %v754, %v809
        %v811 = vpop.f32.mrf.mxu0
        %812 = vdwg.mxu0
        %v813 = vld [vmem:[#allocation4] sm:$0xff]
        %v814 = vld [vmem:[#allocation4 + $0x8] sm:$0xff]
        %v815 = vadd.f32 %v807, %v813
        %v816 = vadd.f32 %v810, %v814
        %v817 = vld [vmem:[#allocation6] sm:$0xf]
        %v818 = vld [vmem:[#allocation6 + $0x4] sm:$0xf]
        %v819 = vld [vmem:[#allocation6 + $0x8] sm:$0xf]
        %v820 = vld [vmem:[#allocation6 + $0xc] sm:$0xf]
        %v821 = vld [vmem:[#allocation6 + $0x10] sm:$0xf]
        %v822 = vld [vmem:[#allocation6 + $0x14] sm:$0xf]
        %v823 = vld [vmem:[#allocation6 + $0x18] sm:$0xf]
        %v824 = vld [vmem:[#allocation6 + $0x1c] sm:$0xf]
        %v825 = vld [vmem:[#allocation6 + $0x20] sm:$0xf]
        %v826 = vld [vmem:[#allocation6 + $0x24] sm:$0xf]
        %v827 = vld [vmem:[#allocation6 + $0x28] sm:$0xf]
        %v828 = vld [vmem:[#allocation6 + $0x2c] sm:$0xf]
        %v829 = vld [vmem:[#allocation6 + $0x30] sm:$0xf]
        %v830 = vld [vmem:[#allocation6 + $0x34] sm:$0xf]
        %v831 = vld [vmem:[#allocation6 + $0x38] sm:$0xf]
        %v832 = vld [vmem:[#allocation6 + $0x3c] sm:$0xf]
        %v833 = vpack.c.bf16 %v816, %v815
        %v834 = vld [vmem:[#allocation7] sm:$0xff]
        %v835 = vld [vmem:[#allocation7 + $0x8] sm:$0xf]
        %v836 = vld [vmem:[#allocation7 + $0xc] sm:$0xff]
        %v837 = vld [vmem:[#allocation7 + $0x14] sm:$0xf]
        %v838 = vld [vmem:[#allocation7 + $0x18] sm:$0xff]
        %v839 = vld [vmem:[#allocation7 + $0x20] sm:$0xf]
        %v840 = vld [vmem:[#allocation7 + $0x24] sm:$0xff]
        %v841 = vld [vmem:[#allocation7 + $0x2c] sm:$0xf]
        %v842 = vld [vmem:[#allocation7 + $0x30] sm:$0xff]
        %v843 = vld [vmem:[#allocation7 + $0x38] sm:$0xf]
        %v844 = vld [vmem:[#allocation7 + $0x3c] sm:$0xff]
        %v845 = vld [vmem:[#allocation7 + $0x44] sm:$0xf]
        %v846 = vld [vmem:[#allocation7 + $0x48] sm:$0xff]
        %v847 = vld [vmem:[#allocation7 + $0x50] sm:$0xf]
        %v848 = vld [vmem:[#allocation7 + $0x54] sm:$0xff]
        %v849 = vld [vmem:[#allocation7 + $0x5c] sm:$0xf]
        %v850 = vld [vmem:[#allocation7 + $0x60] sm:$0xff]
        %v851 = vld [vmem:[#allocation7 + $0x68] sm:$0xf]
        %v852 = vld [vmem:[#allocation7 + $0x6c] sm:$0xff]
        %v853 = vld [vmem:[#allocation7 + $0x74] sm:$0xf]
        %v854 = vld [vmem:[#allocation7 + $0x78] sm:$0xff]
        %v855 = vld [vmem:[#allocation7 + $0x80] sm:$0xf]
        %v856 = vld [vmem:[#allocation7 + $0x84] sm:$0xff]
        %v857 = vld [vmem:[#allocation7 + $0x8c] sm:$0xf]
        %v858 = vld [vmem:[#allocation7 + $0x90] sm:$0xff]
        %v859 = vld [vmem:[#allocation7 + $0x98] sm:$0xf]
        %v860 = vld [vmem:[#allocation7 + $0x9c] sm:$0xff]
        %v861 = vld [vmem:[#allocation7 + $0xa4] sm:$0xf]
        %v862 = vld [vmem:[#allocation7 + $0xa8] sm:$0xff]
        %v863 = vld [vmem:[#allocation7 + $0xb0] sm:$0xf]
        %v864 = vld [vmem:[#allocation7 + $0xb4] sm:$0xff]
        %v865 = vld [vmem:[#allocation7 + $0xbc] sm:$0xf]
        %v866 = vld [vmem:[#allocation9] sm:$0x7]
        %v868 = vlaneseq
        %v869 = vshrl.u32 %v868, 7
        %v870 = vsub.s32 0, %v869
        %v871 = vrot.slane %v866, %v870
        %v872 = vlaneseq
        %v873 = vshrl.u32 %v872, 7
        %v874 = vsub.s32 1, %v873
        %v875 = vrot.slane %v866, %v874
        %v876 = vlaneseq
        %v877 = vshrl.u32 %v876, 7
        %v878 = vsub.s32 2, %v877
        %v879 = vrot.slane %v866, %v878
        %v915 = vunpack.c.l.b16 %v834
        %v916 = vunpack.c.h.b16 %v834
        %v917 = vunpack.c.l.b16 %v835
        %v918 = vunpack.c.l.b16 %v836
        %v919 = vunpack.c.h.b16 %v836
        %v920 = vunpack.c.l.b16 %v837
        %v921 = vunpack.c.l.b16 %v838
        %v922 = vunpack.c.h.b16 %v838
        %v923 = vunpack.c.l.b16 %v839
        %v924 = vunpack.c.l.b16 %v840
        %v925 = vunpack.c.h.b16 %v840
        %v926 = vunpack.c.l.b16 %v841
        %v927 = vunpack.c.l.b16 %v842
        %v928 = vunpack.c.h.b16 %v842
        %v929 = vunpack.c.l.b16 %v843
        %v930 = vunpack.c.l.b16 %v844
        %v931 = vunpack.c.h.b16 %v844
        %v932 = vunpack.c.l.b16 %v845
        %v933 = vunpack.c.l.b16 %v846
        %v934 = vunpack.c.h.b16 %v846
        %v935 = vunpack.c.l.b16 %v847
        %v936 = vunpack.c.l.b16 %v848
        %v937 = vunpack.c.h.b16 %v848
        %v938 = vunpack.c.l.b16 %v849
        %v939 = vunpack.c.l.b16 %v850
        %v940 = vunpack.c.h.b16 %v850
        %v941 = vunpack.c.l.b16 %v851
        %v942 = vunpack.c.l.b16 %v852
        %v943 = vunpack.c.h.b16 %v852
        %v944 = vunpack.c.l.b16 %v853
        %v945 = vunpack.c.l.b16 %v854
        %v946 = vunpack.c.h.b16 %v854
        %v947 = vunpack.c.l.b16 %v855
        %v948 = vunpack.c.l.b16 %v856
        %v949 = vunpack.c.h.b16 %v856
        %v950 = vunpack.c.l.b16 %v857
        %v951 = vunpack.c.l.b16 %v858
        %v952 = vunpack.c.h.b16 %v858
        %v953 = vunpack.c.l.b16 %v859
        %v954 = vunpack.c.l.b16 %v860
        %v955 = vunpack.c.h.b16 %v860
        %v956 = vunpack.c.l.b16 %v861
        %v957 = vunpack.c.l.b16 %v862
        %v958 = vunpack.c.h.b16 %v862
        %v959 = vunpack.c.l.b16 %v863
        %v960 = vunpack.c.l.b16 %v864
        %v961 = vunpack.c.h.b16 %v864
        %v962 = vunpack.c.l.b16 %v865
        %v963 = vpack.c.b16 %v918, %v915
        %v964 = vpack.c.b16 %v919, %v916
        %v965 = vpack.c.b16 %v920, %v917
        %v966 = vpack.c.b16 %v924, %v921
        %v967 = vpack.c.b16 %v925, %v922
        %v968 = vpack.c.b16 %v926, %v923
        %v969 = vpack.c.b16 %v930, %v927
        %v970 = vpack.c.b16 %v931, %v928
        %v971 = vpack.c.b16 %v932, %v929
        %v972 = vpack.c.b16 %v936, %v933
        %v973 = vpack.c.b16 %v937, %v934
        %v974 = vpack.c.b16 %v938, %v935
        %v975 = vpack.c.b16 %v942, %v939
        %v976 = vpack.c.b16 %v943, %v940
        %v977 = vpack.c.b16 %v944, %v941
        %v978 = vpack.c.b16 %v948, %v945
        %v979 = vpack.c.b16 %v949, %v946
        %v980 = vpack.c.b16 %v950, %v947
        %v981 = vpack.c.b16 %v954, %v951
        %v982 = vpack.c.b16 %v955, %v952
        %v983 = vpack.c.b16 %v956, %v953
        %v984 = vpack.c.b16 %v960, %v957
        %v985 = vpack.c.b16 %v961, %v958
        %v986 = vpack.c.b16 %v962, %v959
        %1011 = vmatprep.subr.bf16.mxu0 %v985
        %1012 = vmatpush1.bf16.msra.mxu0 %v984
        %1013 = vmatprep.subr.bf16.mxu0 %v982
        %1014 = vmatpush1.bf16.msra.mxu0 %v981
        %1015 = vmatprep.subr.bf16.mxu0 %v979
        %1016 = vmatpush1.bf16.msra.mxu0 %v978
        %1017 = vmatprep.subr.bf16.mxu0 %v976
        %1018 = vmatpush1.bf16.msra.mxu0 %v975
        %1019 = vmatprep.subr.bf16.mxu0 %v973
        %1020 = vmatpush1.bf16.msra.mxu0 %v972
        %1021 = vmatprep.subr.bf16.mxu0 %v970
        %1022 = vmatpush1.bf16.msra.mxu0 %v969
        %1023 = vmatprep.subr.bf16.mxu0 %v967
        %1024 = vmatpush1.bf16.msra.mxu0 %v966
        %1025 = vmatprep.subr.bf16.mxu0 %v964
        %1026 = vmatpush1.bf16.msra.mxu0 %v963
        %1027 = vmatprep.subr.bf16.mxu0 0
        %1028 = vmatpush2.bf16.msra.mxu0 0
        %1029 = vmatprep.subr.bf16.mxu0 0
        %1030 = vmatpush2.bf16.msra.mxu0 0
        %1031 = vmatprep.subr.bf16.mxu0 0
        %1032 = vmatpush2.bf16.msra.mxu0 0
        %1033 = vmatprep.subr.bf16.mxu0 0
        %1034 = vmatpush2.bf16.msra.mxu0 0
        %1035 = vmatprep.subr.bf16.mxu0 0
        %1036 = vmatpush2.bf16.msra.mxu0 0
        %1037 = vmatprep.subr.bf16.mxu0 0
        %1038 = vmatpush2.bf16.msra.mxu0 0
        %1039 = vmatprep.subr.bf16.mxu0 0
        %1040 = vmatpush2.bf16.msra.mxu0 0
        %1041 = vmatprep.subr.bf16.mxu0 0
        %1042 = vmatpush2.bf16.msra.mxu0 0
        %1043 = vmatprep.mubr.bf16.mxu0 0
        %1044 = vmatmul.mubr.bf16.gmra.mxu0 %v833
        %v1045 = vpop.f32.mrf.mxu0
        %v1046 = vadd.f32 %v871, %v1045
        %v1047 = vpop.f32.mrf.mxu0
        %v1048 = vadd.f32 %v875, %v1047
        %v1049 = vpop.f32.mrf.mxu0
        %v1050 = vadd.f32 %v871, %v1049
        %v1051 = vpop.f32.mrf.mxu0
        %v1052 = vadd.f32 %v875, %v1051
        %1053 = vdwg.mxu0
        %1054 = vmatprep.subr.bf16.mxu0 0
        %1055 = vmatpush1.bf16.msra.mxu0 %v986
        %1056 = vmatprep.subr.bf16.mxu0 0
        %1057 = vmatpush1.bf16.msra.mxu0 %v983
        %1058 = vmatprep.subr.bf16.mxu0 0
        %1059 = vmatpush1.bf16.msra.mxu0 %v980
        %1060 = vmatprep.subr.bf16.mxu0 0
        %1061 = vmatpush1.bf16.msra.mxu0 %v977
        %1062 = vmatprep.subr.bf16.mxu0 0
        %1063 = vmatpush1.bf16.msra.mxu0 %v974
        %1064 = vmatprep.subr.bf16.mxu0 0
        %1065 = vmatpush1.bf16.msra.mxu0 %v971
        %1066 = vmatprep.subr.bf16.mxu0 0
        %1067 = vmatpush1.bf16.msra.mxu0 %v968
        %1068 = vmatprep.subr.bf16.mxu0 0
        %1069 = vmatpush1.bf16.msra.mxu0 %v965
        %1070 = vmatprep.subr.bf16.mxu0 0
        %1071 = vmatpush2.bf16.msra.mxu0 0
        %1072 = vmatprep.subr.bf16.mxu0 0
        %1073 = vmatpush2.bf16.msra.mxu0 0
        %1074 = vmatprep.subr.bf16.mxu0 0
        %1075 = vmatpush2.bf16.msra.mxu0 0
        %1076 = vmatprep.subr.bf16.mxu0 0
        %1077 = vmatpush2.bf16.msra.mxu0 0
        %1078 = vmatprep.subr.bf16.mxu0 0
        %1079 = vmatpush2.bf16.msra.mxu0 0
        %1080 = vmatprep.subr.bf16.mxu0 0
        %1081 = vmatpush2.bf16.msra.mxu0 0
        %1082 = vmatprep.subr.bf16.mxu0 0
        %1083 = vmatpush2.bf16.msra.mxu0 0
        %1084 = vmatprep.subr.bf16.mxu0 0
        %1085 = vmatpush2.bf16.msra.mxu0 0
        %1086 = vmatprep.mubr.bf16.mxu0 0
        %1087 = vmatmul.mubr.bf16.gmra.mxu0 %v833
        %v1088 = vpop.f32.mrf.mxu0
        %v1089 = vadd.f32 %v879, %v1088
        %v1090 = vpop.f32.mrf.mxu0
        %v1091 = vpop.f32.mrf.mxu0
        %v1092 = vadd.f32 %v879, %v1091
        %v1093 = vpop.f32.mrf.mxu0
        %1094 = vdwg.mxu0
        %v1095 = vpack.c.bf16 %v1050, %v1046
        %v1096 = vpack.c.bf16 %v1052, %v1048
        %v1097 = vpack.c.bf16 %v1092, %v1089
        %v1114 = vunpack.c.l.b16 %v817
        %v1115 = vunpack.c.l.b16 %v818
        %v1116 = vunpack.c.l.b16 %v819
        %v1117 = vunpack.c.l.b16 %v820
        %v1118 = vunpack.c.l.b16 %v821
        %v1119 = vunpack.c.l.b16 %v822
        %v1120 = vunpack.c.l.b16 %v823
        %v1121 = vunpack.c.l.b16 %v824
        %v1122 = vunpack.c.l.b16 %v825
        %v1123 = vunpack.c.l.b16 %v826
        %v1124 = vunpack.c.l.b16 %v827
        %v1125 = vunpack.c.l.b16 %v828
        %v1126 = vunpack.c.l.b16 %v829
        %v1127 = vunpack.c.l.b16 %v830
        %v1128 = vunpack.c.l.b16 %v831
        %v1129 = vunpack.c.l.b16 %v832
        %v1130 = vpack.c.b16 %v1115, %v1114
        %v1131 = vpack.c.b16 %v1117, %v1116
        %v1132 = vpack.c.b16 %v1119, %v1118
        %v1133 = vpack.c.b16 %v1121, %v1120
        %v1134 = vpack.c.b16 %v1123, %v1122
        %v1135 = vpack.c.b16 %v1125, %v1124
        %v1136 = vpack.c.b16 %v1127, %v1126
        %v1137 = vpack.c.b16 %v1129, %v1128
        %v1146 = vmul.bf16 %v1096, %v1130
        %v1147 = vmul.bf16 %v1096, %v1131
        %v1148 = vmul.bf16 %v1096, %v1132
        %v1149 = vmul.bf16 %v1096, %v1133
        %v1150 = vmul.bf16 %v1096, %v1134
        %v1151 = vmul.bf16 %v1096, %v1135
        %v1152 = vmul.bf16 %v1096, %v1136
        %v1153 = vmul.bf16 %v1096, %v1137
        %v1154 = vmul.bf16 %v1097, %v1130
        %v1155 = vmul.bf16 %v1097, %v1131
        %v1156 = vmul.bf16 %v1097, %v1132
        %v1157 = vmul.bf16 %v1097, %v1133
        %v1158 = vmul.bf16 %v1097, %v1134
        %v1159 = vmul.bf16 %v1097, %v1135
        %v1160 = vmul.bf16 %v1097, %v1136
        %v1161 = vmul.bf16 %v1097, %v1137
        %1162 = vmatprep.subr.bf16.mxu0 0
        %1163 = vmatpush1.bf16.xpose.msra.mxu0 %v1153
        %1164 = vmatprep.subr.bf16.mxu0 0
        %1165 = vmatpush1.bf16.xpose.msra.mxu0 %v1152
        %1166 = vmatprep.subr.bf16.mxu0 0
        %1167 = vmatpush1.bf16.xpose.msra.mxu0 %v1151
        %1168 = vmatprep.subr.bf16.mxu0 0
        %1169 = vmatpush1.bf16.xpose.msra.mxu0 %v1150
        %1170 = vmatprep.subr.bf16.mxu0 0
        %1171 = vmatpush1.bf16.xpose.msra.mxu0 %v1149
        %1172 = vmatprep.subr.bf16.mxu0 0
        %1173 = vmatpush1.bf16.xpose.msra.mxu0 %v1148
        %1174 = vmatprep.subr.bf16.mxu0 0
        %1175 = vmatpush1.bf16.xpose.msra.mxu0 %v1147
        %1176 = vmatprep.subr.bf16.mxu0 0
        %1177 = vmatpush1.bf16.xpose.msra.mxu0 %v1146
        %1178 = vmatprep.subr.bf16.mxu0 0
        %1179 = vmatpush2.bf16.xpose.msra.mxu0 0
        %1180 = vmatprep.subr.bf16.mxu0 0
        %1181 = vmatpush2.bf16.xpose.msra.mxu0 0
        %1182 = vmatprep.subr.bf16.mxu0 0
        %1183 = vmatpush2.bf16.xpose.msra.mxu0 0
        %1184 = vmatprep.subr.bf16.mxu0 0
        %1185 = vmatpush2.bf16.xpose.msra.mxu0 0
        %1186 = vmatprep.subr.bf16.mxu0 0
        %1187 = vmatpush2.bf16.xpose.msra.mxu0 0
        %1188 = vmatprep.subr.bf16.mxu0 0
        %1189 = vmatpush2.bf16.xpose.msra.mxu0 0
        %1190 = vmatprep.subr.bf16.mxu0 0
        %1191 = vmatpush2.bf16.xpose.msra.mxu0 0
        %1192 = vmatprep.subr.bf16.mxu0 0
        %1193 = vmatpush2.bf16.xpose.msra.mxu0 0
        %1194 = vmatprep.mubr.bf16.mxu0 0
        %1195 = vmatmul.mubr.bf16.gmra.mxu0 %v1095
        %v1196 = vpop.f32.mrf.mxu0
        %v1197 = vadd.f32 0.0, %v1196
        %v1198 = vpop.f32.mrf.mxu0
        %v1199 = vpop.f32.mrf.mxu0
        %v1200 = vadd.f32 0.0, %v1199
        %v1201 = vpop.f32.mrf.mxu0
        %1202 = vdwg.mxu0
        %1203 = vmax.xlane.f32.xlu0 %v1197
        %v1204 = vpop.xlane.xlu0 %1203
        %1205 = vmax.xlane.f32.xlu0 %v1200
        %v1206 = vpop.xlane.xlu0 %1205
        %v1207 = vsub.f32 %v1197, %v1204
        %v1208 = vsub.f32 %v1200, %v1206
        %v1209 = vmul.f32 %v1207, 1.442695
        %v1210 = vpow.pop %v1209
        %v1211 = vmul.f32 %v1208, 1.442695
        %v1212 = vpow.pop %v1211
        %v1213 = vpack.c.bf16 %v1212, %v1210
        %1214 = vmatprep.subr.bf16.mxu0 0
        %1215 = vmatpush1.bf16.msra.mxu0 %v1161
        %1216 = vmatprep.subr.bf16.mxu0 0
        %1217 = vmatpush1.bf16.msra.mxu0 %v1160
        %1218 = vmatprep.subr.bf16.mxu0 0
        %1219 = vmatpush1.bf16.msra.mxu0 %v1159
        %1220 = vmatprep.subr.bf16.mxu0 0
        %1221 = vmatpush1.bf16.msra.mxu0 %v1158
        %1222 = vmatprep.subr.bf16.mxu0 0
        %1223 = vmatpush1.bf16.msra.mxu0 %v1157
        %1224 = vmatprep.subr.bf16.mxu0 0
        %1225 = vmatpush1.bf16.msra.mxu0 %v1156
        %1226 = vmatprep.subr.bf16.mxu0 0
        %1227 = vmatpush1.bf16.msra.mxu0 %v1155
        %1228 = vmatprep.subr.bf16.mxu0 0
        %1229 = vmatpush1.bf16.msra.mxu0 %v1154
        %1230 = vmatprep.subr.bf16.mxu0 0
        %1231 = vmatpush2.bf16.msra.mxu0 0
        %1232 = vmatprep.subr.bf16.mxu0 0
        %1233 = vmatpush2.bf16.msra.mxu0 0
        %1234 = vmatprep.subr.bf16.mxu0 0
        %1235 = vmatpush2.bf16.msra.mxu0 0
        %1236 = vmatprep.subr.bf16.mxu0 0
        %1237 = vmatpush2.bf16.msra.mxu0 0
        %1238 = vmatprep.subr.bf16.mxu0 0
        %1239 = vmatpush2.bf16.msra.mxu0 0
        %1240 = vmatprep.subr.bf16.mxu0 0
        %1241 = vmatpush2.bf16.msra.mxu0 0
        %1242 = vmatprep.subr.bf16.mxu0 0
        %1243 = vmatpush2.bf16.msra.mxu0 0
        %1244 = vmatprep.subr.bf16.mxu0 0
        %1245 = vmatpush2.bf16.msra.mxu0 0
        %1246 = vmatprep.mubr.bf16.mxu0 0
        %1247 = vmatmul.mubr.bf16.gmra.mxu0 %v1213
        %v1248 = vpop.f32.mrf.mxu0
        %v1249 = vadd.f32 0.0, %v1248
        %v1250 = vpop.f32.mrf.mxu0
        %v1251 = vpop.f32.mrf.mxu0
        %v1252 = vadd.f32 0.0, %v1251
        %v1253 = vpop.f32.mrf.mxu0
        %1254 = vdwg.mxu0
        %1255 = vmatprep.subr.bf16.mxu0 0
        %1256 = vmatpush1.bf16.msra.mxu0 %v1137
        %1257 = vmatprep.subr.bf16.mxu0 0
        %1258 = vmatpush1.bf16.msra.mxu0 %v1136
        %1259 = vmatprep.subr.bf16.mxu0 0
        %1260 = vmatpush1.bf16.msra.mxu0 %v1135
        %1261 = vmatprep.subr.bf16.mxu0 0
        %1262 = vmatpush1.bf16.msra.mxu0 %v1134
        %1263 = vmatprep.subr.bf16.mxu0 0
        %1264 = vmatpush1.bf16.msra.mxu0 %v1133
        %1265 = vmatprep.subr.bf16.mxu0 0
        %1266 = vmatpush1.bf16.msra.mxu0 %v1132
        %1267 = vmatprep.subr.bf16.mxu0 0
        %1268 = vmatpush1.bf16.msra.mxu0 %v1131
        %1269 = vmatprep.subr.bf16.mxu0 0
        %1270 = vmatpush1.bf16.msra.mxu0 %v1130
        %1271 = vmatprep.subr.bf16.mxu0 0
        %1272 = vmatpush2.bf16.msra.mxu0 0
        %1273 = vmatprep.subr.bf16.mxu0 0
        %1274 = vmatpush2.bf16.msra.mxu0 0
        %1275 = vmatprep.subr.bf16.mxu0 0
        %1276 = vmatpush2.bf16.msra.mxu0 0
        %1277 = vmatprep.subr.bf16.mxu0 0
        %1278 = vmatpush2.bf16.msra.mxu0 0
        %1279 = vmatprep.subr.bf16.mxu0 0
        %1280 = vmatpush2.bf16.msra.mxu0 0
        %1281 = vmatprep.subr.bf16.mxu0 0
        %1282 = vmatpush2.bf16.msra.mxu0 0
        %1283 = vmatprep.subr.bf16.mxu0 0
        %1284 = vmatpush2.bf16.msra.mxu0 0
        %1285 = vmatprep.subr.bf16.mxu0 0
        %1286 = vmatpush2.bf16.msra.mxu0 0
        %1287 = vmatprep.mubr.bf16.mxu0 0
        %1288 = vmatmul.mubr.bf16.gmra.mxu0 %v1213
        %v1289 = vpop.f32.mrf.mxu0
        %v1290 = vadd.f32 1e-20, %v1289
        %v1291 = vpop.f32.mrf.mxu0
        %v1292 = vpop.f32.mrf.mxu0
        %v1293 = vadd.f32 1e-20, %v1292
        %v1294 = vpop.f32.mrf.mxu0
        %1295 = vdwg.mxu0
        %v1296 = vrcp.pop %v1290
        %v1297 = vrcp.pop %v1293
        %v1298 = vmul.f32 %v1249, %v1296
        %v1299 = vmul.f32 %v1252, %v1297
        %v1300 = vpack.c.bf16 %v1299, %v1298
        %v1301 = vld [vmem:[#allocation10] sm:$0xf]
        %v1302 = vld [vmem:[#allocation10 + $0x4] sm:$0xf]
        %v1303 = vld [vmem:[#allocation10 + $0x8] sm:$0xf]
        %v1304 = vld [vmem:[#allocation10 + $0xc] sm:$0xf]
        %v1305 = vld [vmem:[#allocation10 + $0x10] sm:$0xf]
        %v1306 = vld [vmem:[#allocation10 + $0x14] sm:$0xf]
        %v1307 = vld [vmem:[#allocation10 + $0x18] sm:$0xf]
        %v1308 = vld [vmem:[#allocation10 + $0x1c] sm:$0xf]
        %v1309 = vld [vmem:[#allocation10 + $0x20] sm:$0xf]
        %v1310 = vld [vmem:[#allocation10 + $0x24] sm:$0xf]
        %v1311 = vld [vmem:[#allocation10 + $0x28] sm:$0xf]
        %v1312 = vld [vmem:[#allocation10 + $0x2c] sm:$0xf]
        %v1313 = vld [vmem:[#allocation10 + $0x30] sm:$0xf]
        %v1314 = vld [vmem:[#allocation10 + $0x34] sm:$0xf]
        %v1315 = vld [vmem:[#allocation10 + $0x38] sm:$0xf]
        %v1316 = vld [vmem:[#allocation10 + $0x3c] sm:$0xf]
        %v1317 = vld [vmem:[%s8] sm:$0x1]
        %v1319 = vlaneseq
        %v1320 = vshrl.u32 %v1319, 7
        %v1321 = vsub.s32 0, %v1320
        %v1322 = vrot.slane %v1317, %v1321
        %v1340 = vunpack.c.l.b16 %v1301
        %v1341 = vunpack.c.l.b16 %v1302
        %v1342 = vunpack.c.l.b16 %v1303
        %v1343 = vunpack.c.l.b16 %v1304
        %v1344 = vunpack.c.l.b16 %v1305
        %v1345 = vunpack.c.l.b16 %v1306
        %v1346 = vunpack.c.l.b16 %v1307
        %v1347 = vunpack.c.l.b16 %v1308
        %v1348 = vunpack.c.l.b16 %v1309
        %v1349 = vunpack.c.l.b16 %v1310
        %v1350 = vunpack.c.l.b16 %v1311
        %v1351 = vunpack.c.l.b16 %v1312
        %v1352 = vunpack.c.l.b16 %v1313
        %v1353 = vunpack.c.l.b16 %v1314
        %v1354 = vunpack.c.l.b16 %v1315
        %v1355 = vunpack.c.l.b16 %v1316
        %v1356 = vpack.c.b16 %v1341, %v1340
        %v1357 = vpack.c.b16 %v1343, %v1342
        %v1358 = vpack.c.b16 %v1345, %v1344
        %v1359 = vpack.c.b16 %v1347, %v1346
        %v1360 = vpack.c.b16 %v1349, %v1348
        %v1361 = vpack.c.b16 %v1351, %v1350
        %v1362 = vpack.c.b16 %v1353, %v1352
        %v1363 = vpack.c.b16 %v1355, %v1354
        %1372 = vmatprep.subr.bf16.mxu0 0
        %1373 = vmatpush1.bf16.msra.mxu0 %v1363
        %1374 = vmatprep.subr.bf16.mxu0 0
        %1375 = vmatpush1.bf16.msra.mxu0 %v1362
        %1376 = vmatprep.subr.bf16.mxu0 0
        %1377 = vmatpush1.bf16.msra.mxu0 %v1361
        %1378 = vmatprep.subr.bf16.mxu0 0
        %1379 = vmatpush1.bf16.msra.mxu0 %v1360
        %1380 = vmatprep.subr.bf16.mxu0 0
        %1381 = vmatpush1.bf16.msra.mxu0 %v1359
        %1382 = vmatprep.subr.bf16.mxu0 0
        %1383 = vmatpush1.bf16.msra.mxu0 %v1358
        %1384 = vmatprep.subr.bf16.mxu0 0
        %1385 = vmatpush1.bf16.msra.mxu0 %v1357
        %1386 = vmatprep.subr.bf16.mxu0 0
        %1387 = vmatpush1.bf16.msra.mxu0 %v1356
        %1388 = vmatprep.subr.bf16.mxu0 0
        %1389 = vmatpush2.bf16.msra.mxu0 0
        %1390 = vmatprep.subr.bf16.mxu0 0
        %1391 = vmatpush2.bf16.msra.mxu0 0
        %1392 = vmatprep.subr.bf16.mxu0 0
        %1393 = vmatpush2.bf16.msra.mxu0 0
        %1394 = vmatprep.subr.bf16.mxu0 0
        %1395 = vmatpush2.bf16.msra.mxu0 0
        %1396 = vmatprep.subr.bf16.mxu0 0
        %1397 = vmatpush2.bf16.msra.mxu0 0
        %1398 = vmatprep.subr.bf16.mxu0 0
        %1399 = vmatpush2.bf16.msra.mxu0 0
        %1400 = vmatprep.subr.bf16.mxu0 0
        %1401 = vmatpush2.bf16.msra.mxu0 0
        %1402 = vmatprep.subr.bf16.mxu0 0
        %1403 = vmatpush2.bf16.msra.mxu0 0
        %1404 = vmatprep.mubr.bf16.mxu0 0
        %1405 = vmatmul.mubr.bf16.gmra.mxu0 %v1300
        %v1406 = vpop.f32.mrf.mxu0
        %v1407 = vadd.f32 %v1322, %v1406
        %v1408 = vpop.f32.mrf.mxu0
        %v1409 = vpop.f32.mrf.mxu0
        %v1410 = vadd.f32 %v1322, %v1409
        %v1411 = vpop.f32.mrf.mxu0
        %1412 = vdwg.mxu0
        %v1413 = vadd.f32 %v815, %v1407
        %v1414 = vadd.f32 %v816, %v1410
        %v1415 = vld [vmem:[%s13] sm:$0x1]
        %v1416 = vld [vmem:[#allocation18] sm:$0x1]
        %1417 = vadd.xlane.f32.xlu0 %v1413
        %v1418 = vpop.xlane.xlu0 %1417
        %1419 = vadd.xlane.f32.xlu0 %v1414
        %v1420 = vpop.xlane.xlu0 %1419
        %v1421 = vrcp.pop 128.0
        %v1422 = vmul.f32 %v1418, %v1421
        %v1423 = vmul.f32 %v1420, %v1421
        %v1424 = vsub.f32 %v1413, %v1422
        %v1425 = vsub.f32 %v1414, %v1423
        %v1426 = vmul.f32 %v1424, %v1424
        %v1427 = vmul.f32 %v1425, %v1425
        %1428 = vadd.xlane.f32.xlu0 %v1426
        %v1429 = vpop.xlane.xlu0 %1428
        %1430 = vadd.xlane.f32.xlu0 %v1427
        %v1431 = vpop.xlane.xlu0 %1430
        %v1432 = vmul.f32 %v1429, %v1421
        %v1433 = vmul.f32 %v1431, %v1421
        %v1434 = vadd.f32 %v1432, 1e-05
        %v1435 = vadd.f32 %v1433, 1e-05
        %v1436 = vrsqrt.pop %v1434
        %v1437 = vrsqrt.pop %v1435
        %v1438 = vmul.f32 %v1424, %v1436
        %v1439 = vmul.f32 %v1425, %v1437
        %v1441 = vlaneseq
        %v1442 = vshrl.u32 %v1441, 7
        %v1443 = vsub.s32 0, %v1442
        %v1444 = vrot.slane %v1415, %v1443
        %v1446 = vmul.f32 %v1438, %v1444
        %v1447 = vmul.f32 %v1439, %v1444
        %v1449 = vlaneseq
        %v1450 = vshrl.u32 %v1449, 7
        %v1451 = vsub.s32 0, %v1450
        %v1452 = vrot.slane %v1416, %v1451
        %v1454 = vadd.f32 %v1446, %v1452
        %v1455 = vadd.f32 %v1447, %v1452
        %v1456 = vpack.c.bf16 %v1455, %v1454
        %v1457 = vld [vmem:[#allocation12] sm:$0xff]
        %v1458 = vld [vmem:[#allocation12 + $0x8] sm:$0xff]
        %v1459 = vld [vmem:[#allocation12 + $0x10] sm:$0xff]
        %v1460 = vld [vmem:[#allocation12 + $0x18] sm:$0xff]
        %v1461 = vld [vmem:[#allocation12 + $0x20] sm:$0xff]
        %v1462 = vld [vmem:[#allocation12 + $0x28] sm:$0xff]
        %v1463 = vld [vmem:[#allocation12 + $0x30] sm:$0xff]
        %v1464 = vld [vmem:[#allocation12 + $0x38] sm:$0xff]
        %v1465 = vld [vmem:[#allocation12 + $0x40] sm:$0xff]
        %v1466 = vld [vmem:[#allocation12 + $0x48] sm:$0xff]
        %v1467 = vld [vmem:[#allocation12 + $0x50] sm:$0xff]
        %v1468 = vld [vmem:[#allocation12 + $0x58] sm:$0xff]
        %v1469 = vld [vmem:[#allocation12 + $0x60] sm:$0xff]
        %v1470 = vld [vmem:[#allocation12 + $0x68] sm:$0xff]
        %v1471 = vld [vmem:[#allocation12 + $0x70] sm:$0xff]
        %v1472 = vld [vmem:[#allocation12 + $0x78] sm:$0xff]
        %v1473 = vld [vmem:[#allocation13] sm:$0x3]
        %v1475 = vlaneseq
        %v1476 = vshrl.u32 %v1475, 7
        %v1477 = vsub.s32 0, %v1476
        %v1478 = vrot.slane %v1473, %v1477
        %v1479 = vlaneseq
        %v1480 = vshrl.u32 %v1479, 7
        %v1481 = vsub.s32 1, %v1480
        %v1482 = vrot.slane %v1473, %v1481
        %v1501 = vunpack.c.l.b16 %v1457
        %v1502 = vunpack.c.h.b16 %v1457
        %v1503 = vunpack.c.l.b16 %v1458
        %v1504 = vunpack.c.h.b16 %v1458
        %v1505 = vunpack.c.l.b16 %v1459
        %v1506 = vunpack.c.h.b16 %v1459
        %v1507 = vunpack.c.l.b16 %v1460
        %v1508 = vunpack.c.h.b16 %v1460
        %v1509 = vunpack.c.l.b16 %v1461
        %v1510 = vunpack.c.h.b16 %v1461
        %v1511 = vunpack.c.l.b16 %v1462
        %v1512 = vunpack.c.h.b16 %v1462
        %v1513 = vunpack.c.l.b16 %v1463
        %v1514 = vunpack.c.h.b16 %v1463
        %v1515 = vunpack.c.l.b16 %v1464
        %v1516 = vunpack.c.h.b16 %v1464
        %v1517 = vunpack.c.l.b16 %v1465
        %v1518 = vunpack.c.h.b16 %v1465
        %v1519 = vunpack.c.l.b16 %v1466
        %v1520 = vunpack.c.h.b16 %v1466
        %v1521 = vunpack.c.l.b16 %v1467
        %v1522 = vunpack.c.h.b16 %v1467
        %v1523 = vunpack.c.l.b16 %v1468
        %v1524 = vunpack.c.h.b16 %v1468
        %v1525 = vunpack.c.l.b16 %v1469
        %v1526 = vunpack.c.h.b16 %v1469
        %v1527 = vunpack.c.l.b16 %v1470
        %v1528 = vunpack.c.h.b16 %v1470
        %v1529 = vunpack.c.l.b16 %v1471
        %v1530 = vunpack.c.h.b16 %v1471
        %v1531 = vunpack.c.l.b16 %v1472
        %v1532 = vunpack.c.h.b16 %v1472
        %v1533 = vpack.c.b16 %v1503, %v1501
        %v1534 = vpack.c.b16 %v1504, %v1502
        %v1535 = vpack.c.b16 %v1507, %v1505
        %v1536 = vpack.c.b16 %v1508, %v1506
        %v1537 = vpack.c.b16 %v1511, %v1509
        %v1538 = vpack.c.b16 %v1512, %v1510
        %v1539 = vpack.c.b16 %v1515, %v1513
        %v1540 = vpack.c.b16 %v1516, %v1514
        %v1541 = vpack.c.b16 %v1519, %v1517
        %v1542 = vpack.c.b16 %v1520, %v1518
        %v1543 = vpack.c.b16 %v1523, %v1521
        %v1544 = vpack.c.b16 %v1524, %v1522
        %v1545 = vpack.c.b16 %v1527, %v1525
        %v1546 = vpack.c.b16 %v1528, %v1526
        %v1547 = vpack.c.b16 %v1531, %v1529
        %v1548 = vpack.c.b16 %v1532, %v1530
        %1565 = vmatprep.subr.bf16.mxu0 %v1548
        %1566 = vmatpush1.bf16.msra.mxu0 %v1547
        %1567 = vmatprep.subr.bf16.mxu0 %v1546
        %1568 = vmatpush1.bf16.msra.mxu0 %v1545
        %1569 = vmatprep.subr.bf16.mxu0 %v1544
        %1570 = vmatpush1.bf16.msra.mxu0 %v1543
        %1571 = vmatprep.subr.bf16.mxu0 %v1542
        %1572 = vmatpush1.bf16.msra.mxu0 %v1541
        %1573 = vmatprep.subr.bf16.mxu0 %v1540
        %1574 = vmatpush1.bf16.msra.mxu0 %v1539
        %1575 = vmatprep.subr.bf16.mxu0 %v1538
        %1576 = vmatpush1.bf16.msra.mxu0 %v1537
        %1577 = vmatprep.subr.bf16.mxu0 %v1536
        %1578 = vmatpush1.bf16.msra.mxu0 %v1535
        %1579 = vmatprep.subr.bf16.mxu0 %v1534
        %1580 = vmatpush1.bf16.msra.mxu0 %v1533
        %1581 = vmatprep.subr.bf16.mxu0 0
        %1582 = vmatpush2.bf16.msra.mxu0 0
        %1583 = vmatprep.subr.bf16.mxu0 0
        %1584 = vmatpush2.bf16.msra.mxu0 0
        %1585 = vmatprep.subr.bf16.mxu0 0
        %1586 = vmatpush2.bf16.msra.mxu0 0
        %1587 = vmatprep.subr.bf16.mxu0 0
        %1588 = vmatpush2.bf16.msra.mxu0 0
        %1589 = vmatprep.subr.bf16.mxu0 0
        %1590 = vmatpush2.bf16.msra.mxu0 0
        %1591 = vmatprep.subr.bf16.mxu0 0
        %1592 = vmatpush2.bf16.msra.mxu0 0
        %1593 = vmatprep.subr.bf16.mxu0 0
        %1594 = vmatpush2.bf16.msra.mxu0 0
        %1595 = vmatprep.subr.bf16.mxu0 0
        %1596 = vmatpush2.bf16.msra.mxu0 0
        %1597 = vmatprep.mubr.bf16.mxu0 0
        %1598 = vmatmul.mubr.bf16.gmra.mxu0 %v1456
        %v1599 = vpop.f32.mrf.mxu0
        %v1600 = vadd.f32 %v1478, %v1599
        %v1601 = vpop.f32.mrf.mxu0
        %v1602 = vadd.f32 %v1482, %v1601
        %v1603 = vpop.f32.mrf.mxu0
        %v1604 = vadd.f32 %v1478, %v1603
        %v1605 = vpop.f32.mrf.mxu0
        %v1606 = vadd.f32 %v1482, %v1605
        %1607 = vdwg.mxu0
        %v1608 = vmax.f32 %v1600, 0.0
        %v1609 = vmax.f32 %v1602, 0.0
        %v1610 = vmax.f32 %v1604, 0.0
        %v1611 = vmax.f32 %v1606, 0.0
        %v1612 = vpack.c.bf16 %v1610, %v1608
        %v1613 = vpack.c.bf16 %v1611, %v1609
        %v1614 = vld [vmem:[#allocation15] sm:$0xf]
        %v1615 = vld [vmem:[#allocation15 + $0x4] sm:$0xf]
        %v1616 = vld [vmem:[#allocation15 + $0x8] sm:$0xf]
        %v1617 = vld [vmem:[#allocation15 + $0xc] sm:$0xf]
        %v1618 = vld [vmem:[#allocation15 + $0x10] sm:$0xf]
        %v1619 = vld [vmem:[#allocation15 + $0x14] sm:$0xf]
        %v1620 = vld [vmem:[#allocation15 + $0x18] sm:$0xf]
        %v1621 = vld [vmem:[#allocation15 + $0x1c] sm:$0xf]
        %v1622 = vld [vmem:[#allocation15 + $0x20] sm:$0xf]
        %v1623 = vld [vmem:[#allocation15 + $0x24] sm:$0xf]
        %v1624 = vld [vmem:[#allocation15 + $0x28] sm:$0xf]
        %v1625 = vld [vmem:[#allocation15 + $0x2c] sm:$0xf]
        %v1626 = vld [vmem:[#allocation15 + $0x30] sm:$0xf]
        %v1627 = vld [vmem:[#allocation15 + $0x34] sm:$0xf]
        %v1628 = vld [vmem:[#allocation15 + $0x38] sm:$0xf]
        %v1629 = vld [vmem:[#allocation15 + $0x3c] sm:$0xf]
        %v1630 = vld [vmem:[#allocation15 + $0x40] sm:$0xf]
        %v1631 = vld [vmem:[#allocation15 + $0x44] sm:$0xf]
        %v1632 = vld [vmem:[#allocation15 + $0x48] sm:$0xf]
        %v1633 = vld [vmem:[#allocation15 + $0x4c] sm:$0xf]
        %v1634 = vld [vmem:[#allocation15 + $0x50] sm:$0xf]
        %v1635 = vld [vmem:[#allocation15 + $0x54] sm:$0xf]
        %v1636 = vld [vmem:[#allocation15 + $0x58] sm:$0xf]
        %v1637 = vld [vmem:[#allocation15 + $0x5c] sm:$0xf]
        %v1638 = vld [vmem:[#allocation15 + $0x60] sm:$0xf]
        %v1639 = vld [vmem:[#allocation15 + $0x64] sm:$0xf]
        %v1640 = vld [vmem:[#allocation15 + $0x68] sm:$0xf]
        %v1641 = vld [vmem:[#allocation15 + $0x6c] sm:$0xf]
        %v1642 = vld [vmem:[#allocation15 + $0x70] sm:$0xf]
        %v1643 = vld [vmem:[#allocation15 + $0x74] sm:$0xf]
        %v1644 = vld [vmem:[#allocation15 + $0x78] sm:$0xf]
        %v1645 = vld [vmem:[#allocation15 + $0x7c] sm:$0xf]
        %v1646 = vld [vmem:[#allocation16] sm:$0x1]
        %v1648 = vlaneseq
        %v1649 = vshrl.u32 %v1648, 7
        %v1650 = vsub.s32 0, %v1649
        %v1651 = vrot.slane %v1646, %v1650
        %v1685 = vunpack.c.l.b16 %v1614
        %v1686 = vunpack.c.l.b16 %v1615
        %v1687 = vunpack.c.l.b16 %v1616
        %v1688 = vunpack.c.l.b16 %v1617
        %v1689 = vunpack.c.l.b16 %v1618
        %v1690 = vunpack.c.l.b16 %v1619
        %v1691 = vunpack.c.l.b16 %v1620
        %v1692 = vunpack.c.l.b16 %v1621
        %v1693 = vunpack.c.l.b16 %v1622
        %v1694 = vunpack.c.l.b16 %v1623
        %v1695 = vunpack.c.l.b16 %v1624
        %v1696 = vunpack.c.l.b16 %v1625
        %v1697 = vunpack.c.l.b16 %v1626
        %v1698 = vunpack.c.l.b16 %v1627
        %v1699 = vunpack.c.l.b16 %v1628
        %v1700 = vunpack.c.l.b16 %v1629
        %v1701 = vunpack.c.l.b16 %v1630
        %v1702 = vunpack.c.l.b16 %v1631
        %v1703 = vunpack.c.l.b16 %v1632
        %v1704 = vunpack.c.l.b16 %v1633
        %v1705 = vunpack.c.l.b16 %v1634
        %v1706 = vunpack.c.l.b16 %v1635
        %v1707 = vunpack.c.l.b16 %v1636
        %v1708 = vunpack.c.l.b16 %v1637
        %v1709 = vunpack.c.l.b16 %v1638
        %v1710 = vunpack.c.l.b16 %v1639
        %v1711 = vunpack.c.l.b16 %v1640
        %v1712 = vunpack.c.l.b16 %v1641
        %v1713 = vunpack.c.l.b16 %v1642
        %v1714 = vunpack.c.l.b16 %v1643
        %v1715 = vunpack.c.l.b16 %v1644
        %v1716 = vunpack.c.l.b16 %v1645
        %v1717 = vpack.c.b16 %v1686, %v1685
        %v1718 = vpack.c.b16 %v1688, %v1687
        %v1719 = vpack.c.b16 %v1690, %v1689
        %v1720 = vpack.c.b16 %v1692, %v1691
        %v1721 = vpack.c.b16 %v1694, %v1693
        %v1722 = vpack.c.b16 %v1696, %v1695
        %v1723 = vpack.c.b16 %v1698, %v1697
        %v1724 = vpack.c.b16 %v1700, %v1699
        %v1725 = vpack.c.b16 %v1702, %v1701
        %v1726 = vpack.c.b16 %v1704, %v1703
        %v1727 = vpack.c.b16 %v1706, %v1705
        %v1728 = vpack.c.b16 %v1708, %v1707
        %v1729 = vpack.c.b16 %v1710, %v1709
        %v1730 = vpack.c.b16 %v1712, %v1711
        %v1731 = vpack.c.b16 %v1714, %v1713
        %v1732 = vpack.c.b16 %v1716, %v1715
        %1749 = vmatprep.subr.bf16.mxu0 0
        %1750 = vmatpush1.bf16.msra.mxu0 %v1724
        %1751 = vmatprep.subr.bf16.mxu0 0
        %1752 = vmatpush1.bf16.msra.mxu0 %v1723
        %1753 = vmatprep.subr.bf16.mxu0 0
        %1754 = vmatpush1.bf16.msra.mxu0 %v1722
        %1755 = vmatprep.subr.bf16.mxu0 0
        %1756 = vmatpush1.bf16.msra.mxu0 %v1721
        %1757 = vmatprep.subr.bf16.mxu0 0
        %1758 = vmatpush1.bf16.msra.mxu0 %v1720
        %1759 = vmatprep.subr.bf16.mxu0 0
        %1760 = vmatpush1.bf16.msra.mxu0 %v1719
        %1761 = vmatprep.subr.bf16.mxu0 0
        %1762 = vmatpush1.bf16.msra.mxu0 %v1718
        %1763 = vmatprep.subr.bf16.mxu0 0
        %1764 = vmatpush1.bf16.msra.mxu0 %v1717
        %1765 = vmatprep.subr.bf16.mxu0 0
        %1766 = vmatpush2.bf16.msra.mxu0 %v1732
        %1767 = vmatprep.subr.bf16.mxu0 0
        %1768 = vmatpush2.bf16.msra.mxu0 %v1731
        %1769 = vmatprep.subr.bf16.mxu0 0
        %1770 = vmatpush2.bf16.msra.mxu0 %v1730
        %1771 = vmatprep.subr.bf16.mxu0 0
        %1772 = vmatpush2.bf16.msra.mxu0 %v1729
        %1773 = vmatprep.subr.bf16.mxu0 0
        %1774 = vmatpush2.bf16.msra.mxu0 %v1728
        %1775 = vmatprep.subr.bf16.mxu0 0
        %1776 = vmatpush2.bf16.msra.mxu0 %v1727
        %1777 = vmatprep.subr.bf16.mxu0 0
        %1778 = vmatpush2.bf16.msra.mxu0 %v1726
        %1779 = vmatprep.subr.bf16.mxu0 0
        %1780 = vmatpush2.bf16.msra.mxu0 %v1725
        %1781 = vmatprep.mubr.bf16.mxu0 %v1613
        %1782 = vmatmul.mubr.bf16.gmra.mxu0 %v1612
        %v1783 = vpop.f32.mrf.mxu0
        %v1784 = vadd.f32 %v1651, %v1783
        %v1785 = vpop.f32.mrf.mxu0
        %v1786 = vpop.f32.mrf.mxu0
        %v1787 = vadd.f32 %v1651, %v1786
        %v1788 = vpop.f32.mrf.mxu0
        %1789 = vdwg.mxu0
        %v1790 = vadd.f32 %v1454, %v1784
        %v1791 = vadd.f32 %v1455, %v1787
        %v1792 = vld [vmem:[#allocation19] sm:$0x1]
        %v1793 = vld [vmem:[#allocation21] sm:$0x1]
        %1794 = vadd.xlane.f32.xlu0 %v1790
        %v1795 = vpop.xlane.xlu0 %1794
        %1796 = vadd.xlane.f32.xlu0 %v1791
        %v1797 = vpop.xlane.xlu0 %1796
        %v1798 = vmul.f32 %v1795, %v1421
        %v1799 = vmul.f32 %v1797, %v1421
        %v1800 = vsub.f32 %v1790, %v1798
        %v1801 = vsub.f32 %v1791, %v1799
        %v1802 = vmul.f32 %v1800, %v1800
        %v1803 = vmul.f32 %v1801, %v1801
        %1804 = vadd.xlane.f32.xlu0 %v1802
        %v1805 = vpop.xlane.xlu0 %1804
        %1806 = vadd.xlane.f32.xlu0 %v1803
        %v1807 = vpop.xlane.xlu0 %1806
        %v1808 = vmul.f32 %v1805, %v1421
        %v1809 = vmul.f32 %v1807, %v1421
        %v1810 = vadd.f32 %v1808, 1e-05
        %v1811 = vadd.f32 %v1809, 1e-05
        %v1812 = vrsqrt.pop %v1810
        %v1813 = vrsqrt.pop %v1811
        %v1814 = vmul.f32 %v1800, %v1812
        %v1815 = vmul.f32 %v1801, %v1813
        %v1817 = vlaneseq
        %v1818 = vshrl.u32 %v1817, 7
        %v1819 = vsub.s32 0, %v1818
        %v1820 = vrot.slane %v1792, %v1819
        %v1822 = vmul.f32 %v1814, %v1820
        %v1823 = vmul.f32 %v1815, %v1820
        %v1825 = vlaneseq
        %v1826 = vshrl.u32 %v1825, 7
        %v1827 = vsub.s32 0, %v1826
        %v1828 = vrot.slane %v1793, %v1827
        %v1830 = vadd.f32 %v1822, %v1828
        %v1831 = vadd.f32 %v1823, %v1828
        %v1832 = vpack.c.bf16 %v1831, %v1830
        %s1833 = scalar_lea.vmem [#allocation7], 192
        %v1834 = vld [vmem:[%s1833] sm:$0xff]
        %v1835 = vld [vmem:[%s1833 + $0x8] sm:$0xf]
        %v1836 = vld [vmem:[%s1833 + $0xc] sm:$0xff]
        %v1837 = vld [vmem:[%s1833 + $0x14] sm:$0xf]
        %v1838 = vld [vmem:[%s1833 + $0x18] sm:$0xff]
        %v1839 = vld [vmem:[%s1833 + $0x20] sm:$0xf]
        %v1840 = vld [vmem:[%s1833 + $0x24] sm:$0xff]
        %v1841 = vld [vmem:[%s1833 + $0x2c] sm:$0xf]
        %v1842 = vld [vmem:[%s1833 + $0x30] sm:$0xff]
        %v1843 = vld [vmem:[%s1833 + $0x38] sm:$0xf]
        %v1844 = vld [vmem:[%s1833 + $0x3c] sm:$0xff]
        %v1845 = vld [vmem:[%s1833 + $0x44] sm:$0xf]
        %v1846 = vld [vmem:[%s1833 + $0x48] sm:$0xff]
        %v1847 = vld [vmem:[%s1833 + $0x50] sm:$0xf]
        %v1848 = vld [vmem:[%s1833 + $0x54] sm:$0xff]
        %v1849 = vld [vmem:[%s1833 + $0x5c] sm:$0xf]
        %v1850 = vld [vmem:[%s1833 + $0x60] sm:$0xff]
        %v1851 = vld [vmem:[%s1833 + $0x68] sm:$0xf]
        %v1852 = vld [vmem:[%s1833 + $0x6c] sm:$0xff]
        %v1853 = vld [vmem:[%s1833 + $0x74] sm:$0xf]
        %v1854 = vld [vmem:[%s1833 + $0x78] sm:$0xff]
        %v1855 = vld [vmem:[%s1833 + $0x80] sm:$0xf]
        %v1856 = vld [vmem:[%s1833 + $0x84] sm:$0xff]
        %v1857 = vld [vmem:[%s1833 + $0x8c] sm:$0xf]
        %v1858 = vld [vmem:[%s1833 + $0x90] sm:$0xff]
        %v1859 = vld [vmem:[%s1833 + $0x98] sm:$0xf]
        %v1860 = vld [vmem:[%s1833 + $0x9c] sm:$0xff]
        %v1861 = vld [vmem:[%s1833 + $0xa4] sm:$0xf]
        %v1862 = vld [vmem:[%s1833 + $0xa8] sm:$0xff]
        %v1863 = vld [vmem:[%s1833 + $0xb0] sm:$0xf]
        %v1864 = vld [vmem:[%s1833 + $0xb4] sm:$0xff]
        %v1865 = vld [vmem:[%s1833 + $0xbc] sm:$0xf]
        %s1866 = scalar_lea.vmem [#allocation9], 3
        %v1867 = vld [vmem:[%s1866] sm:$0x7]
        %v1869 = vlaneseq
        %v1870 = vshrl.u32 %v1869, 7
        %v1871 = vsub.s32 0, %v1870
        %v1872 = vrot.slane %v1867, %v1871
        %v1873 = vlaneseq
        %v1874 = vshrl.u32 %v1873, 7
        %v1875 = vsub.s32 1, %v1874
        %v1876 = vrot.slane %v1867, %v1875
        %v1877 = vlaneseq
        %v1878 = vshrl.u32 %v1877, 7
        %v1879 = vsub.s32 2, %v1878
        %v1880 = vrot.slane %v1867, %v1879
        %v1916 = vunpack.c.l.b16 %v1834
        %v1917 = vunpack.c.h.b16 %v1834
        %v1918 = vunpack.c.l.b16 %v1835
        %v1919 = vunpack.c.l.b16 %v1836
        %v1920 = vunpack.c.h.b16 %v1836
        %v1921 = vunpack.c.l.b16 %v1837
        %v1922 = vunpack.c.l.b16 %v1838
        %v1923 = vunpack.c.h.b16 %v1838
        %v1924 = vunpack.c.l.b16 %v1839
        %v1925 = vunpack.c.l.b16 %v1840
        %v1926 = vunpack.c.h.b16 %v1840
        %v1927 = vunpack.c.l.b16 %v1841
        %v1928 = vunpack.c.l.b16 %v1842
        %v1929 = vunpack.c.h.b16 %v1842
        %v1930 = vunpack.c.l.b16 %v1843
        %v1931 = vunpack.c.l.b16 %v1844
        %v1932 = vunpack.c.h.b16 %v1844
        %v1933 = vunpack.c.l.b16 %v1845
        %v1934 = vunpack.c.l.b16 %v1846
        %v1935 = vunpack.c.h.b16 %v1846
        %v1936 = vunpack.c.l.b16 %v1847
        %v1937 = vunpack.c.l.b16 %v1848
        %v1938 = vunpack.c.h.b16 %v1848
        %v1939 = vunpack.c.l.b16 %v1849
        %v1940 = vunpack.c.l.b16 %v1850
        %v1941 = vunpack.c.h.b16 %v1850
        %v1942 = vunpack.c.l.b16 %v1851
        %v1943 = vunpack.c.l.b16 %v1852
        %v1944 = vunpack.c.h.b16 %v1852
        %v1945 = vunpack.c.l.b16 %v1853
        %v1946 = vunpack.c.l.b16 %v1854
        %v1947 = vunpack.c.h.b16 %v1854
        %v1948 = vunpack.c.l.b16 %v1855
        %v1949 = vunpack.c.l.b16 %v1856
        %v1950 = vunpack.c.h.b16 %v1856
        %v1951 = vunpack.c.l.b16 %v1857
        %v1952 = vunpack.c.l.b16 %v1858
        %v1953 = vunpack.c.h.b16 %v1858
        %v1954 = vunpack.c.l.b16 %v1859
        %v1955 = vunpack.c.l.b16 %v1860
        %v1956 = vunpack.c.h.b16 %v1860
        %v1957 = vunpack.c.l.b16 %v1861
        %v1958 = vunpack.c.l.b16 %v1862
        %v1959 = vunpack.c.h.b16 %v1862
        %v1960 = vunpack.c.l.b16 %v1863
        %v1961 = vunpack.c.l.b16 %v1864
        %v1962 = vunpack.c.h.b16 %v1864
        %v1963 = vunpack.c.l.b16 %v1865
        %v1964 = vpack.c.b16 %v1919, %v1916
        %v1965 = vpack.c.b16 %v1920, %v1917
        %v1966 = vpack.c.b16 %v1921, %v1918
        %v1967 = vpack.c.b16 %v1925, %v1922
        %v1968 = vpack.c.b16 %v1926, %v1923
        %v1969 = vpack.c.b16 %v1927, %v1924
        %v1970 = vpack.c.b16 %v1931, %v1928
        %v1971 = vpack.c.b16 %v1932, %v1929
        %v1972 = vpack.c.b16 %v1933, %v1930
        %v1973 = vpack.c.b16 %v1937, %v1934
        %v1974 = vpack.c.b16 %v1938, %v1935
        %v1975 = vpack.c.b16 %v1939, %v1936
        %v1976 = vpack.c.b16 %v1943, %v1940
        %v1977 = vpack.c.b16 %v1944, %v1941
        %v1978 = vpack.c.b16 %v1945, %v1942
        %v1979 = vpack.c.b16 %v1949, %v1946
        %v1980 = vpack.c.b16 %v1950, %v1947
        %v1981 = vpack.c.b16 %v1951, %v1948
        %v1982 = vpack.c.b16 %v1955, %v1952
        %v1983 = vpack.c.b16 %v1956, %v1953
        %v1984 = vpack.c.b16 %v1957, %v1954
        %v1985 = vpack.c.b16 %v1961, %v1958
        %v1986 = vpack.c.b16 %v1962, %v1959
        %v1987 = vpack.c.b16 %v1963, %v1960
        %2012 = vmatprep.subr.bf16.mxu0 %v1986
        %2013 = vmatpush1.bf16.msra.mxu0 %v1985
        %2014 = vmatprep.subr.bf16.mxu0 %v1983
        %2015 = vmatpush1.bf16.msra.mxu0 %v1982
        %2016 = vmatprep.subr.bf16.mxu0 %v1980
        %2017 = vmatpush1.bf16.msra.mxu0 %v1979
        %2018 = vmatprep.subr.bf16.mxu0 %v1977
        %2019 = vmatpush1.bf16.msra.mxu0 %v1976
        %2020 = vmatprep.subr.bf16.mxu0 %v1974
        %2021 = vmatpush1.bf16.msra.mxu0 %v1973
        %2022 = vmatprep.subr.bf16.mxu0 %v1971
        %2023 = vmatpush1.bf16.msra.mxu0 %v1970
        %2024 = vmatprep.subr.bf16.mxu0 %v1968
        %2025 = vmatpush1.bf16.msra.mxu0 %v1967
        %2026 = vmatprep.subr.bf16.mxu0 %v1965
        %2027 = vmatpush1.bf16.msra.mxu0 %v1964
        %2028 = vmatprep.subr.bf16.mxu0 0
        %2029 = vmatpush2.bf16.msra.mxu0 0
        %2030 = vmatprep.subr.bf16.mxu0 0
        %2031 = vmatpush2.bf16.msra.mxu0 0
        %2032 = vmatprep.subr.bf16.mxu0 0
        %2033 = vmatpush2.bf16.msra.mxu0 0
        %2034 = vmatprep.subr.bf16.mxu0 0
        %2035 = vmatpush2.bf16.msra.mxu0 0
        %2036 = vmatprep.subr.bf16.mxu0 0
        %2037 = vmatpush2.bf16.msra.mxu0 0
        %2038 = vmatprep.subr.bf16.mxu0 0
        %2039 = vmatpush2.bf16.msra.mxu0 0
        %2040 = vmatprep.subr.bf16.mxu0 0
        %2041 = vmatpush2.bf16.msra.mxu0 0
        %2042 = vmatprep.subr.bf16.mxu0 0
        %2043 = vmatpush2.bf16.msra.mxu0 0
        %2044 = vmatprep.mubr.bf16.mxu0 0
        %2045 = vmatmul.mubr.bf16.gmra.mxu0 %v1832
        %v2046 = vpop.f32.mrf.mxu0
        %v2047 = vadd.f32 %v1872, %v2046
        %v2048 = vpop.f32.mrf.mxu0
        %v2049 = vadd.f32 %v1876, %v2048
        %v2050 = vpop.f32.mrf.mxu0
        %v2051 = vadd.f32 %v1872, %v2050
        %v2052 = vpop.f32.mrf.mxu0
        %v2053 = vadd.f32 %v1876, %v2052
        %2054 = vdwg.mxu0
        %2055 = vmatprep.subr.bf16.mxu0 0
        %2056 = vmatpush1.bf16.msra.mxu0 %v1987
        %2057 = vmatprep.subr.bf16.mxu0 0
        %2058 = vmatpush1.bf16.msra.mxu0 %v1984
        %2059 = vmatprep.subr.bf16.mxu0 0
        %2060 = vmatpush1.bf16.msra.mxu0 %v1981
        %2061 = vmatprep.subr.bf16.mxu0 0
        %2062 = vmatpush1.bf16.msra.mxu0 %v1978
        %2063 = vmatprep.subr.bf16.mxu0 0
        %2064 = vmatpush1.bf16.msra.mxu0 %v1975
        %2065 = vmatprep.subr.bf16.mxu0 0
        %2066 = vmatpush1.bf16.msra.mxu0 %v1972
        %2067 = vmatprep.subr.bf16.mxu0 0
        %2068 = vmatpush1.bf16.msra.mxu0 %v1969
        %2069 = vmatprep.subr.bf16.mxu0 0
        %2070 = vmatpush1.bf16.msra.mxu0 %v1966
        %2071 = vmatprep.subr.bf16.mxu0 0
        %2072 = vmatpush2.bf16.msra.mxu0 0
        %2073 = vmatprep.subr.bf16.mxu0 0
        %2074 = vmatpush2.bf16.msra.mxu0 0
        %2075 = vmatprep.subr.bf16.mxu0 0
        %2076 = vmatpush2.bf16.msra.mxu0 0
        %2077 = vmatprep.subr.bf16.mxu0 0
        %2078 = vmatpush2.bf16.msra.mxu0 0
        %2079 = vmatprep.subr.bf16.mxu0 0
        %2080 = vmatpush2.bf16.msra.mxu0 0
        %2081 = vmatprep.subr.bf16.mxu0 0
        %2082 = vmatpush2.bf16.msra.mxu0 0
        %2083 = vmatprep.subr.bf16.mxu0 0
        %2084 = vmatpush2.bf16.msra.mxu0 0
        %2085 = vmatprep.subr.bf16.mxu0 0
        %2086 = vmatpush2.bf16.msra.mxu0 0
        %2087 = vmatprep.mubr.bf16.mxu0 0
        %2088 = vmatmul.mubr.bf16.gmra.mxu0 %v1832
        %v2089 = vpop.f32.mrf.mxu0
        %v2090 = vadd.f32 %v1880, %v2089
        %v2091 = vpop.f32.mrf.mxu0
        %v2092 = vpop.f32.mrf.mxu0
        %v2093 = vadd.f32 %v1880, %v2092
        %v2094 = vpop.f32.mrf.mxu0
        %2095 = vdwg.mxu0
        %v2096 = vpack.c.bf16 %v2051, %v2047
        %v2097 = vpack.c.bf16 %v2053, %v2049
        %v2098 = vpack.c.bf16 %v2093, %v2090
        %v2099 = vmul.bf16 %v2097, %v1130
        %v2100 = vmul.bf16 %v2097, %v1131
        %v2101 = vmul.bf16 %v2097, %v1132
        %v2102 = vmul.bf16 %v2097, %v1133
        %v2103 = vmul.bf16 %v2097, %v1134
        %v2104 = vmul.bf16 %v2097, %v1135
        %v2105 = vmul.bf16 %v2097, %v1136
        %v2106 = vmul.bf16 %v2097, %v1137
        %v2107 = vmul.bf16 %v2098, %v1130
        %v2108 = vmul.bf16 %v2098, %v1131
        %v2109 = vmul.bf16 %v2098, %v1132
        %v2110 = vmul.bf16 %v2098, %v1133
        %v2111 = vmul.bf16 %v2098, %v1134
        %v2112 = vmul.bf16 %v2098, %v1135
        %v2113 = vmul.bf16 %v2098, %v1136
        %v2114 = vmul.bf16 %v2098, %v1137
        %2115 = vmatprep.subr.bf16.mxu0 0
        %2116 = vmatpush1.bf16.xpose.msra.mxu0 %v2106
        %2117 = vmatprep.subr.bf16.mxu0 0
        %2118 = vmatpush1.bf16.xpose.msra.mxu0 %v2105
        %2119 = vmatprep.subr.bf16.mxu0 0
        %2120 = vmatpush1.bf16.xpose.msra.mxu0 %v2104
        %2121 = vmatprep.subr.bf16.mxu0 0
        %2122 = vmatpush1.bf16.xpose.msra.mxu0 %v2103
        %2123 = vmatprep.subr.bf16.mxu0 0
        %2124 = vmatpush1.bf16.xpose.msra.mxu0 %v2102
        %2125 = vmatprep.subr.bf16.mxu0 0
        %2126 = vmatpush1.bf16.xpose.msra.mxu0 %v2101
        %2127 = vmatprep.subr.bf16.mxu0 0
        %2128 = vmatpush1.bf16.xpose.msra.mxu0 %v2100
        %2129 = vmatprep.subr.bf16.mxu0 0
        %2130 = vmatpush1.bf16.xpose.msra.mxu0 %v2099
        %2131 = vmatprep.subr.bf16.mxu0 0
        %2132 = vmatpush2.bf16.xpose.msra.mxu0 0
        %2133 = vmatprep.subr.bf16.mxu0 0
        %2134 = vmatpush2.bf16.xpose.msra.mxu0 0
        %2135 = vmatprep.subr.bf16.mxu0 0
        %2136 = vmatpush2.bf16.xpose.msra.mxu0 0
        %2137 = vmatprep.subr.bf16.mxu0 0
        %2138 = vmatpush2.bf16.xpose.msra.mxu0 0
        %2139 = vmatprep.subr.bf16.mxu0 0
        %2140 = vmatpush2.bf16.xpose.msra.mxu0 0
        %2141 = vmatprep.subr.bf16.mxu0 0
        %2142 = vmatpush2.bf16.xpose.msra.mxu0 0
        %2143 = vmatprep.subr.bf16.mxu0 0
        %2144 = vmatpush2.bf16.xpose.msra.mxu0 0
        %2145 = vmatprep.subr.bf16.mxu0 0
        %2146 = vmatpush2.bf16.xpose.msra.mxu0 0
        %2147 = vmatprep.mubr.bf16.mxu0 0
        %2148 = vmatmul.mubr.bf16.gmra.mxu0 %v2096
        %v2149 = vpop.f32.mrf.mxu0
        %v2150 = vadd.f32 0.0, %v2149
        %v2151 = vpop.f32.mrf.mxu0
        %v2152 = vpop.f32.mrf.mxu0
        %v2153 = vadd.f32 0.0, %v2152
        %v2154 = vpop.f32.mrf.mxu0
        %2155 = vdwg.mxu0
        %2156 = vmax.xlane.f32.xlu0 %v2150
        %v2157 = vpop.xlane.xlu0 %2156
        %2158 = vmax.xlane.f32.xlu0 %v2153
        %v2159 = vpop.xlane.xlu0 %2158
        %v2160 = vsub.f32 %v2150, %v2157
        %v2161 = vsub.f32 %v2153, %v2159
        %v2162 = vmul.f32 %v2160, 1.442695
        %v2163 = vpow.pop %v2162
        %v2164 = vmul.f32 %v2161, 1.442695
        %v2165 = vpow.pop %v2164
        %v2166 = vpack.c.bf16 %v2165, %v2163
        %2167 = vmatprep.subr.bf16.mxu0 0
        %2168 = vmatpush1.bf16.msra.mxu0 %v2114
        %2169 = vmatprep.subr.bf16.mxu0 0
        %2170 = vmatpush1.bf16.msra.mxu0 %v2113
        %2171 = vmatprep.subr.bf16.mxu0 0
        %2172 = vmatpush1.bf16.msra.mxu0 %v2112
        %2173 = vmatprep.subr.bf16.mxu0 0
        %2174 = vmatpush1.bf16.msra.mxu0 %v2111
        %2175 = vmatprep.subr.bf16.mxu0 0
        %2176 = vmatpush1.bf16.msra.mxu0 %v2110
        %2177 = vmatprep.subr.bf16.mxu0 0
        %2178 = vmatpush1.bf16.msra.mxu0 %v2109
        %2179 = vmatprep.subr.bf16.mxu0 0
        %2180 = vmatpush1.bf16.msra.mxu0 %v2108
        %2181 = vmatprep.subr.bf16.mxu0 0
        %2182 = vmatpush1.bf16.msra.mxu0 %v2107
        %2183 = vmatprep.subr.bf16.mxu0 0
        %2184 = vmatpush2.bf16.msra.mxu0 0
        %2185 = vmatprep.subr.bf16.mxu0 0
        %2186 = vmatpush2.bf16.msra.mxu0 0
        %2187 = vmatprep.subr.bf16.mxu0 0
        %2188 = vmatpush2.bf16.msra.mxu0 0
        %2189 = vmatprep.subr.bf16.mxu0 0
        %2190 = vmatpush2.bf16.msra.mxu0 0
        %2191 = vmatprep.subr.bf16.mxu0 0
        %2192 = vmatpush2.bf16.msra.mxu0 0
        %2193 = vmatprep.subr.bf16.mxu0 0
        %2194 = vmatpush2.bf16.msra.mxu0 0
        %2195 = vmatprep.subr.bf16.mxu0 0
        %2196 = vmatpush2.bf16.msra.mxu0 0
        %2197 = vmatprep.subr.bf16.mxu0 0
        %2198 = vmatpush2.bf16.msra.mxu0 0
        %2199 = vmatprep.mubr.bf16.mxu0 0
        %2200 = vmatmul.mubr.bf16.gmra.mxu0 %v2166
        %v2201 = vpop.f32.mrf.mxu0
        %v2202 = vadd.f32 0.0, %v2201
        %v2203 = vpop.f32.mrf.mxu0
        %v2204 = vpop.f32.mrf.mxu0
        %v2205 = vadd.f32 0.0, %v2204
        %v2206 = vpop.f32.mrf.mxu0
        %2207 = vdwg.mxu0
        %2208 = vmatprep.subr.bf16.mxu0 0
        %2209 = vmatpush1.bf16.msra.mxu0 %v1137
        %2210 = vmatprep.subr.bf16.mxu0 0
        %2211 = vmatpush1.bf16.msra.mxu0 %v1136
        %2212 = vmatprep.subr.bf16.mxu0 0
        %2213 = vmatpush1.bf16.msra.mxu0 %v1135
        %2214 = vmatprep.subr.bf16.mxu0 0
        %2215 = vmatpush1.bf16.msra.mxu0 %v1134
        %2216 = vmatprep.subr.bf16.mxu0 0
        %2217 = vmatpush1.bf16.msra.mxu0 %v1133
        %2218 = vmatprep.subr.bf16.mxu0 0
        %2219 = vmatpush1.bf16.msra.mxu0 %v1132
        %2220 = vmatprep.subr.bf16.mxu0 0
        %2221 = vmatpush1.bf16.msra.mxu0 %v1131
        %2222 = vmatprep.subr.bf16.mxu0 0
        %2223 = vmatpush1.bf16.msra.mxu0 %v1130
        %2224 = vmatprep.subr.bf16.mxu0 0
        %2225 = vmatpush2.bf16.msra.mxu0 0
        %2226 = vmatprep.subr.bf16.mxu0 0
        %2227 = vmatpush2.bf16.msra.mxu0 0
        %2228 = vmatprep.subr.bf16.mxu0 0
        %2229 = vmatpush2.bf16.msra.mxu0 0
        %2230 = vmatprep.subr.bf16.mxu0 0
        %2231 = vmatpush2.bf16.msra.mxu0 0
        %2232 = vmatprep.subr.bf16.mxu0 0
        %2233 = vmatpush2.bf16.msra.mxu0 0
        %2234 = vmatprep.subr.bf16.mxu0 0
        %2235 = vmatpush2.bf16.msra.mxu0 0
        %2236 = vmatprep.subr.bf16.mxu0 0
        %2237 = vmatpush2.bf16.msra.mxu0 0
        %2238 = vmatprep.subr.bf16.mxu0 0
        %2239 = vmatpush2.bf16.msra.mxu0 0
        %2240 = vmatprep.mubr.bf16.mxu0 0
        %2241 = vmatmul.mubr.bf16.gmra.mxu0 %v2166
        %v2242 = vpop.f32.mrf.mxu0
        %v2243 = vadd.f32 1e-20, %v2242
        %v2244 = vpop.f32.mrf.mxu0
        %v2245 = vpop.f32.mrf.mxu0
        %v2246 = vadd.f32 1e-20, %v2245
        %v2247 = vpop.f32.mrf.mxu0
        %2248 = vdwg.mxu0
        %v2249 = vrcp.pop %v2243
        %v2250 = vrcp.pop %v2246
        %v2251 = vmul.f32 %v2202, %v2249
        %v2252 = vmul.f32 %v2205, %v2250
        %v2253 = vpack.c.bf16 %v2252, %v2251
        %s2254 = scalar_lea.vmem [#allocation10], 64
        %v2255 = vld [vmem:[%s2254] sm:$0xf]
        %v2256 = vld [vmem:[%s2254 + $0x4] sm:$0xf]
        %v2257 = vld [vmem:[%s2254 + $0x8] sm:$0xf]
        %v2258 = vld [vmem:[%s2254 + $0xc] sm:$0xf]
        %v2259 = vld [vmem:[%s2254 + $0x10] sm:$0xf]
        %v2260 = vld [vmem:[%s2254 + $0x14] sm:$0xf]
        %v2261 = vld [vmem:[%s2254 + $0x18] sm:$0xf]
        %v2262 = vld [vmem:[%s2254 + $0x1c] sm:$0xf]
        %v2263 = vld [vmem:[%s2254 + $0x20] sm:$0xf]
        %v2264 = vld [vmem:[%s2254 + $0x24] sm:$0xf]
        %v2265 = vld [vmem:[%s2254 + $0x28] sm:$0xf]
        %v2266 = vld [vmem:[%s2254 + $0x2c] sm:$0xf]
        %v2267 = vld [vmem:[%s2254 + $0x30] sm:$0xf]
        %v2268 = vld [vmem:[%s2254 + $0x34] sm:$0xf]
        %v2269 = vld [vmem:[%s2254 + $0x38] sm:$0xf]
        %v2270 = vld [vmem:[%s2254 + $0x3c] sm:$0xf]
        %s2271 = scalar_lea.vmem %s8, 1
        %v2272 = vld [vmem:[%s2271] sm:$0x1]
        %v2274 = vlaneseq
        %v2275 = vshrl.u32 %v2274, 7
        %v2276 = vsub.s32 0, %v2275
        %v2277 = vrot.slane %v2272, %v2276
        %v2295 = vunpack.c.l.b16 %v2255
        %v2296 = vunpack.c.l.b16 %v2256
        %v2297 = vunpack.c.l.b16 %v2257
        %v2298 = vunpack.c.l.b16 %v2258
        %v2299 = vunpack.c.l.b16 %v2259
        %v2300 = vunpack.c.l.b16 %v2260
        %v2301 = vunpack.c.l.b16 %v2261
        %v2302 = vunpack.c.l.b16 %v2262
        %v2303 = vunpack.c.l.b16 %v2263
        %v2304 = vunpack.c.l.b16 %v2264
        %v2305 = vunpack.c.l.b16 %v2265
        %v2306 = vunpack.c.l.b16 %v2266
        %v2307 = vunpack.c.l.b16 %v2267
        %v2308 = vunpack.c.l.b16 %v2268
        %v2309 = vunpack.c.l.b16 %v2269
        %v2310 = vunpack.c.l.b16 %v2270
        %v2311 = vpack.c.b16 %v2296, %v2295
        %v2312 = vpack.c.b16 %v2298, %v2297
        %v2313 = vpack.c.b16 %v2300, %v2299
        %v2314 = vpack.c.b16 %v2302, %v2301
        %v2315 = vpack.c.b16 %v2304, %v2303
        %v2316 = vpack.c.b16 %v2306, %v2305
        %v2317 = vpack.c.b16 %v2308, %v2307
        %v2318 = vpack.c.b16 %v2310, %v2309
        %2327 = vmatprep.subr.bf16.mxu0 0
        %2328 = vmatpush1.bf16.msra.mxu0 %v2318
        %2329 = vmatprep.subr.bf16.mxu0 0
        %2330 = vmatpush1.bf16.msra.mxu0 %v2317
        %2331 = vmatprep.subr.bf16.mxu0 0
        %2332 = vmatpush1.bf16.msra.mxu0 %v2316
        %2333 = vmatprep.subr.bf16.mxu0 0
        %2334 = vmatpush1.bf16.msra.mxu0 %v2315
        %2335 = vmatprep.subr.bf16.mxu0 0
        %2336 = vmatpush1.bf16.msra.mxu0 %v2314
        %2337 = vmatprep.subr.bf16.mxu0 0
        %2338 = vmatpush1.bf16.msra.mxu0 %v2313
        %2339 = vmatprep.subr.bf16.mxu0 0
        %2340 = vmatpush1.bf16.msra.mxu0 %v2312
        %2341 = vmatprep.subr.bf16.mxu0 0
        %2342 = vmatpush1.bf16.msra.mxu0 %v2311
        %2343 = vmatprep.subr.bf16.mxu0 0
        %2344 = vmatpush2.bf16.msra.mxu0 0
        %2345 = vmatprep.subr.bf16.mxu0 0
        %2346 = vmatpush2.bf16.msra.mxu0 0
        %2347 = vmatprep.subr.bf16.mxu0 0
        %2348 = vmatpush2.bf16.msra.mxu0 0
        %2349 = vmatprep.subr.bf16.mxu0 0
        %2350 = vmatpush2.bf16.msra.mxu0 0
        %2351 = vmatprep.subr.bf16.mxu0 0
        %2352 = vmatpush2.bf16.msra.mxu0 0
        %2353 = vmatprep.subr.bf16.mxu0 0
        %2354 = vmatpush2.bf16.msra.mxu0 0
        %2355 = vmatprep.subr.bf16.mxu0 0
        %2356 = vmatpush2.bf16.msra.mxu0 0
        %2357 = vmatprep.subr.bf16.mxu0 0
        %2358 = vmatpush2.bf16.msra.mxu0 0
        %2359 = vmatprep.mubr.bf16.mxu0 0
        %2360 = vmatmul.mubr.bf16.gmra.mxu0 %v2253
        %v2361 = vpop.f32.mrf.mxu0
        %v2362 = vadd.f32 %v2277, %v2361
        %v2363 = vpop.f32.mrf.mxu0
        %v2364 = vpop.f32.mrf.mxu0
        %v2365 = vadd.f32 %v2277, %v2364
        %v2366 = vpop.f32.mrf.mxu0
        %2367 = vdwg.mxu0
        %v2368 = vadd.f32 %v1830, %v2362
        %v2369 = vadd.f32 %v1831, %v2365
        %s2370 = scalar_lea.vmem %s13, 1
        %v2371 = vld [vmem:[%s2370] sm:$0x1]
        %s2372 = scalar_lea.vmem [#allocation18], 1
        %v2373 = vld [vmem:[%s2372] sm:$0x1]
        %2374 = vadd.xlane.f32.xlu0 %v2368
        %v2375 = vpop.xlane.xlu0 %2374
        %2376 = vadd.xlane.f32.xlu0 %v2369
        %v2377 = vpop.xlane.xlu0 %2376
        %v2378 = vmul.f32 %v2375, %v1421
        %v2379 = vmul.f32 %v2377, %v1421
        %v2380 = vsub.f32 %v2368, %v2378
        %v2381 = vsub.f32 %v2369, %v2379
        %v2382 = vmul.f32 %v2380, %v2380
        %v2383 = vmul.f32 %v2381, %v2381
        %2384 = vadd.xlane.f32.xlu0 %v2382
        %v2385 = vpop.xlane.xlu0 %2384
        %2386 = vadd.xlane.f32.xlu0 %v2383
        %v2387 = vpop.xlane.xlu0 %2386
        %v2388 = vmul.f32 %v2385, %v1421
        %v2389 = vmul.f32 %v2387, %v1421
        %v2390 = vadd.f32 %v2388, 1e-05
        %v2391 = vadd.f32 %v2389, 1e-05
        %v2392 = vrsqrt.pop %v2390
        %v2393 = vrsqrt.pop %v2391
        %v2394 = vmul.f32 %v2380, %v2392
        %v2395 = vmul.f32 %v2381, %v2393
        %v2397 = vlaneseq
        %v2398 = vshrl.u32 %v2397, 7
        %v2399 = vsub.s32 0, %v2398
        %v2400 = vrot.slane %v2371, %v2399
        %v2402 = vmul.f32 %v2394, %v2400
        %v2403 = vmul.f32 %v2395, %v2400
        %v2405 = vlaneseq
        %v2406 = vshrl.u32 %v2405, 7
        %v2407 = vsub.s32 0, %v2406
        %v2408 = vrot.slane %v2373, %v2407
        %v2410 = vadd.f32 %v2402, %v2408
        %v2411 = vadd.f32 %v2403, %v2408
        %v2412 = vpack.c.bf16 %v2411, %v2410
        %s2413 = scalar_lea.vmem [#allocation12], 128
        %v2414 = vld [vmem:[%s2413] sm:$0xff]
        %v2415 = vld [vmem:[%s2413 + $0x8] sm:$0xff]
        %v2416 = vld [vmem:[%s2413 + $0x10] sm:$0xff]
        %v2417 = vld [vmem:[%s2413 + $0x18] sm:$0xff]
        %v2418 = vld [vmem:[%s2413 + $0x20] sm:$0xff]
        %v2419 = vld [vmem:[%s2413 + $0x28] sm:$0xff]
        %v2420 = vld [vmem:[%s2413 + $0x30] sm:$0xff]
        %v2421 = vld [vmem:[%s2413 + $0x38] sm:$0xff]
        %v2422 = vld [vmem:[%s2413 + $0x40] sm:$0xff]
        %v2423 = vld [vmem:[%s2413 + $0x48] sm:$0xff]
        %v2424 = vld [vmem:[%s2413 + $0x50] sm:$0xff]
        %v2425 = vld [vmem:[%s2413 + $0x58] sm:$0xff]
        %v2426 = vld [vmem:[%s2413 + $0x60] sm:$0xff]
        %v2427 = vld [vmem:[%s2413 + $0x68] sm:$0xff]
        %v2428 = vld [vmem:[%s2413 + $0x70] sm:$0xff]
        %v2429 = vld [vmem:[%s2413 + $0x78] sm:$0xff]
        %s2430 = scalar_lea.vmem [#allocation13], 2
        %v2431 = vld [vmem:[%s2430] sm:$0x3]
        %v2433 = vlaneseq
        %v2434 = vshrl.u32 %v2433, 7
        %v2435 = vsub.s32 0, %v2434
        %v2436 = vrot.slane %v2431, %v2435
        %v2437 = vlaneseq
        %v2438 = vshrl.u32 %v2437, 7
        %v2439 = vsub.s32 1, %v2438
        %v2440 = vrot.slane %v2431, %v2439
        %v2459 = vunpack.c.l.b16 %v2414
        %v2460 = vunpack.c.h.b16 %v2414
        %v2461 = vunpack.c.l.b16 %v2415
        %v2462 = vunpack.c.h.b16 %v2415
        %v2463 = vunpack.c.l.b16 %v2416
        %v2464 = vunpack.c.h.b16 %v2416
        %v2465 = vunpack.c.l.b16 %v2417
        %v2466 = vunpack.c.h.b16 %v2417
        %v2467 = vunpack.c.l.b16 %v2418
        %v2468 = vunpack.c.h.b16 %v2418
        %v2469 = vunpack.c.l.b16 %v2419
        %v2470 = vunpack.c.h.b16 %v2419
        %v2471 = vunpack.c.l.b16 %v2420
        %v2472 = vunpack.c.h.b16 %v2420
        %v2473 = vunpack.c.l.b16 %v2421
        %v2474 = vunpack.c.h.b16 %v2421
        %v2475 = vunpack.c.l.b16 %v2422
        %v2476 = vunpack.c.h.b16 %v2422
        %v2477 = vunpack.c.l.b16 %v2423
        %v2478 = vunpack.c.h.b16 %v2423
        %v2479 = vunpack.c.l.b16 %v2424
        %v2480 = vunpack.c.h.b16 %v2424
        %v2481 = vunpack.c.l.b16 %v2425
        %v2482 = vunpack.c.h.b16 %v2425
        %v2483 = vunpack.c.l.b16 %v2426
        %v2484 = vunpack.c.h.b16 %v2426
        %v2485 = vunpack.c.l.b16 %v2427
        %v2486 = vunpack.c.h.b16 %v2427
        %v2487 = vunpack.c.l.b16 %v2428
        %v2488 = vunpack.c.h.b16 %v2428
        %v2489 = vunpack.c.l.b16 %v2429
        %v2490 = vunpack.c.h.b16 %v2429
        %v2491 = vpack.c.b16 %v2461, %v2459
        %v2492 = vpack.c.b16 %v2462, %v2460
        %v2493 = vpack.c.b16 %v2465, %v2463
        %v2494 = vpack.c.b16 %v2466, %v2464
        %v2495 = vpack.c.b16 %v2469, %v2467
        %v2496 = vpack.c.b16 %v2470, %v2468
        %v2497 = vpack.c.b16 %v2473, %v2471
        %v2498 = vpack.c.b16 %v2474, %v2472
        %v2499 = vpack.c.b16 %v2477, %v2475
        %v2500 = vpack.c.b16 %v2478, %v2476
        %v2501 = vpack.c.b16 %v2481, %v2479
        %v2502 = vpack.c.b16 %v2482, %v2480
        %v2503 = vpack.c.b16 %v2485, %v2483
        %v2504 = vpack.c.b16 %v2486, %v2484
        %v2505 = vpack.c.b16 %v2489, %v2487
        %v2506 = vpack.c.b16 %v2490, %v2488
        %2523 = vmatprep.subr.bf16.mxu0 %v2506
        %2524 = vmatpush1.bf16.msra.mxu0 %v2505
        %2525 = vmatprep.subr.bf16.mxu0 %v2504
        %2526 = vmatpush1.bf16.msra.mxu0 %v2503
        %2527 = vmatprep.subr.bf16.mxu0 %v2502
        %2528 = vmatpush1.bf16.msra.mxu0 %v2501
        %2529 = vmatprep.subr.bf16.mxu0 %v2500
        %2530 = vmatpush1.bf16.msra.mxu0 %v2499
        %2531 = vmatprep.subr.bf16.mxu0 %v2498
        %2532 = vmatpush1.bf16.msra.mxu0 %v2497
        %2533 = vmatprep.subr.bf16.mxu0 %v2496
        %2534 = vmatpush1.bf16.msra.mxu0 %v2495
        %2535 = vmatprep.subr.bf16.mxu0 %v2494
        %2536 = vmatpush1.bf16.msra.mxu0 %v2493
        %2537 = vmatprep.subr.bf16.mxu0 %v2492
        %2538 = vmatpush1.bf16.msra.mxu0 %v2491
        %2539 = vmatprep.subr.bf16.mxu0 0
        %2540 = vmatpush2.bf16.msra.mxu0 0
        %2541 = vmatprep.subr.bf16.mxu0 0
        %2542 = vmatpush2.bf16.msra.mxu0 0
        %2543 = vmatprep.subr.bf16.mxu0 0
        %2544 = vmatpush2.bf16.msra.mxu0 0
        %2545 = vmatprep.subr.bf16.mxu0 0
        %2546 = vmatpush2.bf16.msra.mxu0 0
        %2547 = vmatprep.subr.bf16.mxu0 0
        %2548 = vmatpush2.bf16.msra.mxu0 0
        %2549 = vmatprep.subr.bf16.mxu0 0
        %2550 = vmatpush2.bf16.msra.mxu0 0
        %2551 = vmatprep.subr.bf16.mxu0 0
        %2552 = vmatpush2.bf16.msra.mxu0 0
        %2553 = vmatprep.subr.bf16.mxu0 0
        %2554 = vmatpush2.bf16.msra.mxu0 0
        %2555 = vmatprep.mubr.bf16.mxu0 0
        %2556 = vmatmul.mubr.bf16.gmra.mxu0 %v2412
        %v2557 = vpop.f32.mrf.mxu0
        %v2558 = vadd.f32 %v2436, %v2557
        %v2559 = vpop.f32.mrf.mxu0
        %v2560 = vadd.f32 %v2440, %v2559
        %v2561 = vpop.f32.mrf.mxu0
        %v2562 = vadd.f32 %v2436, %v2561
        %v2563 = vpop.f32.mrf.mxu0
        %v2564 = vadd.f32 %v2440, %v2563
        %2565 = vdwg.mxu0
        %v2566 = vmax.f32 %v2558, 0.0
        %v2567 = vmax.f32 %v2560, 0.0
        %v2568 = vmax.f32 %v2562, 0.0
        %v2569 = vmax.f32 %v2564, 0.0
        %v2570 = vpack.c.bf16 %v2568, %v2566
        %v2571 = vpack.c.bf16 %v2569, %v2567
        %s2572 = scalar_lea.vmem [#allocation15], 128
        %v2573 = vld [vmem:[%s2572] sm:$0xf]
        %v2574 = vld [vmem:[%s2572 + $0x4] sm:$0xf]
        %v2575 = vld [vmem:[%s2572 + $0x8] sm:$0xf]
        %v2576 = vld [vmem:[%s2572 + $0xc] sm:$0xf]
        %v2577 = vld [vmem:[%s2572 + $0x10] sm:$0xf]
        %v2578 = vld [vmem:[%s2572 + $0x14] sm:$0xf]
        %v2579 = vld [vmem:[%s2572 + $0x18] sm:$0xf]
        %v2580 = vld [vmem:[%s2572 + $0x1c] sm:$0xf]
        %v2581 = vld [vmem:[%s2572 + $0x20] sm:$0xf]
        %v2582 = vld [vmem:[%s2572 + $0x24] sm:$0xf]
        %v2583 = vld [vmem:[%s2572 + $0x28] sm:$0xf]
        %v2584 = vld [vmem:[%s2572 + $0x2c] sm:$0xf]
        %v2585 = vld [vmem:[%s2572 + $0x30] sm:$0xf]
        %v2586 = vld [vmem:[%s2572 + $0x34] sm:$0xf]
        %v2587 = vld [vmem:[%s2572 + $0x38] sm:$0xf]
        %v2588 = vld [vmem:[%s2572 + $0x3c] sm:$0xf]
        %v2589 = vld [vmem:[%s2572 + $0x40] sm:$0xf]
        %v2590 = vld [vmem:[%s2572 + $0x44] sm:$0xf]
        %v2591 = vld [vmem:[%s2572 + $0x48] sm:$0xf]
        %v2592 = vld [vmem:[%s2572 + $0x4c] sm:$0xf]
        %v2593 = vld [vmem:[%s2572 + $0x50] sm:$0xf]
        %v2594 = vld [vmem:[%s2572 + $0x54] sm:$0xf]
        %v2595 = vld [vmem:[%s2572 + $0x58] sm:$0xf]
        %v2596 = vld [vmem:[%s2572 + $0x5c] sm:$0xf]
        %v2597 = vld [vmem:[%s2572 + $0x60] sm:$0xf]
        %v2598 = vld [vmem:[%s2572 + $0x64] sm:$0xf]
        %v2599 = vld [vmem:[%s2572 + $0x68] sm:$0xf]
        %v2600 = vld [vmem:[%s2572 + $0x6c] sm:$0xf]
        %v2601 = vld [vmem:[%s2572 + $0x70] sm:$0xf]
        %v2602 = vld [vmem:[%s2572 + $0x74] sm:$0xf]
        %v2603 = vld [vmem:[%s2572 + $0x78] sm:$0xf]
        %v2604 = vld [vmem:[%s2572 + $0x7c] sm:$0xf]
        %s2605 = scalar_lea.vmem [#allocation16], 1
        %v2606 = vld [vmem:[%s2605] sm:$0x1]
        %v2608 = vlaneseq
        %v2609 = vshrl.u32 %v2608, 7
        %v2610 = vsub.s32 0, %v2609
        %v2611 = vrot.slane %v2606, %v2610
        %v2645 = vunpack.c.l.b16 %v2573
        %v2646 = vunpack.c.l.b16 %v2574
        %v2647 = vunpack.c.l.b16 %v2575
        %v2648 = vunpack.c.l.b16 %v2576
        %v2649 = vunpack.c.l.b16 %v2577
        %v2650 = vunpack.c.l.b16 %v2578
        %v2651 = vunpack.c.l.b16 %v2579
        %v2652 = vunpack.c.l.b16 %v2580
        %v2653 = vunpack.c.l.b16 %v2581
        %v2654 = vunpack.c.l.b16 %v2582
        %v2655 = vunpack.c.l.b16 %v2583
        %v2656 = vunpack.c.l.b16 %v2584
        %v2657 = vunpack.c.l.b16 %v2585
        %v2658 = vunpack.c.l.b16 %v2586
        %v2659 = vunpack.c.l.b16 %v2587
        %v2660 = vunpack.c.l.b16 %v2588
        %v2661 = vunpack.c.l.b16 %v2589
        %v2662 = vunpack.c.l.b16 %v2590
        %v2663 = vunpack.c.l.b16 %v2591
        %v2664 = vunpack.c.l.b16 %v2592
        %v2665 = vunpack.c.l.b16 %v2593
        %v2666 = vunpack.c.l.b16 %v2594
        %v2667 = vunpack.c.l.b16 %v2595
        %v2668 = vunpack.c.l.b16 %v2596
        %v2669 = vunpack.c.l.b16 %v2597
        %v2670 = vunpack.c.l.b16 %v2598
        %v2671 = vunpack.c.l.b16 %v2599
        %v2672 = vunpack.c.l.b16 %v2600
        %v2673 = vunpack.c.l.b16 %v2601
        %v2674 = vunpack.c.l.b16 %v2602
        %v2675 = vunpack.c.l.b16 %v2603
        %v2676 = vunpack.c.l.b16 %v2604
        %v2677 = vpack.c.b16 %v2646, %v2645
        %v2678 = vpack.c.b16 %v2648, %v2647
        %v2679 = vpack.c.b16 %v2650, %v2649
        %v2680 = vpack.c.b16 %v2652, %v2651
        %v2681 = vpack.c.b16 %v2654, %v2653
        %v2682 = vpack.c.b16 %v2656, %v2655
        %v2683 = vpack.c.b16 %v2658, %v2657
        %v2684 = vpack.c.b16 %v2660, %v2659
        %v2685 = vpack.c.b16 %v2662, %v2661
        %v2686 = vpack.c.b16 %v2664, %v2663
        %v2687 = vpack.c.b16 %v2666, %v2665
        %v2688 = vpack.c.b16 %v2668, %v2667
        %v2689 = vpack.c.b16 %v2670, %v2669
        %v2690 = vpack.c.b16 %v2672, %v2671
        %v2691 = vpack.c.b16 %v2674, %v2673
        %v2692 = vpack.c.b16 %v2676, %v2675
        %2709 = vmatprep.subr.bf16.mxu0 0
        %2710 = vmatpush1.bf16.msra.mxu0 %v2684
        %2711 = vmatprep.subr.bf16.mxu0 0
        %2712 = vmatpush1.bf16.msra.mxu0 %v2683
        %2713 = vmatprep.subr.bf16.mxu0 0
        %2714 = vmatpush1.bf16.msra.mxu0 %v2682
        %2715 = vmatprep.subr.bf16.mxu0 0
        %2716 = vmatpush1.bf16.msra.mxu0 %v2681
        %2717 = vmatprep.subr.bf16.mxu0 0
        %2718 = vmatpush1.bf16.msra.mxu0 %v2680
        %2719 = vmatprep.subr.bf16.mxu0 0
        %2720 = vmatpush1.bf16.msra.mxu0 %v2679
        %2721 = vmatprep.subr.bf16.mxu0 0
        %2722 = vmatpush1.bf16.msra.mxu0 %v2678
        %2723 = vmatprep.subr.bf16.mxu0 0
        %2724 = vmatpush1.bf16.msra.mxu0 %v2677
        %2725 = vmatprep.subr.bf16.mxu0 0
        %2726 = vmatpush2.bf16.msra.mxu0 %v2692
        %2727 = vmatprep.subr.bf16.mxu0 0
        %2728 = vmatpush2.bf16.msra.mxu0 %v2691
        %2729 = vmatprep.subr.bf16.mxu0 0
        %2730 = vmatpush2.bf16.msra.mxu0 %v2690
        %2731 = vmatprep.subr.bf16.mxu0 0
        %2732 = vmatpush2.bf16.msra.mxu0 %v2689
        %2733 = vmatprep.subr.bf16.mxu0 0
        %2734 = vmatpush2.bf16.msra.mxu0 %v2688
        %2735 = vmatprep.subr.bf16.mxu0 0
        %2736 = vmatpush2.bf16.msra.mxu0 %v2687
        %2737 = vmatprep.subr.bf16.mxu0 0
        %2738 = vmatpush2.bf16.msra.mxu0 %v2686
        %2739 = vmatprep.subr.bf16.mxu0 0
        %2740 = vmatpush2.bf16.msra.mxu0 %v2685
        %2741 = vmatprep.mubr.bf16.mxu0 %v2571
        %2742 = vmatmul.mubr.bf16.gmra.mxu0 %v2570
        %v2743 = vpop.f32.mrf.mxu0
        %v2744 = vadd.f32 %v2611, %v2743
        %v2745 = vpop.f32.mrf.mxu0
        %v2746 = vpop.f32.mrf.mxu0
        %v2747 = vadd.f32 %v2611, %v2746
        %v2748 = vpop.f32.mrf.mxu0
        %2749 = vdwg.mxu0
        %v2750 = vadd.f32 %v2410, %v2744
        %v2751 = vadd.f32 %v2411, %v2747
        %s2752 = scalar_lea.vmem [#allocation19], 1
        %v2753 = vld [vmem:[%s2752] sm:$0x1]
        %s2754 = scalar_lea.vmem [#allocation21], 1
        %v2755 = vld [vmem:[%s2754] sm:$0x1]
        %2756 = vadd.xlane.f32.xlu0 %v2750
        %v2757 = vpop.xlane.xlu0 %2756
        %2758 = vadd.xlane.f32.xlu0 %v2751
        %v2759 = vpop.xlane.xlu0 %2758
        %v2760 = vmul.f32 %v2757, %v1421
        %v2761 = vmul.f32 %v2759, %v1421
        %v2762 = vsub.f32 %v2750, %v2760
        %v2763 = vsub.f32 %v2751, %v2761
        %v2764 = vmul.f32 %v2762, %v2762
        %v2765 = vmul.f32 %v2763, %v2763
        %2766 = vadd.xlane.f32.xlu0 %v2764
        %v2767 = vpop.xlane.xlu0 %2766
        %2768 = vadd.xlane.f32.xlu0 %v2765
        %v2769 = vpop.xlane.xlu0 %2768
        %v2770 = vmul.f32 %v2767, %v1421
        %v2771 = vmul.f32 %v2769, %v1421
        %v2772 = vadd.f32 %v2770, 1e-05
        %v2773 = vadd.f32 %v2771, 1e-05
        %v2774 = vrsqrt.pop %v2772
        %v2775 = vrsqrt.pop %v2773
        %v2776 = vmul.f32 %v2762, %v2774
        %v2777 = vmul.f32 %v2763, %v2775
        %v2779 = vlaneseq
        %v2780 = vshrl.u32 %v2779, 7
        %v2781 = vsub.s32 0, %v2780
        %v2782 = vrot.slane %v2753, %v2781
        %v2784 = vmul.f32 %v2776, %v2782
        %v2785 = vmul.f32 %v2777, %v2782
        %v2787 = vlaneseq
        %v2788 = vshrl.u32 %v2787, 7
        %v2789 = vsub.s32 0, %v2788
        %v2790 = vrot.slane %v2755, %v2789
        %v2792 = vadd.f32 %v2784, %v2790
        %v2793 = vadd.f32 %v2785, %v2790
        %v2794 = vpack.c.bf16 %v2793, %v2792
        %s2795 = scalar_lea.vmem [#allocation7], 384
        %v2796 = vld [vmem:[%s2795] sm:$0xff]
        %v2797 = vld [vmem:[%s2795 + $0x8] sm:$0xf]
        %v2798 = vld [vmem:[%s2795 + $0xc] sm:$0xff]
        %v2799 = vld [vmem:[%s2795 + $0x14] sm:$0xf]
        %v2800 = vld [vmem:[%s2795 + $0x18] sm:$0xff]
        %v2801 = vld [vmem:[%s2795 + $0x20] sm:$0xf]
        %v2802 = vld [vmem:[%s2795 + $0x24] sm:$0xff]
        %v2803 = vld [vmem:[%s2795 + $0x2c] sm:$0xf]
        %v2804 = vld [vmem:[%s2795 + $0x30] sm:$0xff]
        %v2805 = vld [vmem:[%s2795 + $0x38] sm:$0xf]
        %v2806 = vld [vmem:[%s2795 + $0x3c] sm:$0xff]
        %v2807 = vld [vmem:[%s2795 + $0x44] sm:$0xf]
        %v2808 = vld [vmem:[%s2795 + $0x48] sm:$0xff]
        %v2809 = vld [vmem:[%s2795 + $0x50] sm:$0xf]
        %v2810 = vld [vmem:[%s2795 + $0x54] sm:$0xff]
        %v2811 = vld [vmem:[%s2795 + $0x5c] sm:$0xf]
        %v2812 = vld [vmem:[%s2795 + $0x60] sm:$0xff]
        %v2813 = vld [vmem:[%s2795 + $0x68] sm:$0xf]
        %v2814 = vld [vmem:[%s2795 + $0x6c] sm:$0xff]
        %v2815 = vld [vmem:[%s2795 + $0x74] sm:$0xf]
        %v2816 = vld [vmem:[%s2795 + $0x78] sm:$0xff]
        %v2817 = vld [vmem:[%s2795 + $0x80] sm:$0xf]
        %v2818 = vld [vmem:[%s2795 + $0x84] sm:$0xff]
        %v2819 = vld [vmem:[%s2795 + $0x8c] sm:$0xf]
        %v2820 = vld [vmem:[%s2795 + $0x90] sm:$0xff]
        %v2821 = vld [vmem:[%s2795 + $0x98] sm:$0xf]
        %v2822 = vld [vmem:[%s2795 + $0x9c] sm:$0xff]
        %v2823 = vld [vmem:[%s2795 + $0xa4] sm:$0xf]
        %v2824 = vld [vmem:[%s2795 + $0xa8] sm:$0xff]
        %v2825 = vld [vmem:[%s2795 + $0xb0] sm:$0xf]
        %v2826 = vld [vmem:[%s2795 + $0xb4] sm:$0xff]
        %v2827 = vld [vmem:[%s2795 + $0xbc] sm:$0xf]
        %s2828 = scalar_lea.vmem [#allocation9], 6
        %v2829 = vld [vmem:[%s2828] sm:$0x7]
        %v2831 = vlaneseq
        %v2832 = vshrl.u32 %v2831, 7
        %v2833 = vsub.s32 0, %v2832
        %v2834 = vrot.slane %v2829, %v2833
        %v2835 = vlaneseq
        %v2836 = vshrl.u32 %v2835, 7
        %v2837 = vsub.s32 1, %v2836
        %v2838 = vrot.slane %v2829, %v2837
        %v2839 = vlaneseq
        %v2840 = vshrl.u32 %v2839, 7
        %v2841 = vsub.s32 2, %v2840
        %v2842 = vrot.slane %v2829, %v2841
        %v2878 = vunpack.c.l.b16 %v2796
        %v2879 = vunpack.c.h.b16 %v2796
        %v2880 = vunpack.c.l.b16 %v2797
        %v2881 = vunpack.c.l.b16 %v2798
        %v2882 = vunpack.c.h.b16 %v2798
        %v2883 = vunpack.c.l.b16 %v2799
        %v2884 = vunpack.c.l.b16 %v2800
        %v2885 = vunpack.c.h.b16 %v2800
        %v2886 = vunpack.c.l.b16 %v2801
        %v2887 = vunpack.c.l.b16 %v2802
        %v2888 = vunpack.c.h.b16 %v2802
        %v2889 = vunpack.c.l.b16 %v2803
        %v2890 = vunpack.c.l.b16 %v2804
        %v2891 = vunpack.c.h.b16 %v2804
        %v2892 = vunpack.c.l.b16 %v2805
        %v2893 = vunpack.c.l.b16 %v2806
        %v2894 = vunpack.c.h.b16 %v2806
        %v2895 = vunpack.c.l.b16 %v2807
        %v2896 = vunpack.c.l.b16 %v2808
        %v2897 = vunpack.c.h.b16 %v2808
        %v2898 = vunpack.c.l.b16 %v2809
        %v2899 = vunpack.c.l.b16 %v2810
        %v2900 = vunpack.c.h.b16 %v2810
        %v2901 = vunpack.c.l.b16 %v2811
        %v2902 = vunpack.c.l.b16 %v2812
        %v2903 = vunpack.c.h.b16 %v2812
        %v2904 = vunpack.c.l.b16 %v2813
        %v2905 = vunpack.c.l.b16 %v2814
        %v2906 = vunpack.c.h.b16 %v2814
        %v2907 = vunpack.c.l.b16 %v2815
        %v2908 = vunpack.c.l.b16 %v2816
        %v2909 = vunpack.c.h.b16 %v2816
        %v2910 = vunpack.c.l.b16 %v2817
        %v2911 = vunpack.c.l.b16 %v2818
        %v2912 = vunpack.c.h.b16 %v2818
        %v2913 = vunpack.c.l.b16 %v2819
        %v2914 = vunpack.c.l.b16 %v2820
        %v2915 = vunpack.c.h.b16 %v2820
        %v2916 = vunpack.c.l.b16 %v2821
        %v2917 = vunpack.c.l.b16 %v2822
        %v2918 = vunpack.c.h.b16 %v2822
        %v2919 = vunpack.c.l.b16 %v2823
        %v2920 = vunpack.c.l.b16 %v2824
        %v2921 = vunpack.c.h.b16 %v2824
        %v2922 = vunpack.c.l.b16 %v2825
        %v2923 = vunpack.c.l.b16 %v2826
        %v2924 = vunpack.c.h.b16 %v2826
        %v2925 = vunpack.c.l.b16 %v2827
        %v2926 = vpack.c.b16 %v2881, %v2878
        %v2927 = vpack.c.b16 %v2882, %v2879
        %v2928 = vpack.c.b16 %v2883, %v2880
        %v2929 = vpack.c.b16 %v2887, %v2884
        %v2930 = vpack.c.b16 %v2888, %v2885
        %v2931 = vpack.c.b16 %v2889, %v2886
        %v2932 = vpack.c.b16 %v2893, %v2890
        %v2933 = vpack.c.b16 %v2894, %v2891
        %v2934 = vpack.c.b16 %v2895, %v2892
        %v2935 = vpack.c.b16 %v2899, %v2896
        %v2936 = vpack.c.b16 %v2900, %v2897
        %v2937 = vpack.c.b16 %v2901, %v2898
        %v2938 = vpack.c.b16 %v2905, %v2902
        %v2939 = vpack.c.b16 %v2906, %v2903
        %v2940 = vpack.c.b16 %v2907, %v2904
        %v2941 = vpack.c.b16 %v2911, %v2908
        %v2942 = vpack.c.b16 %v2912, %v2909
        %v2943 = vpack.c.b16 %v2913, %v2910
        %v2944 = vpack.c.b16 %v2917, %v2914
        %v2945 = vpack.c.b16 %v2918, %v2915
        %v2946 = vpack.c.b16 %v2919, %v2916
        %v2947 = vpack.c.b16 %v2923, %v2920
        %v2948 = vpack.c.b16 %v2924, %v2921
        %v2949 = vpack.c.b16 %v2925, %v2922
        %2974 = vmatprep.subr.bf16.mxu0 %v2948
        %2975 = vmatpush1.bf16.msra.mxu0 %v2947
        %2976 = vmatprep.subr.bf16.mxu0 %v2945
        %2977 = vmatpush1.bf16.msra.mxu0 %v2944
        %2978 = vmatprep.subr.bf16.mxu0 %v2942
        %2979 = vmatpush1.bf16.msra.mxu0 %v2941
        %2980 = vmatprep.subr.bf16.mxu0 %v2939
        %2981 = vmatpush1.bf16.msra.mxu0 %v2938
        %2982 = vmatprep.subr.bf16.mxu0 %v2936
        %2983 = vmatpush1.bf16.msra.mxu0 %v2935
        %2984 = vmatprep.subr.bf16.mxu0 %v2933
        %2985 = vmatpush1.bf16.msra.mxu0 %v2932
        %2986 = vmatprep.subr.bf16.mxu0 %v2930
        %2987 = vmatpush1.bf16.msra.mxu0 %v2929
        %2988 = vmatprep.subr.bf16.mxu0 %v2927
        %2989 = vmatpush1.bf16.msra.mxu0 %v2926
        %2990 = vmatprep.subr.bf16.mxu0 0
        %2991 = vmatpush2.bf16.msra.mxu0 0
        %2992 = vmatprep.subr.bf16.mxu0 0
        %2993 = vmatpush2.bf16.msra.mxu0 0
        %2994 = vmatprep.subr.bf16.mxu0 0
        %2995 = vmatpush2.bf16.msra.mxu0 0
        %2996 = vmatprep.subr.bf16.mxu0 0
        %2997 = vmatpush2.bf16.msra.mxu0 0
        %2998 = vmatprep.subr.bf16.mxu0 0
        %2999 = vmatpush2.bf16.msra.mxu0 0
        %3000 = vmatprep.subr.bf16.mxu0 0
        %3001 = vmatpush2.bf16.msra.mxu0 0
        %3002 = vmatprep.subr.bf16.mxu0 0
        %3003 = vmatpush2.bf16.msra.mxu0 0
        %3004 = vmatprep.subr.bf16.mxu0 0
        %3005 = vmatpush2.bf16.msra.mxu0 0
        %3006 = vmatprep.mubr.bf16.mxu0 0
        %3007 = vmatmul.mubr.bf16.gmra.mxu0 %v2794
        %v3008 = vpop.f32.mrf.mxu0
        %v3009 = vadd.f32 %v2834, %v3008
        %v3010 = vpop.f32.mrf.mxu0
        %v3011 = vadd.f32 %v2838, %v3010
        %v3012 = vpop.f32.mrf.mxu0
        %v3013 = vadd.f32 %v2834, %v3012
        %v3014 = vpop.f32.mrf.mxu0
        %v3015 = vadd.f32 %v2838, %v3014
        %3016 = vdwg.mxu0
        %3017 = vmatprep.subr.bf16.mxu0 0
        %3018 = vmatpush1.bf16.msra.mxu0 %v2949
        %3019 = vmatprep.subr.bf16.mxu0 0
        %3020 = vmatpush1.bf16.msra.mxu0 %v2946
        %3021 = vmatprep.subr.bf16.mxu0 0
        %3022 = vmatpush1.bf16.msra.mxu0 %v2943
        %3023 = vmatprep.subr.bf16.mxu0 0
        %3024 = vmatpush1.bf16.msra.mxu0 %v2940
        %3025 = vmatprep.subr.bf16.mxu0 0
        %3026 = vmatpush1.bf16.msra.mxu0 %v2937
        %3027 = vmatprep.subr.bf16.mxu0 0
        %3028 = vmatpush1.bf16.msra.mxu0 %v2934
        %3029 = vmatprep.subr.bf16.mxu0 0
        %3030 = vmatpush1.bf16.msra.mxu0 %v2931
        %3031 = vmatprep.subr.bf16.mxu0 0
        %3032 = vmatpush1.bf16.msra.mxu0 %v2928
        %3033 = vmatprep.subr.bf16.mxu0 0
        %3034 = vmatpush2.bf16.msra.mxu0 0
        %3035 = vmatprep.subr.bf16.mxu0 0
        %3036 = vmatpush2.bf16.msra.mxu0 0
        %3037 = vmatprep.subr.bf16.mxu0 0
        %3038 = vmatpush2.bf16.msra.mxu0 0
        %3039 = vmatprep.subr.bf16.mxu0 0
        %3040 = vmatpush2.bf16.msra.mxu0 0
        %3041 = vmatprep.subr.bf16.mxu0 0
        %3042 = vmatpush2.bf16.msra.mxu0 0
        %3043 = vmatprep.subr.bf16.mxu0 0
        %3044 = vmatpush2.bf16.msra.mxu0 0
        %3045 = vmatprep.subr.bf16.mxu0 0
        %3046 = vmatpush2.bf16.msra.mxu0 0
        %3047 = vmatprep.subr.bf16.mxu0 0
        %3048 = vmatpush2.bf16.msra.mxu0 0
        %3049 = vmatprep.mubr.bf16.mxu0 0
        %3050 = vmatmul.mubr.bf16.gmra.mxu0 %v2794
        %v3051 = vpop.f32.mrf.mxu0
        %v3052 = vadd.f32 %v2842, %v3051
        %v3053 = vpop.f32.mrf.mxu0
        %v3054 = vpop.f32.mrf.mxu0
        %v3055 = vadd.f32 %v2842, %v3054
        %v3056 = vpop.f32.mrf.mxu0
        %3057 = vdwg.mxu0
        %v3058 = vpack.c.bf16 %v3013, %v3009
        %v3059 = vpack.c.bf16 %v3015, %v3011
        %v3060 = vpack.c.bf16 %v3055, %v3052
        %v3061 = vmul.bf16 %v3059, %v1130
        %v3062 = vmul.bf16 %v3059, %v1131
        %v3063 = vmul.bf16 %v3059, %v1132
        %v3064 = vmul.bf16 %v3059, %v1133
        %v3065 = vmul.bf16 %v3059, %v1134
        %v3066 = vmul.bf16 %v3059, %v1135
        %v3067 = vmul.bf16 %v3059, %v1136
        %v3068 = vmul.bf16 %v3059, %v1137
        %v3069 = vmul.bf16 %v3060, %v1130
        %v3070 = vmul.bf16 %v3060, %v1131
        %v3071 = vmul.bf16 %v3060, %v1132
        %v3072 = vmul.bf16 %v3060, %v1133
        %v3073 = vmul.bf16 %v3060, %v1134
        %v3074 = vmul.bf16 %v3060, %v1135
        %v3075 = vmul.bf16 %v3060, %v1136
        %v3076 = vmul.bf16 %v3060, %v1137
        %3077 = vmatprep.subr.bf16.mxu0 0
        %3078 = vmatpush1.bf16.xpose.msra.mxu0 %v3068
        %3079 = vmatprep.subr.bf16.mxu0 0
        %3080 = vmatpush1.bf16.xpose.msra.mxu0 %v3067
        %3081 = vmatprep.subr.bf16.mxu0 0
        %3082 = vmatpush1.bf16.xpose.msra.mxu0 %v3066
        %3083 = vmatprep.subr.bf16.mxu0 0
        %3084 = vmatpush1.bf16.xpose.msra.mxu0 %v3065
        %3085 = vmatprep.subr.bf16.mxu0 0
        %3086 = vmatpush1.bf16.xpose.msra.mxu0 %v3064
        %3087 = vmatprep.subr.bf16.mxu0 0
        %3088 = vmatpush1.bf16.xpose.msra.mxu0 %v3063
        %3089 = vmatprep.subr.bf16.mxu0 0
        %3090 = vmatpush1.bf16.xpose.msra.mxu0 %v3062
        %3091 = vmatprep.subr.bf16.mxu0 0
        %3092 = vmatpush1.bf16.xpose.msra.mxu0 %v3061
        %3093 = vmatprep.subr.bf16.mxu0 0
        %3094 = vmatpush2.bf16.xpose.msra.mxu0 0
        %3095 = vmatprep.subr.bf16.mxu0 0
        %3096 = vmatpush2.bf16.xpose.msra.mxu0 0
        %3097 = vmatprep.subr.bf16.mxu0 0
        %3098 = vmatpush2.bf16.xpose.msra.mxu0 0
        %3099 = vmatprep.subr.bf16.mxu0 0
        %3100 = vmatpush2.bf16.xpose.msra.mxu0 0
        %3101 = vmatprep.subr.bf16.mxu0 0
        %3102 = vmatpush2.bf16.xpose.msra.mxu0 0
        %3103 = vmatprep.subr.bf16.mxu0 0
        %3104 = vmatpush2.bf16.xpose.msra.mxu0 0
        %3105 = vmatprep.subr.bf16.mxu0 0
        %3106 = vmatpush2.bf16.xpose.msra.mxu0 0
        %3107 = vmatprep.subr.bf16.mxu0 0
        %3108 = vmatpush2.bf16.xpose.msra.mxu0 0
        %3109 = vmatprep.mubr.bf16.mxu0 0
        %3110 = vmatmul.mubr.bf16.gmra.mxu0 %v3058
        %v3111 = vpop.f32.mrf.mxu0
        %v3112 = vadd.f32 0.0, %v3111
        %v3113 = vpop.f32.mrf.mxu0
        %v3114 = vpop.f32.mrf.mxu0
        %v3115 = vadd.f32 0.0, %v3114
        %v3116 = vpop.f32.mrf.mxu0
        %3117 = vdwg.mxu0
        %3118 = vmax.xlane.f32.xlu0 %v3112
        %v3119 = vpop.xlane.xlu0 %3118
        %3120 = vmax.xlane.f32.xlu0 %v3115
        %v3121 = vpop.xlane.xlu0 %3120
        %v3122 = vsub.f32 %v3112, %v3119
        %v3123 = vsub.f32 %v3115, %v3121
        %v3124 = vmul.f32 %v3122, 1.442695
        %v3125 = vpow.pop %v3124
        %v3126 = vmul.f32 %v3123, 1.442695
        %v3127 = vpow.pop %v3126
        %v3128 = vpack.c.bf16 %v3127, %v3125
        %3129 = vmatprep.subr.bf16.mxu0 0
        %3130 = vmatpush1.bf16.msra.mxu0 %v3076
        %3131 = vmatprep.subr.bf16.mxu0 0
        %3132 = vmatpush1.bf16.msra.mxu0 %v3075
        %3133 = vmatprep.subr.bf16.mxu0 0
        %3134 = vmatpush1.bf16.msra.mxu0 %v3074
        %3135 = vmatprep.subr.bf16.mxu0 0
        %3136 = vmatpush1.bf16.msra.mxu0 %v3073
        %3137 = vmatprep.subr.bf16.mxu0 0
        %3138 = vmatpush1.bf16.msra.mxu0 %v3072
        %3139 = vmatprep.subr.bf16.mxu0 0
        %3140 = vmatpush1.bf16.msra.mxu0 %v3071
        %3141 = vmatprep.subr.bf16.mxu0 0
        %3142 = vmatpush1.bf16.msra.mxu0 %v3070
        %3143 = vmatprep.subr.bf16.mxu0 0
        %3144 = vmatpush1.bf16.msra.mxu0 %v3069
        %3145 = vmatprep.subr.bf16.mxu0 0
        %3146 = vmatpush2.bf16.msra.mxu0 0
        %3147 = vmatprep.subr.bf16.mxu0 0
        %3148 = vmatpush2.bf16.msra.mxu0 0
        %3149 = vmatprep.subr.bf16.mxu0 0
        %3150 = vmatpush2.bf16.msra.mxu0 0
        %3151 = vmatprep.subr.bf16.mxu0 0
        %3152 = vmatpush2.bf16.msra.mxu0 0
        %3153 = vmatprep.subr.bf16.mxu0 0
        %3154 = vmatpush2.bf16.msra.mxu0 0
        %3155 = vmatprep.subr.bf16.mxu0 0
        %3156 = vmatpush2.bf16.msra.mxu0 0
        %3157 = vmatprep.subr.bf16.mxu0 0
        %3158 = vmatpush2.bf16.msra.mxu0 0
        %3159 = vmatprep.subr.bf16.mxu0 0
        %3160 = vmatpush2.bf16.msra.mxu0 0
        %3161 = vmatprep.mubr.bf16.mxu0 0
        %3162 = vmatmul.mubr.bf16.gmra.mxu0 %v3128
        %v3163 = vpop.f32.mrf.mxu0
        %v3164 = vadd.f32 0.0, %v3163
        %v3165 = vpop.f32.mrf.mxu0
        %v3166 = vpop.f32.mrf.mxu0
        %v3167 = vadd.f32 0.0, %v3166
        %v3168 = vpop.f32.mrf.mxu0
        %3169 = vdwg.mxu0
        %3170 = vmatprep.subr.bf16.mxu0 0
        %3171 = vmatpush1.bf16.msra.mxu0 %v1137
        %3172 = vmatprep.subr.bf16.mxu0 0
        %3173 = vmatpush1.bf16.msra.mxu0 %v1136
        %3174 = vmatprep.subr.bf16.mxu0 0
        %3175 = vmatpush1.bf16.msra.mxu0 %v1135
        %3176 = vmatprep.subr.bf16.mxu0 0
        %3177 = vmatpush1.bf16.msra.mxu0 %v1134
        %3178 = vmatprep.subr.bf16.mxu0 0
        %3179 = vmatpush1.bf16.msra.mxu0 %v1133
        %3180 = vmatprep.subr.bf16.mxu0 0
        %3181 = vmatpush1.bf16.msra.mxu0 %v1132
        %3182 = vmatprep.subr.bf16.mxu0 0
        %3183 = vmatpush1.bf16.msra.mxu0 %v1131
        %3184 = vmatprep.subr.bf16.mxu0 0
        %3185 = vmatpush1.bf16.msra.mxu0 %v1130
        %3186 = vmatprep.subr.bf16.mxu0 0
        %3187 = vmatpush2.bf16.msra.mxu0 0
        %3188 = vmatprep.subr.bf16.mxu0 0
        %3189 = vmatpush2.bf16.msra.mxu0 0
        %3190 = vmatprep.subr.bf16.mxu0 0
        %3191 = vmatpush2.bf16.msra.mxu0 0
        %3192 = vmatprep.subr.bf16.mxu0 0
        %3193 = vmatpush2.bf16.msra.mxu0 0
        %3194 = vmatprep.subr.bf16.mxu0 0
        %3195 = vmatpush2.bf16.msra.mxu0 0
        %3196 = vmatprep.subr.bf16.mxu0 0
        %3197 = vmatpush2.bf16.msra.mxu0 0
        %3198 = vmatprep.subr.bf16.mxu0 0
        %3199 = vmatpush2.bf16.msra.mxu0 0
        %3200 = vmatprep.subr.bf16.mxu0 0
        %3201 = vmatpush2.bf16.msra.mxu0 0
        %3202 = vmatprep.mubr.bf16.mxu0 0
        %3203 = vmatmul.mubr.bf16.gmra.mxu0 %v3128
        %v3204 = vpop.f32.mrf.mxu0
        %v3205 = vadd.f32 1e-20, %v3204
        %v3206 = vpop.f32.mrf.mxu0
        %v3207 = vpop.f32.mrf.mxu0
        %v3208 = vadd.f32 1e-20, %v3207
        %v3209 = vpop.f32.mrf.mxu0
        %3210 = vdwg.mxu0
        %v3211 = vrcp.pop %v3205
        %v3212 = vrcp.pop %v3208
        %v3213 = vmul.f32 %v3164, %v3211
        %v3214 = vmul.f32 %v3167, %v3212
        %v3215 = vpack.c.bf16 %v3214, %v3213
        %s3216 = scalar_lea.vmem [#allocation10], 128
        %v3217 = vld [vmem:[%s3216] sm:$0xf]
        %v3218 = vld [vmem:[%s3216 + $0x4] sm:$0xf]
        %v3219 = vld [vmem:[%s3216 + $0x8] sm:$0xf]
        %v3220 = vld [vmem:[%s3216 + $0xc] sm:$0xf]
        %v3221 = vld [vmem:[%s3216 + $0x10] sm:$0xf]
        %v3222 = vld [vmem:[%s3216 + $0x14] sm:$0xf]
        %v3223 = vld [vmem:[%s3216 + $0x18] sm:$0xf]
        %v3224 = vld [vmem:[%s3216 + $0x1c] sm:$0xf]
        %v3225 = vld [vmem:[%s3216 + $0x20] sm:$0xf]
        %v3226 = vld [vmem:[%s3216 + $0x24] sm:$0xf]
        %v3227 = vld [vmem:[%s3216 + $0x28] sm:$0xf]
        %v3228 = vld [vmem:[%s3216 + $0x2c] sm:$0xf]
        %v3229 = vld [vmem:[%s3216 + $0x30] sm:$0xf]
        %v3230 = vld [vmem:[%s3216 + $0x34] sm:$0xf]
        %v3231 = vld [vmem:[%s3216 + $0x38] sm:$0xf]
        %v3232 = vld [vmem:[%s3216 + $0x3c] sm:$0xf]
        %s3233 = scalar_lea.vmem %s8, 2
        %v3234 = vld [vmem:[%s3233] sm:$0x1]
        %v3236 = vlaneseq
        %v3237 = vshrl.u32 %v3236, 7
        %v3238 = vsub.s32 0, %v3237
        %v3239 = vrot.slane %v3234, %v3238
        %v3257 = vunpack.c.l.b16 %v3217
        %v3258 = vunpack.c.l.b16 %v3218
        %v3259 = vunpack.c.l.b16 %v3219
        %v3260 = vunpack.c.l.b16 %v3220
        %v3261 = vunpack.c.l.b16 %v3221
        %v3262 = vunpack.c.l.b16 %v3222
        %v3263 = vunpack.c.l.b16 %v3223
        %v3264 = vunpack.c.l.b16 %v3224
        %v3265 = vunpack.c.l.b16 %v3225
        %v3266 = vunpack.c.l.b16 %v3226
        %v3267 = vunpack.c.l.b16 %v3227
        %v3268 = vunpack.c.l.b16 %v3228
        %v3269 = vunpack.c.l.b16 %v3229
        %v3270 = vunpack.c.l.b16 %v3230
        %v3271 = vunpack.c.l.b16 %v3231
        %v3272 = vunpack.c.l.b16 %v3232
        %v3273 = vpack.c.b16 %v3258, %v3257
        %v3274 = vpack.c.b16 %v3260, %v3259
        %v3275 = vpack.c.b16 %v3262, %v3261
        %v3276 = vpack.c.b16 %v3264, %v3263
        %v3277 = vpack.c.b16 %v3266, %v3265
        %v3278 = vpack.c.b16 %v3268, %v3267
        %v3279 = vpack.c.b16 %v3270, %v3269
        %v3280 = vpack.c.b16 %v3272, %v3271
        %3289 = vmatprep.subr.bf16.mxu0 0
        %3290 = vmatpush1.bf16.msra.mxu0 %v3280
        %3291 = vmatprep.subr.bf16.mxu0 0
        %3292 = vmatpush1.bf16.msra.mxu0 %v3279
        %3293 = vmatprep.subr.bf16.mxu0 0
        %3294 = vmatpush1.bf16.msra.mxu0 %v3278
        %3295 = vmatprep.subr.bf16.mxu0 0
        %3296 = vmatpush1.bf16.msra.mxu0 %v3277
        %3297 = vmatprep.subr.bf16.mxu0 0
        %3298 = vmatpush1.bf16.msra.mxu0 %v3276
        %3299 = vmatprep.subr.bf16.mxu0 0
        %3300 = vmatpush1.bf16.msra.mxu0 %v3275
        %3301 = vmatprep.subr.bf16.mxu0 0
        %3302 = vmatpush1.bf16.msra.mxu0 %v3274
        %3303 = vmatprep.subr.bf16.mxu0 0
        %3304 = vmatpush1.bf16.msra.mxu0 %v3273
        %3305 = vmatprep.subr.bf16.mxu0 0
        %3306 = vmatpush2.bf16.msra.mxu0 0
        %3307 = vmatprep.subr.bf16.mxu0 0
        %3308 = vmatpush2.bf16.msra.mxu0 0
        %3309 = vmatprep.subr.bf16.mxu0 0
        %3310 = vmatpush2.bf16.msra.mxu0 0
        %3311 = vmatprep.subr.bf16.mxu0 0
        %3312 = vmatpush2.bf16.msra.mxu0 0
        %3313 = vmatprep.subr.bf16.mxu0 0
        %3314 = vmatpush2.bf16.msra.mxu0 0
        %3315 = vmatprep.subr.bf16.mxu0 0
        %3316 = vmatpush2.bf16.msra.mxu0 0
        %3317 = vmatprep.subr.bf16.mxu0 0
        %3318 = vmatpush2.bf16.msra.mxu0 0
        %3319 = vmatprep.subr.bf16.mxu0 0
        %3320 = vmatpush2.bf16.msra.mxu0 0
        %3321 = vmatprep.mubr.bf16.mxu0 0
        %3322 = vmatmul.mubr.bf16.gmra.mxu0 %v3215
        %v3323 = vpop.f32.mrf.mxu0
        %v3324 = vadd.f32 %v3239, %v3323
        %v3325 = vpop.f32.mrf.mxu0
        %v3326 = vpop.f32.mrf.mxu0
        %v3327 = vadd.f32 %v3239, %v3326
        %v3328 = vpop.f32.mrf.mxu0
        %3329 = vdwg.mxu0
        %v3330 = vadd.f32 %v2792, %v3324
        %v3331 = vadd.f32 %v2793, %v3327
        %s3332 = scalar_lea.vmem %s13, 2
        %v3333 = vld [vmem:[%s3332] sm:$0x1]
        %s3334 = scalar_lea.vmem [#allocation18], 2
        %v3335 = vld [vmem:[%s3334] sm:$0x1]
        %3336 = vadd.xlane.f32.xlu0 %v3330
        %v3337 = vpop.xlane.xlu0 %3336
        %3338 = vadd.xlane.f32.xlu0 %v3331
        %v3339 = vpop.xlane.xlu0 %3338
        %v3340 = vmul.f32 %v3337, %v1421
        %v3341 = vmul.f32 %v3339, %v1421
        %v3342 = vsub.f32 %v3330, %v3340
        %v3343 = vsub.f32 %v3331, %v3341
        %v3344 = vmul.f32 %v3342, %v3342
        %v3345 = vmul.f32 %v3343, %v3343
        %3346 = vadd.xlane.f32.xlu0 %v3344
        %v3347 = vpop.xlane.xlu0 %3346
        %3348 = vadd.xlane.f32.xlu0 %v3345
        %v3349 = vpop.xlane.xlu0 %3348
        %v3350 = vmul.f32 %v3347, %v1421
        %v3351 = vmul.f32 %v3349, %v1421
        %v3352 = vadd.f32 %v3350, 1e-05
        %v3353 = vadd.f32 %v3351, 1e-05
        %v3354 = vrsqrt.pop %v3352
        %v3355 = vrsqrt.pop %v3353
        %v3356 = vmul.f32 %v3342, %v3354
        %v3357 = vmul.f32 %v3343, %v3355
        %v3359 = vlaneseq
        %v3360 = vshrl.u32 %v3359, 7
        %v3361 = vsub.s32 0, %v3360
        %v3362 = vrot.slane %v3333, %v3361
        %v3364 = vmul.f32 %v3356, %v3362
        %v3365 = vmul.f32 %v3357, %v3362
        %v3367 = vlaneseq
        %v3368 = vshrl.u32 %v3367, 7
        %v3369 = vsub.s32 0, %v3368
        %v3370 = vrot.slane %v3335, %v3369
        %v3372 = vadd.f32 %v3364, %v3370
        %v3373 = vadd.f32 %v3365, %v3370
        %v3374 = vpack.c.bf16 %v3373, %v3372
        %s3375 = scalar_lea.vmem [#allocation12], 256
        %v3376 = vld [vmem:[%s3375] sm:$0xff]
        %v3377 = vld [vmem:[%s3375 + $0x8] sm:$0xff]
        %v3378 = vld [vmem:[%s3375 + $0x10] sm:$0xff]
        %v3379 = vld [vmem:[%s3375 + $0x18] sm:$0xff]
        %v3380 = vld [vmem:[%s3375 + $0x20] sm:$0xff]
        %v3381 = vld [vmem:[%s3375 + $0x28] sm:$0xff]
        %v3382 = vld [vmem:[%s3375 + $0x30] sm:$0xff]
        %v3383 = vld [vmem:[%s3375 + $0x38] sm:$0xff]
        %v3384 = vld [vmem:[%s3375 + $0x40] sm:$0xff]
        %v3385 = vld [vmem:[%s3375 + $0x48] sm:$0xff]
        %v3386 = vld [vmem:[%s3375 + $0x50] sm:$0xff]
        %v3387 = vld [vmem:[%s3375 + $0x58] sm:$0xff]
        %v3388 = vld [vmem:[%s3375 + $0x60] sm:$0xff]
        %v3389 = vld [vmem:[%s3375 + $0x68] sm:$0xff]
        %v3390 = vld [vmem:[%s3375 + $0x70] sm:$0xff]
        %v3391 = vld [vmem:[%s3375 + $0x78] sm:$0xff]
        %s3392 = scalar_lea.vmem [#allocation13], 4
        %v3393 = vld [vmem:[%s3392] sm:$0x3]
        %v3395 = vlaneseq
        %v3396 = vshrl.u32 %v3395, 7
        %v3397 = vsub.s32 0, %v3396
        %v3398 = vrot.slane %v3393, %v3397
        %v3399 = vlaneseq
        %v3400 = vshrl.u32 %v3399, 7
        %v3401 = vsub.s32 1, %v3400
        %v3402 = vrot.slane %v3393, %v3401
        %v3421 = vunpack.c.l.b16 %v3376
        %v3422 = vunpack.c.h.b16 %v3376
        %v3423 = vunpack.c.l.b16 %v3377
        %v3424 = vunpack.c.h.b16 %v3377
        %v3425 = vunpack.c.l.b16 %v3378
        %v3426 = vunpack.c.h.b16 %v3378
        %v3427 = vunpack.c.l.b16 %v3379
        %v3428 = vunpack.c.h.b16 %v3379
        %v3429 = vunpack.c.l.b16 %v3380
        %v3430 = vunpack.c.h.b16 %v3380
        %v3431 = vunpack.c.l.b16 %v3381
        %v3432 = vunpack.c.h.b16 %v3381
        %v3433 = vunpack.c.l.b16 %v3382
        %v3434 = vunpack.c.h.b16 %v3382
        %v3435 = vunpack.c.l.b16 %v3383
        %v3436 = vunpack.c.h.b16 %v3383
        %v3437 = vunpack.c.l.b16 %v3384
        %v3438 = vunpack.c.h.b16 %v3384
        %v3439 = vunpack.c.l.b16 %v3385
        %v3440 = vunpack.c.h.b16 %v3385
        %v3441 = vunpack.c.l.b16 %v3386
        %v3442 = vunpack.c.h.b16 %v3386
        %v3443 = vunpack.c.l.b16 %v3387
        %v3444 = vunpack.c.h.b16 %v3387
        %v3445 = vunpack.c.l.b16 %v3388
        %v3446 = vunpack.c.h.b16 %v3388
        %v3447 = vunpack.c.l.b16 %v3389
        %v3448 = vunpack.c.h.b16 %v3389
        %v3449 = vunpack.c.l.b16 %v3390
        %v3450 = vunpack.c.h.b16 %v3390
        %v3451 = vunpack.c.l.b16 %v3391
        %v3452 = vunpack.c.h.b16 %v3391
        %v3453 = vpack.c.b16 %v3423, %v3421
        %v3454 = vpack.c.b16 %v3424, %v3422
        %v3455 = vpack.c.b16 %v3427, %v3425
        %v3456 = vpack.c.b16 %v3428, %v3426
        %v3457 = vpack.c.b16 %v3431, %v3429
        %v3458 = vpack.c.b16 %v3432, %v3430
        %v3459 = vpack.c.b16 %v3435, %v3433
        %v3460 = vpack.c.b16 %v3436, %v3434
        %v3461 = vpack.c.b16 %v3439, %v3437
        %v3462 = vpack.c.b16 %v3440, %v3438
        %v3463 = vpack.c.b16 %v3443, %v3441
        %v3464 = vpack.c.b16 %v3444, %v3442
        %v3465 = vpack.c.b16 %v3447, %v3445
        %v3466 = vpack.c.b16 %v3448, %v3446
        %v3467 = vpack.c.b16 %v3451, %v3449
        %v3468 = vpack.c.b16 %v3452, %v3450
        %3485 = vmatprep.subr.bf16.mxu0 %v3468
        %3486 = vmatpush1.bf16.msra.mxu0 %v3467
        %3487 = vmatprep.subr.bf16.mxu0 %v3466
        %3488 = vmatpush1.bf16.msra.mxu0 %v3465
        %3489 = vmatprep.subr.bf16.mxu0 %v3464
        %3490 = vmatpush1.bf16.msra.mxu0 %v3463
        %3491 = vmatprep.subr.bf16.mxu0 %v3462
        %3492 = vmatpush1.bf16.msra.mxu0 %v3461
        %3493 = vmatprep.subr.bf16.mxu0 %v3460
        %3494 = vmatpush1.bf16.msra.mxu0 %v3459
        %3495 = vmatprep.subr.bf16.mxu0 %v3458
        %3496 = vmatpush1.bf16.msra.mxu0 %v3457
        %3497 = vmatprep.subr.bf16.mxu0 %v3456
        %3498 = vmatpush1.bf16.msra.mxu0 %v3455
        %3499 = vmatprep.subr.bf16.mxu0 %v3454
        %3500 = vmatpush1.bf16.msra.mxu0 %v3453
        %3501 = vmatprep.subr.bf16.mxu0 0
        %3502 = vmatpush2.bf16.msra.mxu0 0
        %3503 = vmatprep.subr.bf16.mxu0 0
        %3504 = vmatpush2.bf16.msra.mxu0 0
        %3505 = vmatprep.subr.bf16.mxu0 0
        %3506 = vmatpush2.bf16.msra.mxu0 0
        %3507 = vmatprep.subr.bf16.mxu0 0
        %3508 = vmatpush2.bf16.msra.mxu0 0
        %3509 = vmatprep.subr.bf16.mxu0 0
        %3510 = vmatpush2.bf16.msra.mxu0 0
        %3511 = vmatprep.subr.bf16.mxu0 0
        %3512 = vmatpush2.bf16.msra.mxu0 0
        %3513 = vmatprep.subr.bf16.mxu0 0
        %3514 = vmatpush2.bf16.msra.mxu0 0
        %3515 = vmatprep.subr.bf16.mxu0 0
        %3516 = vmatpush2.bf16.msra.mxu0 0
        %3517 = vmatprep.mubr.bf16.mxu0 0
        %3518 = vmatmul.mubr.bf16.gmra.mxu0 %v3374
        %v3519 = vpop.f32.mrf.mxu0
        %v3520 = vadd.f32 %v3398, %v3519
        %v3521 = vpop.f32.mrf.mxu0
        %v3522 = vadd.f32 %v3402, %v3521
        %v3523 = vpop.f32.mrf.mxu0
        %v3524 = vadd.f32 %v3398, %v3523
        %v3525 = vpop.f32.mrf.mxu0
        %v3526 = vadd.f32 %v3402, %v3525
        %3527 = vdwg.mxu0
        %v3528 = vmax.f32 %v3520, 0.0
        %v3529 = vmax.f32 %v3522, 0.0
        %v3530 = vmax.f32 %v3524, 0.0
        %v3531 = vmax.f32 %v3526, 0.0
        %v3532 = vpack.c.bf16 %v3530, %v3528
        %v3533 = vpack.c.bf16 %v3531, %v3529
        %s3534 = scalar_lea.vmem [#allocation15], 256
        %v3535 = vld [vmem:[%s3534] sm:$0xf]
        %v3536 = vld [vmem:[%s3534 + $0x4] sm:$0xf]
        %v3537 = vld [vmem:[%s3534 + $0x8] sm:$0xf]
        %v3538 = vld [vmem:[%s3534 + $0xc] sm:$0xf]
        %v3539 = vld [vmem:[%s3534 + $0x10] sm:$0xf]
        %v3540 = vld [vmem:[%s3534 + $0x14] sm:$0xf]
        %v3541 = vld [vmem:[%s3534 + $0x18] sm:$0xf]
        %v3542 = vld [vmem:[%s3534 + $0x1c] sm:$0xf]
        %v3543 = vld [vmem:[%s3534 + $0x20] sm:$0xf]
        %v3544 = vld [vmem:[%s3534 + $0x24] sm:$0xf]
        %v3545 = vld [vmem:[%s3534 + $0x28] sm:$0xf]
        %v3546 = vld [vmem:[%s3534 + $0x2c] sm:$0xf]
        %v3547 = vld [vmem:[%s3534 + $0x30] sm:$0xf]
        %v3548 = vld [vmem:[%s3534 + $0x34] sm:$0xf]
        %v3549 = vld [vmem:[%s3534 + $0x38] sm:$0xf]
        %v3550 = vld [vmem:[%s3534 + $0x3c] sm:$0xf]
        %v3551 = vld [vmem:[%s3534 + $0x40] sm:$0xf]
        %v3552 = vld [vmem:[%s3534 + $0x44] sm:$0xf]
        %v3553 = vld [vmem:[%s3534 + $0x48] sm:$0xf]
        %v3554 = vld [vmem:[%s3534 + $0x4c] sm:$0xf]
        %v3555 = vld [vmem:[%s3534 + $0x50] sm:$0xf]
        %v3556 = vld [vmem:[%s3534 + $0x54] sm:$0xf]
        %v3557 = vld [vmem:[%s3534 + $0x58] sm:$0xf]
        %v3558 = vld [vmem:[%s3534 + $0x5c] sm:$0xf]
        %v3559 = vld [vmem:[%s3534 + $0x60] sm:$0xf]
        %v3560 = vld [vmem:[%s3534 + $0x64] sm:$0xf]
        %v3561 = vld [vmem:[%s3534 + $0x68] sm:$0xf]
        %v3562 = vld [vmem:[%s3534 + $0x6c] sm:$0xf]
        %v3563 = vld [vmem:[%s3534 + $0x70] sm:$0xf]
        %v3564 = vld [vmem:[%s3534 + $0x74] sm:$0xf]
        %v3565 = vld [vmem:[%s3534 + $0x78] sm:$0xf]
        %v3566 = vld [vmem:[%s3534 + $0x7c] sm:$0xf]
        %s3567 = scalar_lea.vmem [#allocation16], 2
        %v3568 = vld [vmem:[%s3567] sm:$0x1]
        %v3570 = vlaneseq
        %v3571 = vshrl.u32 %v3570, 7
        %v3572 = vsub.s32 0, %v3571
        %v3573 = vrot.slane %v3568, %v3572
        %v3607 = vunpack.c.l.b16 %v3535
        %v3608 = vunpack.c.l.b16 %v3536
        %v3609 = vunpack.c.l.b16 %v3537
        %v3610 = vunpack.c.l.b16 %v3538
        %v3611 = vunpack.c.l.b16 %v3539
        %v3612 = vunpack.c.l.b16 %v3540
        %v3613 = vunpack.c.l.b16 %v3541
        %v3614 = vunpack.c.l.b16 %v3542
        %v3615 = vunpack.c.l.b16 %v3543
        %v3616 = vunpack.c.l.b16 %v3544
        %v3617 = vunpack.c.l.b16 %v3545
        %v3618 = vunpack.c.l.b16 %v3546
        %v3619 = vunpack.c.l.b16 %v3547
        %v3620 = vunpack.c.l.b16 %v3548
        %v3621 = vunpack.c.l.b16 %v3549
        %v3622 = vunpack.c.l.b16 %v3550
        %v3623 = vunpack.c.l.b16 %v3551
        %v3624 = vunpack.c.l.b16 %v3552
        %v3625 = vunpack.c.l.b16 %v3553
        %v3626 = vunpack.c.l.b16 %v3554
        %v3627 = vunpack.c.l.b16 %v3555
        %v3628 = vunpack.c.l.b16 %v3556
        %v3629 = vunpack.c.l.b16 %v3557
        %v3630 = vunpack.c.l.b16 %v3558
        %v3631 = vunpack.c.l.b16 %v3559
        %v3632 = vunpack.c.l.b16 %v3560
        %v3633 = vunpack.c.l.b16 %v3561
        %v3634 = vunpack.c.l.b16 %v3562
        %v3635 = vunpack.c.l.b16 %v3563
        %v3636 = vunpack.c.l.b16 %v3564
        %v3637 = vunpack.c.l.b16 %v3565
        %v3638 = vunpack.c.l.b16 %v3566
        %v3639 = vpack.c.b16 %v3608, %v3607
        %v3640 = vpack.c.b16 %v3610, %v3609
        %v3641 = vpack.c.b16 %v3612, %v3611
        %v3642 = vpack.c.b16 %v3614, %v3613
        %v3643 = vpack.c.b16 %v3616, %v3615
        %v3644 = vpack.c.b16 %v3618, %v3617
        %v3645 = vpack.c.b16 %v3620, %v3619
        %v3646 = vpack.c.b16 %v3622, %v3621
        %v3647 = vpack.c.b16 %v3624, %v3623
        %v3648 = vpack.c.b16 %v3626, %v3625
        %v3649 = vpack.c.b16 %v3628, %v3627
        %v3650 = vpack.c.b16 %v3630, %v3629
        %v3651 = vpack.c.b16 %v3632, %v3631
        %v3652 = vpack.c.b16 %v3634, %v3633
        %v3653 = vpack.c.b16 %v3636, %v3635
        %v3654 = vpack.c.b16 %v3638, %v3637
        %3671 = vmatprep.subr.bf16.mxu0 0
        %3672 = vmatpush1.bf16.msra.mxu0 %v3646
        %3673 = vmatprep.subr.bf16.mxu0 0
        %3674 = vmatpush1.bf16.msra.mxu0 %v3645
        %3675 = vmatprep.subr.bf16.mxu0 0
        %3676 = vmatpush1.bf16.msra.mxu0 %v3644
        %3677 = vmatprep.subr.bf16.mxu0 0
        %3678 = vmatpush1.bf16.msra.mxu0 %v3643
        %3679 = vmatprep.subr.bf16.mxu0 0
        %3680 = vmatpush1.bf16.msra.mxu0 %v3642
        %3681 = vmatprep.subr.bf16.mxu0 0
        %3682 = vmatpush1.bf16.msra.mxu0 %v3641
        %3683 = vmatprep.subr.bf16.mxu0 0
        %3684 = vmatpush1.bf16.msra.mxu0 %v3640
        %3685 = vmatprep.subr.bf16.mxu0 0
        %3686 = vmatpush1.bf16.msra.mxu0 %v3639
        %3687 = vmatprep.subr.bf16.mxu0 0
        %3688 = vmatpush2.bf16.msra.mxu0 %v3654
        %3689 = vmatprep.subr.bf16.mxu0 0
        %3690 = vmatpush2.bf16.msra.mxu0 %v3653
        %3691 = vmatprep.subr.bf16.mxu0 0
        %3692 = vmatpush2.bf16.msra.mxu0 %v3652
        %3693 = vmatprep.subr.bf16.mxu0 0
        %3694 = vmatpush2.bf16.msra.mxu0 %v3651
        %3695 = vmatprep.subr.bf16.mxu0 0
        %3696 = vmatpush2.bf16.msra.mxu0 %v3650
        %3697 = vmatprep.subr.bf16.mxu0 0
        %3698 = vmatpush2.bf16.msra.mxu0 %v3649
        %3699 = vmatprep.subr.bf16.mxu0 0
        %3700 = vmatpush2.bf16.msra.mxu0 %v3648
        %3701 = vmatprep.subr.bf16.mxu0 0
        %3702 = vmatpush2.bf16.msra.mxu0 %v3647
        %3703 = vmatprep.mubr.bf16.mxu0 %v3533
        %3704 = vmatmul.mubr.bf16.gmra.mxu0 %v3532
        %v3705 = vpop.f32.mrf.mxu0
        %v3706 = vadd.f32 %v3573, %v3705
        %v3707 = vpop.f32.mrf.mxu0
        %v3708 = vpop.f32.mrf.mxu0
        %v3709 = vadd.f32 %v3573, %v3708
        %v3710 = vpop.f32.mrf.mxu0
        %3711 = vdwg.mxu0
        %v3712 = vadd.f32 %v3372, %v3706
        %v3713 = vadd.f32 %v3373, %v3709
        %s3714 = scalar_lea.vmem [#allocation19], 2
        %v3715 = vld [vmem:[%s3714] sm:$0x1]
        %s3716 = scalar_lea.vmem [#allocation21], 2
        %v3717 = vld [vmem:[%s3716] sm:$0x1]
        %3718 = vadd.xlane.f32.xlu0 %v3712
        %v3719 = vpop.xlane.xlu0 %3718
        %3720 = vadd.xlane.f32.xlu0 %v3713
        %v3721 = vpop.xlane.xlu0 %3720
        %v3722 = vmul.f32 %v3719, %v1421
        %v3723 = vmul.f32 %v3721, %v1421
        %v3724 = vsub.f32 %v3712, %v3722
        %v3725 = vsub.f32 %v3713, %v3723
        %v3726 = vmul.f32 %v3724, %v3724
        %v3727 = vmul.f32 %v3725, %v3725
        %3728 = vadd.xlane.f32.xlu0 %v3726
        %v3729 = vpop.xlane.xlu0 %3728
        %3730 = vadd.xlane.f32.xlu0 %v3727
        %v3731 = vpop.xlane.xlu0 %3730
        %v3732 = vmul.f32 %v3729, %v1421
        %v3733 = vmul.f32 %v3731, %v1421
        %v3734 = vadd.f32 %v3732, 1e-05
        %v3735 = vadd.f32 %v3733, 1e-05
        %v3736 = vrsqrt.pop %v3734
        %v3737 = vrsqrt.pop %v3735
        %v3738 = vmul.f32 %v3724, %v3736
        %v3739 = vmul.f32 %v3725, %v3737
        %v3741 = vlaneseq
        %v3742 = vshrl.u32 %v3741, 7
        %v3743 = vsub.s32 0, %v3742
        %v3744 = vrot.slane %v3715, %v3743
        %v3746 = vmul.f32 %v3738, %v3744
        %v3747 = vmul.f32 %v3739, %v3744
        %v3749 = vlaneseq
        %v3750 = vshrl.u32 %v3749, 7
        %v3751 = vsub.s32 0, %v3750
        %v3752 = vrot.slane %v3717, %v3751
        %v3754 = vadd.f32 %v3746, %v3752
        %v3755 = vadd.f32 %v3747, %v3752
        %v3756 = vpack.c.bf16 %v3755, %v3754
        %s3757 = scalar_lea.vmem [#allocation7], 576
        %v3758 = vld [vmem:[%s3757] sm:$0xff]
        %v3759 = vld [vmem:[%s3757 + $0x8] sm:$0xf]
        %v3760 = vld [vmem:[%s3757 + $0xc] sm:$0xff]
        %v3761 = vld [vmem:[%s3757 + $0x14] sm:$0xf]
        %v3762 = vld [vmem:[%s3757 + $0x18] sm:$0xff]
        %v3763 = vld [vmem:[%s3757 + $0x20] sm:$0xf]
        %v3764 = vld [vmem:[%s3757 + $0x24] sm:$0xff]
        %v3765 = vld [vmem:[%s3757 + $0x2c] sm:$0xf]
        %v3766 = vld [vmem:[%s3757 + $0x30] sm:$0xff]
        %v3767 = vld [vmem:[%s3757 + $0x38] sm:$0xf]
        %v3768 = vld [vmem:[%s3757 + $0x3c] sm:$0xff]
        %v3769 = vld [vmem:[%s3757 + $0x44] sm:$0xf]
        %v3770 = vld [vmem:[%s3757 + $0x48] sm:$0xff]
        %v3771 = vld [vmem:[%s3757 + $0x50] sm:$0xf]
        %v3772 = vld [vmem:[%s3757 + $0x54] sm:$0xff]
        %v3773 = vld [vmem:[%s3757 + $0x5c] sm:$0xf]
        %v3774 = vld [vmem:[%s3757 + $0x60] sm:$0xff]
        %v3775 = vld [vmem:[%s3757 + $0x68] sm:$0xf]
        %v3776 = vld [vmem:[%s3757 + $0x6c] sm:$0xff]
        %v3777 = vld [vmem:[%s3757 + $0x74] sm:$0xf]
        %v3778 = vld [vmem:[%s3757 + $0x78] sm:$0xff]
        %v3779 = vld [vmem:[%s3757 + $0x80] sm:$0xf]
        %v3780 = vld [vmem:[%s3757 + $0x84] sm:$0xff]
        %v3781 = vld [vmem:[%s3757 + $0x8c] sm:$0xf]
        %v3782 = vld [vmem:[%s3757 + $0x90] sm:$0xff]
        %v3783 = vld [vmem:[%s3757 + $0x98] sm:$0xf]
        %v3784 = vld [vmem:[%s3757 + $0x9c] sm:$0xff]
        %v3785 = vld [vmem:[%s3757 + $0xa4] sm:$0xf]
        %v3786 = vld [vmem:[%s3757 + $0xa8] sm:$0xff]
        %v3787 = vld [vmem:[%s3757 + $0xb0] sm:$0xf]
        %v3788 = vld [vmem:[%s3757 + $0xb4] sm:$0xff]
        %v3789 = vld [vmem:[%s3757 + $0xbc] sm:$0xf]
        %s3790 = scalar_lea.vmem [#allocation9], 9
        %v3791 = vld [vmem:[%s3790] sm:$0x7]
        %v3793 = vlaneseq
        %v3794 = vshrl.u32 %v3793, 7
        %v3795 = vsub.s32 0, %v3794
        %v3796 = vrot.slane %v3791, %v3795
        %v3797 = vlaneseq
        %v3798 = vshrl.u32 %v3797, 7
        %v3799 = vsub.s32 1, %v3798
        %v3800 = vrot.slane %v3791, %v3799
        %v3801 = vlaneseq
        %v3802 = vshrl.u32 %v3801, 7
        %v3803 = vsub.s32 2, %v3802
        %v3804 = vrot.slane %v3791, %v3803
        %v3840 = vunpack.c.l.b16 %v3758
        %v3841 = vunpack.c.h.b16 %v3758
        %v3842 = vunpack.c.l.b16 %v3759
        %v3843 = vunpack.c.l.b16 %v3760
        %v3844 = vunpack.c.h.b16 %v3760
        %v3845 = vunpack.c.l.b16 %v3761
        %v3846 = vunpack.c.l.b16 %v3762
        %v3847 = vunpack.c.h.b16 %v3762
        %v3848 = vunpack.c.l.b16 %v3763
        %v3849 = vunpack.c.l.b16 %v3764
        %v3850 = vunpack.c.h.b16 %v3764
        %v3851 = vunpack.c.l.b16 %v3765
        %v3852 = vunpack.c.l.b16 %v3766
        %v3853 = vunpack.c.h.b16 %v3766
        %v3854 = vunpack.c.l.b16 %v3767
        %v3855 = vunpack.c.l.b16 %v3768
        %v3856 = vunpack.c.h.b16 %v3768
        %v3857 = vunpack.c.l.b16 %v3769
        %v3858 = vunpack.c.l.b16 %v3770
        %v3859 = vunpack.c.h.b16 %v3770
        %v3860 = vunpack.c.l.b16 %v3771
        %v3861 = vunpack.c.l.b16 %v3772
        %v3862 = vunpack.c.h.b16 %v3772
        %v3863 = vunpack.c.l.b16 %v3773
        %v3864 = vunpack.c.l.b16 %v3774
        %v3865 = vunpack.c.h.b16 %v3774
        %v3866 = vunpack.c.l.b16 %v3775
        %v3867 = vunpack.c.l.b16 %v3776
        %v3868 = vunpack.c.h.b16 %v3776
        %v3869 = vunpack.c.l.b16 %v3777
        %v3870 = vunpack.c.l.b16 %v3778
        %v3871 = vunpack.c.h.b16 %v3778
        %v3872 = vunpack.c.l.b16 %v3779
        %v3873 = vunpack.c.l.b16 %v3780
        %v3874 = vunpack.c.h.b16 %v3780
        %v3875 = vunpack.c.l.b16 %v3781
        %v3876 = vunpack.c.l.b16 %v3782
        %v3877 = vunpack.c.h.b16 %v3782
        %v3878 = vunpack.c.l.b16 %v3783
        %v3879 = vunpack.c.l.b16 %v3784
        %v3880 = vunpack.c.h.b16 %v3784
        %v3881 = vunpack.c.l.b16 %v3785
        %v3882 = vunpack.c.l.b16 %v3786
        %v3883 = vunpack.c.h.b16 %v3786
        %v3884 = vunpack.c.l.b16 %v3787
        %v3885 = vunpack.c.l.b16 %v3788
        %v3886 = vunpack.c.h.b16 %v3788
        %v3887 = vunpack.c.l.b16 %v3789
        %v3888 = vpack.c.b16 %v3843, %v3840
        %v3889 = vpack.c.b16 %v3844, %v3841
        %v3890 = vpack.c.b16 %v3845, %v3842
        %v3891 = vpack.c.b16 %v3849, %v3846
        %v3892 = vpack.c.b16 %v3850, %v3847
        %v3893 = vpack.c.b16 %v3851, %v3848
        %v3894 = vpack.c.b16 %v3855, %v3852
        %v3895 = vpack.c.b16 %v3856, %v3853
        %v3896 = vpack.c.b16 %v3857, %v3854
        %v3897 = vpack.c.b16 %v3861, %v3858
        %v3898 = vpack.c.b16 %v3862, %v3859
        %v3899 = vpack.c.b16 %v3863, %v3860
        %v3900 = vpack.c.b16 %v3867, %v3864
        %v3901 = vpack.c.b16 %v3868, %v3865
        %v3902 = vpack.c.b16 %v3869, %v3866
        %v3903 = vpack.c.b16 %v3873, %v3870
        %v3904 = vpack.c.b16 %v3874, %v3871
        %v3905 = vpack.c.b16 %v3875, %v3872
        %v3906 = vpack.c.b16 %v3879, %v3876
        %v3907 = vpack.c.b16 %v3880, %v3877
        %v3908 = vpack.c.b16 %v3881, %v3878
        %v3909 = vpack.c.b16 %v3885, %v3882
        %v3910 = vpack.c.b16 %v3886, %v3883
        %v3911 = vpack.c.b16 %v3887, %v3884
        %3936 = vmatprep.subr.bf16.mxu0 %v3910
        %3937 = vmatpush1.bf16.msra.mxu0 %v3909
        %3938 = vmatprep.subr.bf16.mxu0 %v3907
        %3939 = vmatpush1.bf16.msra.mxu0 %v3906
        %3940 = vmatprep.subr.bf16.mxu0 %v3904
        %3941 = vmatpush1.bf16.msra.mxu0 %v3903
        %3942 = vmatprep.subr.bf16.mxu0 %v3901
        %3943 = vmatpush1.bf16.msra.mxu0 %v3900
        %3944 = vmatprep.subr.bf16.mxu0 %v3898
        %3945 = vmatpush1.bf16.msra.mxu0 %v3897
        %3946 = vmatprep.subr.bf16.mxu0 %v3895
        %3947 = vmatpush1.bf16.msra.mxu0 %v3894
        %3948 = vmatprep.subr.bf16.mxu0 %v3892
        %3949 = vmatpush1.bf16.msra.mxu0 %v3891
        %3950 = vmatprep.subr.bf16.mxu0 %v3889
        %3951 = vmatpush1.bf16.msra.mxu0 %v3888
        %3952 = vmatprep.subr.bf16.mxu0 0
        %3953 = vmatpush2.bf16.msra.mxu0 0
        %3954 = vmatprep.subr.bf16.mxu0 0
        %3955 = vmatpush2.bf16.msra.mxu0 0
        %3956 = vmatprep.subr.bf16.mxu0 0
        %3957 = vmatpush2.bf16.msra.mxu0 0
        %3958 = vmatprep.subr.bf16.mxu0 0
        %3959 = vmatpush2.bf16.msra.mxu0 0
        %3960 = vmatprep.subr.bf16.mxu0 0
        %3961 = vmatpush2.bf16.msra.mxu0 0
        %3962 = vmatprep.subr.bf16.mxu0 0
        %3963 = vmatpush2.bf16.msra.mxu0 0
        %3964 = vmatprep.subr.bf16.mxu0 0
        %3965 = vmatpush2.bf16.msra.mxu0 0
        %3966 = vmatprep.subr.bf16.mxu0 0
        %3967 = vmatpush2.bf16.msra.mxu0 0
        %3968 = vmatprep.mubr.bf16.mxu0 0
        %3969 = vmatmul.mubr.bf16.gmra.mxu0 %v3756
        %v3970 = vpop.f32.mrf.mxu0
        %v3971 = vadd.f32 %v3796, %v3970
        %v3972 = vpop.f32.mrf.mxu0
        %v3973 = vadd.f32 %v3800, %v3972
        %v3974 = vpop.f32.mrf.mxu0
        %v3975 = vadd.f32 %v3796, %v3974
        %v3976 = vpop.f32.mrf.mxu0
        %v3977 = vadd.f32 %v3800, %v3976
        %3978 = vdwg.mxu0
        %3979 = vmatprep.subr.bf16.mxu0 0
        %3980 = vmatpush1.bf16.msra.mxu0 %v3911
        %3981 = vmatprep.subr.bf16.mxu0 0
        %3982 = vmatpush1.bf16.msra.mxu0 %v3908
        %3983 = vmatprep.subr.bf16.mxu0 0
        %3984 = vmatpush1.bf16.msra.mxu0 %v3905
        %3985 = vmatprep.subr.bf16.mxu0 0
        %3986 = vmatpush1.bf16.msra.mxu0 %v3902
        %3987 = vmatprep.subr.bf16.mxu0 0
        %3988 = vmatpush1.bf16.msra.mxu0 %v3899
        %3989 = vmatprep.subr.bf16.mxu0 0
        %3990 = vmatpush1.bf16.msra.mxu0 %v3896
        %3991 = vmatprep.subr.bf16.mxu0 0
        %3992 = vmatpush1.bf16.msra.mxu0 %v3893
        %3993 = vmatprep.subr.bf16.mxu0 0
        %3994 = vmatpush1.bf16.msra.mxu0 %v3890
        %3995 = vmatprep.subr.bf16.mxu0 0
        %3996 = vmatpush2.bf16.msra.mxu0 0
        %3997 = vmatprep.subr.bf16.mxu0 0
        %3998 = vmatpush2.bf16.msra.mxu0 0
        %3999 = vmatprep.subr.bf16.mxu0 0
        %4000 = vmatpush2.bf16.msra.mxu0 0
        %4001 = vmatprep.subr.bf16.mxu0 0
        %4002 = vmatpush2.bf16.msra.mxu0 0
        %4003 = vmatprep.subr.bf16.mxu0 0
        %4004 = vmatpush2.bf16.msra.mxu0 0
        %4005 = vmatprep.subr.bf16.mxu0 0
        %4006 = vmatpush2.bf16.msra.mxu0 0
        %4007 = vmatprep.subr.bf16.mxu0 0
        %4008 = vmatpush2.bf16.msra.mxu0 0
        %4009 = vmatprep.subr.bf16.mxu0 0
        %4010 = vmatpush2.bf16.msra.mxu0 0
        %4011 = vmatprep.mubr.bf16.mxu0 0
        %4012 = vmatmul.mubr.bf16.gmra.mxu0 %v3756
        %v4013 = vpop.f32.mrf.mxu0
        %v4014 = vadd.f32 %v3804, %v4013
        %v4015 = vpop.f32.mrf.mxu0
        %v4016 = vpop.f32.mrf.mxu0
        %v4017 = vadd.f32 %v3804, %v4016
        %v4018 = vpop.f32.mrf.mxu0
        %4019 = vdwg.mxu0
        %v4020 = vpack.c.bf16 %v3975, %v3971
        %v4021 = vpack.c.bf16 %v3977, %v3973
        %v4022 = vpack.c.bf16 %v4017, %v4014
        %v4023 = vmul.bf16 %v4021, %v1130
        %v4024 = vmul.bf16 %v4021, %v1131
        %v4025 = vmul.bf16 %v4021, %v1132
        %v4026 = vmul.bf16 %v4021, %v1133
        %v4027 = vmul.bf16 %v4021, %v1134
        %v4028 = vmul.bf16 %v4021, %v1135
        %v4029 = vmul.bf16 %v4021, %v1136
        %v4030 = vmul.bf16 %v4021, %v1137
        %v4031 = vmul.bf16 %v4022, %v1130
        %v4032 = vmul.bf16 %v4022, %v1131
        %v4033 = vmul.bf16 %v4022, %v1132
        %v4034 = vmul.bf16 %v4022, %v1133
        %v4035 = vmul.bf16 %v4022, %v1134
        %v4036 = vmul.bf16 %v4022, %v1135
        %v4037 = vmul.bf16 %v4022, %v1136
        %v4038 = vmul.bf16 %v4022, %v1137
        %4039 = vmatprep.subr.bf16.mxu0 0
        %4040 = vmatpush1.bf16.xpose.msra.mxu0 %v4030
        %4041 = vmatprep.subr.bf16.mxu0 0
        %4042 = vmatpush1.bf16.xpose.msra.mxu0 %v4029
        %4043 = vmatprep.subr.bf16.mxu0 0
        %4044 = vmatpush1.bf16.xpose.msra.mxu0 %v4028
        %4045 = vmatprep.subr.bf16.mxu0 0
        %4046 = vmatpush1.bf16.xpose.msra.mxu0 %v4027
        %4047 = vmatprep.subr.bf16.mxu0 0
        %4048 = vmatpush1.bf16.xpose.msra.mxu0 %v4026
        %4049 = vmatprep.subr.bf16.mxu0 0
        %4050 = vmatpush1.bf16.xpose.msra.mxu0 %v4025
        %4051 = vmatprep.subr.bf16.mxu0 0
        %4052 = vmatpush1.bf16.xpose.msra.mxu0 %v4024
        %4053 = vmatprep.subr.bf16.mxu0 0
        %4054 = vmatpush1.bf16.xpose.msra.mxu0 %v4023
        %4055 = vmatprep.subr.bf16.mxu0 0
        %4056 = vmatpush2.bf16.xpose.msra.mxu0 0
        %4057 = vmatprep.subr.bf16.mxu0 0
        %4058 = vmatpush2.bf16.xpose.msra.mxu0 0
        %4059 = vmatprep.subr.bf16.mxu0 0
        %4060 = vmatpush2.bf16.xpose.msra.mxu0 0
        %4061 = vmatprep.subr.bf16.mxu0 0
        %4062 = vmatpush2.bf16.xpose.msra.mxu0 0
        %4063 = vmatprep.subr.bf16.mxu0 0
        %4064 = vmatpush2.bf16.xpose.msra.mxu0 0
        %4065 = vmatprep.subr.bf16.mxu0 0
        %4066 = vmatpush2.bf16.xpose.msra.mxu0 0
        %4067 = vmatprep.subr.bf16.mxu0 0
        %4068 = vmatpush2.bf16.xpose.msra.mxu0 0
        %4069 = vmatprep.subr.bf16.mxu0 0
        %4070 = vmatpush2.bf16.xpose.msra.mxu0 0
        %4071 = vmatprep.mubr.bf16.mxu0 0
        %4072 = vmatmul.mubr.bf16.gmra.mxu0 %v4020
        %v4073 = vpop.f32.mrf.mxu0
        %v4074 = vadd.f32 0.0, %v4073
        %v4075 = vpop.f32.mrf.mxu0
        %v4076 = vpop.f32.mrf.mxu0
        %v4077 = vadd.f32 0.0, %v4076
        %v4078 = vpop.f32.mrf.mxu0
        %4079 = vdwg.mxu0
        %4080 = vmax.xlane.f32.xlu0 %v4074
        %v4081 = vpop.xlane.xlu0 %4080
        %4082 = vmax.xlane.f32.xlu0 %v4077
        %v4083 = vpop.xlane.xlu0 %4082
        %v4084 = vsub.f32 %v4074, %v4081
        %v4085 = vsub.f32 %v4077, %v4083
        %v4086 = vmul.f32 %v4084, 1.442695
        %v4087 = vpow.pop %v4086
        %v4088 = vmul.f32 %v4085, 1.442695
        %v4089 = vpow.pop %v4088
        %v4090 = vpack.c.bf16 %v4089, %v4087
        %4091 = vmatprep.subr.bf16.mxu0 0
        %4092 = vmatpush1.bf16.msra.mxu0 %v4038
        %4093 = vmatprep.subr.bf16.mxu0 0
        %4094 = vmatpush1.bf16.msra.mxu0 %v4037
        %4095 = vmatprep.subr.bf16.mxu0 0
        %4096 = vmatpush1.bf16.msra.mxu0 %v4036
        %4097 = vmatprep.subr.bf16.mxu0 0
        %4098 = vmatpush1.bf16.msra.mxu0 %v4035
        %4099 = vmatprep.subr.bf16.mxu0 0
        %4100 = vmatpush1.bf16.msra.mxu0 %v4034
        %4101 = vmatprep.subr.bf16.mxu0 0
        %4102 = vmatpush1.bf16.msra.mxu0 %v4033
        %4103 = vmatprep.subr.bf16.mxu0 0
        %4104 = vmatpush1.bf16.msra.mxu0 %v4032
        %4105 = vmatprep.subr.bf16.mxu0 0
        %4106 = vmatpush1.bf16.msra.mxu0 %v4031
        %4107 = vmatprep.subr.bf16.mxu0 0
        %4108 = vmatpush2.bf16.msra.mxu0 0
        %4109 = vmatprep.subr.bf16.mxu0 0
        %4110 = vmatpush2.bf16.msra.mxu0 0
        %4111 = vmatprep.subr.bf16.mxu0 0
        %4112 = vmatpush2.bf16.msra.mxu0 0
        %4113 = vmatprep.subr.bf16.mxu0 0
        %4114 = vmatpush2.bf16.msra.mxu0 0
        %4115 = vmatprep.subr.bf16.mxu0 0
        %4116 = vmatpush2.bf16.msra.mxu0 0
        %4117 = vmatprep.subr.bf16.mxu0 0
        %4118 = vmatpush2.bf16.msra.mxu0 0
        %4119 = vmatprep.subr.bf16.mxu0 0
        %4120 = vmatpush2.bf16.msra.mxu0 0
        %4121 = vmatprep.subr.bf16.mxu0 0
        %4122 = vmatpush2.bf16.msra.mxu0 0
        %4123 = vmatprep.mubr.bf16.mxu0 0
        %4124 = vmatmul.mubr.bf16.gmra.mxu0 %v4090
        %v4125 = vpop.f32.mrf.mxu0
        %v4126 = vadd.f32 0.0, %v4125
        %v4127 = vpop.f32.mrf.mxu0
        %v4128 = vpop.f32.mrf.mxu0
        %v4129 = vadd.f32 0.0, %v4128
        %v4130 = vpop.f32.mrf.mxu0
        %4131 = vdwg.mxu0
        %4132 = vmatprep.subr.bf16.mxu0 0
        %4133 = vmatpush1.bf16.msra.mxu0 %v1137
        %4134 = vmatprep.subr.bf16.mxu0 0
        %4135 = vmatpush1.bf16.msra.mxu0 %v1136
        %4136 = vmatprep.subr.bf16.mxu0 0
        %4137 = vmatpush1.bf16.msra.mxu0 %v1135
        %4138 = vmatprep.subr.bf16.mxu0 0
        %4139 = vmatpush1.bf16.msra.mxu0 %v1134
        %4140 = vmatprep.subr.bf16.mxu0 0
        %4141 = vmatpush1.bf16.msra.mxu0 %v1133
        %4142 = vmatprep.subr.bf16.mxu0 0
        %4143 = vmatpush1.bf16.msra.mxu0 %v1132
        %4144 = vmatprep.subr.bf16.mxu0 0
        %4145 = vmatpush1.bf16.msra.mxu0 %v1131
        %4146 = vmatprep.subr.bf16.mxu0 0
        %4147 = vmatpush1.bf16.msra.mxu0 %v1130
        %4148 = vmatprep.subr.bf16.mxu0 0
        %4149 = vmatpush2.bf16.msra.mxu0 0
        %4150 = vmatprep.subr.bf16.mxu0 0
        %4151 = vmatpush2.bf16.msra.mxu0 0
        %4152 = vmatprep.subr.bf16.mxu0 0
        %4153 = vmatpush2.bf16.msra.mxu0 0
        %4154 = vmatprep.subr.bf16.mxu0 0
        %4155 = vmatpush2.bf16.msra.mxu0 0
        %4156 = vmatprep.subr.bf16.mxu0 0
        %4157 = vmatpush2.bf16.msra.mxu0 0
        %4158 = vmatprep.subr.bf16.mxu0 0
        %4159 = vmatpush2.bf16.msra.mxu0 0
        %4160 = vmatprep.subr.bf16.mxu0 0
        %4161 = vmatpush2.bf16.msra.mxu0 0
        %4162 = vmatprep.subr.bf16.mxu0 0
        %4163 = vmatpush2.bf16.msra.mxu0 0
        %4164 = vmatprep.mubr.bf16.mxu0 0
        %4165 = vmatmul.mubr.bf16.gmra.mxu0 %v4090
        %v4166 = vpop.f32.mrf.mxu0
        %v4167 = vadd.f32 1e-20, %v4166
        %v4168 = vpop.f32.mrf.mxu0
        %v4169 = vpop.f32.mrf.mxu0
        %v4170 = vadd.f32 1e-20, %v4169
        %v4171 = vpop.f32.mrf.mxu0
        %4172 = vdwg.mxu0
        %v4173 = vrcp.pop %v4167
        %v4174 = vrcp.pop %v4170
        %v4175 = vmul.f32 %v4126, %v4173
        %v4176 = vmul.f32 %v4129, %v4174
        %v4177 = vpack.c.bf16 %v4176, %v4175
        %s4178 = scalar_lea.vmem [#allocation10], 192
        %v4179 = vld [vmem:[%s4178] sm:$0xf]
        %v4180 = vld [vmem:[%s4178 + $0x4] sm:$0xf]
        %v4181 = vld [vmem:[%s4178 + $0x8] sm:$0xf]
        %v4182 = vld [vmem:[%s4178 + $0xc] sm:$0xf]
        %v4183 = vld [vmem:[%s4178 + $0x10] sm:$0xf]
        %v4184 = vld [vmem:[%s4178 + $0x14] sm:$0xf]
        %v4185 = vld [vmem:[%s4178 + $0x18] sm:$0xf]
        %v4186 = vld [vmem:[%s4178 + $0x1c] sm:$0xf]
        %v4187 = vld [vmem:[%s4178 + $0x20] sm:$0xf]
        %v4188 = vld [vmem:[%s4178 + $0x24] sm:$0xf]
        %v4189 = vld [vmem:[%s4178 + $0x28] sm:$0xf]
        %v4190 = vld [vmem:[%s4178 + $0x2c] sm:$0xf]
        %v4191 = vld [vmem:[%s4178 + $0x30] sm:$0xf]
        %v4192 = vld [vmem:[%s4178 + $0x34] sm:$0xf]
        %v4193 = vld [vmem:[%s4178 + $0x38] sm:$0xf]
        %v4194 = vld [vmem:[%s4178 + $0x3c] sm:$0xf]
        %s4195 = scalar_lea.vmem %s8, 3
        %v4196 = vld [vmem:[%s4195] sm:$0x1]
        %v4198 = vlaneseq
        %v4199 = vshrl.u32 %v4198, 7
        %v4200 = vsub.s32 0, %v4199
        %v4201 = vrot.slane %v4196, %v4200
        %v4219 = vunpack.c.l.b16 %v4179
        %v4220 = vunpack.c.l.b16 %v4180
        %v4221 = vunpack.c.l.b16 %v4181
        %v4222 = vunpack.c.l.b16 %v4182
        %v4223 = vunpack.c.l.b16 %v4183
        %v4224 = vunpack.c.l.b16 %v4184
        %v4225 = vunpack.c.l.b16 %v4185
        %v4226 = vunpack.c.l.b16 %v4186
        %v4227 = vunpack.c.l.b16 %v4187
        %v4228 = vunpack.c.l.b16 %v4188
        %v4229 = vunpack.c.l.b16 %v4189
        %v4230 = vunpack.c.l.b16 %v4190
        %v4231 = vunpack.c.l.b16 %v4191
        %v4232 = vunpack.c.l.b16 %v4192
        %v4233 = vunpack.c.l.b16 %v4193
        %v4234 = vunpack.c.l.b16 %v4194
        %v4235 = vpack.c.b16 %v4220, %v4219
        %v4236 = vpack.c.b16 %v4222, %v4221
        %v4237 = vpack.c.b16 %v4224, %v4223
        %v4238 = vpack.c.b16 %v4226, %v4225
        %v4239 = vpack.c.b16 %v4228, %v4227
        %v4240 = vpack.c.b16 %v4230, %v4229
        %v4241 = vpack.c.b16 %v4232, %v4231
        %v4242 = vpack.c.b16 %v4234, %v4233
        %4251 = vmatprep.subr.bf16.mxu0 0
        %4252 = vmatpush1.bf16.msra.mxu0 %v4242
        %4253 = vmatprep.subr.bf16.mxu0 0
        %4254 = vmatpush1.bf16.msra.mxu0 %v4241
        %4255 = vmatprep.subr.bf16.mxu0 0
        %4256 = vmatpush1.bf16.msra.mxu0 %v4240
        %4257 = vmatprep.subr.bf16.mxu0 0
        %4258 = vmatpush1.bf16.msra.mxu0 %v4239
        %4259 = vmatprep.subr.bf16.mxu0 0
        %4260 = vmatpush1.bf16.msra.mxu0 %v4238
        %4261 = vmatprep.subr.bf16.mxu0 0
        %4262 = vmatpush1.bf16.msra.mxu0 %v4237
        %4263 = vmatprep.subr.bf16.mxu0 0
        %4264 = vmatpush1.bf16.msra.mxu0 %v4236
        %4265 = vmatprep.subr.bf16.mxu0 0
        %4266 = vmatpush1.bf16.msra.mxu0 %v4235
        %4267 = vmatprep.subr.bf16.mxu0 0
        %4268 = vmatpush2.bf16.msra.mxu0 0
        %4269 = vmatprep.subr.bf16.mxu0 0
        %4270 = vmatpush2.bf16.msra.mxu0 0
        %4271 = vmatprep.subr.bf16.mxu0 0
        %4272 = vmatpush2.bf16.msra.mxu0 0
        %4273 = vmatprep.subr.bf16.mxu0 0
        %4274 = vmatpush2.bf16.msra.mxu0 0
        %4275 = vmatprep.subr.bf16.mxu0 0
        %4276 = vmatpush2.bf16.msra.mxu0 0
        %4277 = vmatprep.subr.bf16.mxu0 0
        %4278 = vmatpush2.bf16.msra.mxu0 0
        %4279 = vmatprep.subr.bf16.mxu0 0
        %4280 = vmatpush2.bf16.msra.mxu0 0
        %4281 = vmatprep.subr.bf16.mxu0 0
        %4282 = vmatpush2.bf16.msra.mxu0 0
        %4283 = vmatprep.mubr.bf16.mxu0 0
        %4284 = vmatmul.mubr.bf16.gmra.mxu0 %v4177
        %v4285 = vpop.f32.mrf.mxu0
        %v4286 = vadd.f32 %v4201, %v4285
        %v4287 = vpop.f32.mrf.mxu0
        %v4288 = vpop.f32.mrf.mxu0
        %v4289 = vadd.f32 %v4201, %v4288
        %v4290 = vpop.f32.mrf.mxu0
        %4291 = vdwg.mxu0
        %v4292 = vadd.f32 %v3754, %v4286
        %v4293 = vadd.f32 %v3755, %v4289
        %s4294 = scalar_lea.vmem %s13, 3
        %v4295 = vld [vmem:[%s4294] sm:$0x1]
        %s4296 = scalar_lea.vmem [#allocation18], 3
        %v4297 = vld [vmem:[%s4296] sm:$0x1]
        %4298 = vadd.xlane.f32.xlu0 %v4292
        %v4299 = vpop.xlane.xlu0 %4298
        %4300 = vadd.xlane.f32.xlu0 %v4293
        %v4301 = vpop.xlane.xlu0 %4300
        %v4302 = vmul.f32 %v4299, %v1421
        %v4303 = vmul.f32 %v4301, %v1421
        %v4304 = vsub.f32 %v4292, %v4302
        %v4305 = vsub.f32 %v4293, %v4303
        %v4306 = vmul.f32 %v4304, %v4304
        %v4307 = vmul.f32 %v4305, %v4305
        %4308 = vadd.xlane.f32.xlu0 %v4306
        %v4309 = vpop.xlane.xlu0 %4308
        %4310 = vadd.xlane.f32.xlu0 %v4307
        %v4311 = vpop.xlane.xlu0 %4310
        %v4312 = vmul.f32 %v4309, %v1421
        %v4313 = vmul.f32 %v4311, %v1421
        %v4314 = vadd.f32 %v4312, 1e-05
        %v4315 = vadd.f32 %v4313, 1e-05
        %v4316 = vrsqrt.pop %v4314
        %v4317 = vrsqrt.pop %v4315
        %v4318 = vmul.f32 %v4304, %v4316
        %v4319 = vmul.f32 %v4305, %v4317
        %v4321 = vlaneseq
        %v4322 = vshrl.u32 %v4321, 7
        %v4323 = vsub.s32 0, %v4322
        %v4324 = vrot.slane %v4295, %v4323
        %v4326 = vmul.f32 %v4318, %v4324
        %v4327 = vmul.f32 %v4319, %v4324
        %v4329 = vlaneseq
        %v4330 = vshrl.u32 %v4329, 7
        %v4331 = vsub.s32 0, %v4330
        %v4332 = vrot.slane %v4297, %v4331
        %v4334 = vadd.f32 %v4326, %v4332
        %v4335 = vadd.f32 %v4327, %v4332
        %v4336 = vpack.c.bf16 %v4335, %v4334
        %s4337 = scalar_lea.vmem [#allocation12], 384
        %v4338 = vld [vmem:[%s4337] sm:$0xff]
        %v4339 = vld [vmem:[%s4337 + $0x8] sm:$0xff]
        %v4340 = vld [vmem:[%s4337 + $0x10] sm:$0xff]
        %v4341 = vld [vmem:[%s4337 + $0x18] sm:$0xff]
        %v4342 = vld [vmem:[%s4337 + $0x20] sm:$0xff]
        %v4343 = vld [vmem:[%s4337 + $0x28] sm:$0xff]
        %v4344 = vld [vmem:[%s4337 + $0x30] sm:$0xff]
        %v4345 = vld [vmem:[%s4337 + $0x38] sm:$0xff]
        %v4346 = vld [vmem:[%s4337 + $0x40] sm:$0xff]
        %v4347 = vld [vmem:[%s4337 + $0x48] sm:$0xff]
        %v4348 = vld [vmem:[%s4337 + $0x50] sm:$0xff]
        %v4349 = vld [vmem:[%s4337 + $0x58] sm:$0xff]
        %v4350 = vld [vmem:[%s4337 + $0x60] sm:$0xff]
        %v4351 = vld [vmem:[%s4337 + $0x68] sm:$0xff]
        %v4352 = vld [vmem:[%s4337 + $0x70] sm:$0xff]
        %v4353 = vld [vmem:[%s4337 + $0x78] sm:$0xff]
        %s4354 = scalar_lea.vmem [#allocation13], 6
        %v4355 = vld [vmem:[%s4354] sm:$0x3]
        %v4357 = vlaneseq
        %v4358 = vshrl.u32 %v4357, 7
        %v4359 = vsub.s32 0, %v4358
        %v4360 = vrot.slane %v4355, %v4359
        %v4361 = vlaneseq
        %v4362 = vshrl.u32 %v4361, 7
        %v4363 = vsub.s32 1, %v4362
        %v4364 = vrot.slane %v4355, %v4363
        %v4383 = vunpack.c.l.b16 %v4338
        %v4384 = vunpack.c.h.b16 %v4338
        %v4385 = vunpack.c.l.b16 %v4339
        %v4386 = vunpack.c.h.b16 %v4339
        %v4387 = vunpack.c.l.b16 %v4340
        %v4388 = vunpack.c.h.b16 %v4340
        %v4389 = vunpack.c.l.b16 %v4341
        %v4390 = vunpack.c.h.b16 %v4341
        %v4391 = vunpack.c.l.b16 %v4342
        %v4392 = vunpack.c.h.b16 %v4342
        %v4393 = vunpack.c.l.b16 %v4343
        %v4394 = vunpack.c.h.b16 %v4343
        %v4395 = vunpack.c.l.b16 %v4344
        %v4396 = vunpack.c.h.b16 %v4344
        %v4397 = vunpack.c.l.b16 %v4345
        %v4398 = vunpack.c.h.b16 %v4345
        %v4399 = vunpack.c.l.b16 %v4346
        %v4400 = vunpack.c.h.b16 %v4346
        %v4401 = vunpack.c.l.b16 %v4347
        %v4402 = vunpack.c.h.b16 %v4347
        %v4403 = vunpack.c.l.b16 %v4348
        %v4404 = vunpack.c.h.b16 %v4348
        %v4405 = vunpack.c.l.b16 %v4349
        %v4406 = vunpack.c.h.b16 %v4349
        %v4407 = vunpack.c.l.b16 %v4350
        %v4408 = vunpack.c.h.b16 %v4350
        %v4409 = vunpack.c.l.b16 %v4351
        %v4410 = vunpack.c.h.b16 %v4351
        %v4411 = vunpack.c.l.b16 %v4352
        %v4412 = vunpack.c.h.b16 %v4352
        %v4413 = vunpack.c.l.b16 %v4353
        %v4414 = vunpack.c.h.b16 %v4353
        %v4415 = vpack.c.b16 %v4385, %v4383
        %v4416 = vpack.c.b16 %v4386, %v4384
        %v4417 = vpack.c.b16 %v4389, %v4387
        %v4418 = vpack.c.b16 %v4390, %v4388
        %v4419 = vpack.c.b16 %v4393, %v4391
        %v4420 = vpack.c.b16 %v4394, %v4392
        %v4421 = vpack.c.b16 %v4397, %v4395
        %v4422 = vpack.c.b16 %v4398, %v4396
        %v4423 = vpack.c.b16 %v4401, %v4399
        %v4424 = vpack.c.b16 %v4402, %v4400
        %v4425 = vpack.c.b16 %v4405, %v4403
        %v4426 = vpack.c.b16 %v4406, %v4404
        %v4427 = vpack.c.b16 %v4409, %v4407
        %v4428 = vpack.c.b16 %v4410, %v4408
        %v4429 = vpack.c.b16 %v4413, %v4411
        %v4430 = vpack.c.b16 %v4414, %v4412
        %4447 = vmatprep.subr.bf16.mxu0 %v4430
        %4448 = vmatpush1.bf16.msra.mxu0 %v4429
        %4449 = vmatprep.subr.bf16.mxu0 %v4428
        %4450 = vmatpush1.bf16.msra.mxu0 %v4427
        %4451 = vmatprep.subr.bf16.mxu0 %v4426
        %4452 = vmatpush1.bf16.msra.mxu0 %v4425
        %4453 = vmatprep.subr.bf16.mxu0 %v4424
        %4454 = vmatpush1.bf16.msra.mxu0 %v4423
        %4455 = vmatprep.subr.bf16.mxu0 %v4422
        %4456 = vmatpush1.bf16.msra.mxu0 %v4421
        %4457 = vmatprep.subr.bf16.mxu0 %v4420
        %4458 = vmatpush1.bf16.msra.mxu0 %v4419
        %4459 = vmatprep.subr.bf16.mxu0 %v4418
        %4460 = vmatpush1.bf16.msra.mxu0 %v4417
        %4461 = vmatprep.subr.bf16.mxu0 %v4416
        %4462 = vmatpush1.bf16.msra.mxu0 %v4415
        %4463 = vmatprep.subr.bf16.mxu0 0
        %4464 = vmatpush2.bf16.msra.mxu0 0
        %4465 = vmatprep.subr.bf16.mxu0 0
        %4466 = vmatpush2.bf16.msra.mxu0 0
        %4467 = vmatprep.subr.bf16.mxu0 0
        %4468 = vmatpush2.bf16.msra.mxu0 0
        %4469 = vmatprep.subr.bf16.mxu0 0
        %4470 = vmatpush2.bf16.msra.mxu0 0
        %4471 = vmatprep.subr.bf16.mxu0 0
        %4472 = vmatpush2.bf16.msra.mxu0 0
        %4473 = vmatprep.subr.bf16.mxu0 0
        %4474 = vmatpush2.bf16.msra.mxu0 0
        %4475 = vmatprep.subr.bf16.mxu0 0
        %4476 = vmatpush2.bf16.msra.mxu0 0
        %4477 = vmatprep.subr.bf16.mxu0 0
        %4478 = vmatpush2.bf16.msra.mxu0 0
        %4479 = vmatprep.mubr.bf16.mxu0 0
        %4480 = vmatmul.mubr.bf16.gmra.mxu0 %v4336
        %v4481 = vpop.f32.mrf.mxu0
        %v4482 = vadd.f32 %v4360, %v4481
        %v4483 = vpop.f32.mrf.mxu0
        %v4484 = vadd.f32 %v4364, %v4483
        %v4485 = vpop.f32.mrf.mxu0
        %v4486 = vadd.f32 %v4360, %v4485
        %v4487 = vpop.f32.mrf.mxu0
        %v4488 = vadd.f32 %v4364, %v4487
        %4489 = vdwg.mxu0
        %v4490 = vmax.f32 %v4482, 0.0
        %v4491 = vmax.f32 %v4484, 0.0
        %v4492 = vmax.f32 %v4486, 0.0
        %v4493 = vmax.f32 %v4488, 0.0
        %v4494 = vpack.c.bf16 %v4492, %v4490
        %v4495 = vpack.c.bf16 %v4493, %v4491
        %s4496 = scalar_lea.vmem [#allocation15], 384
        %v4497 = vld [vmem:[%s4496] sm:$0xf]
        %v4498 = vld [vmem:[%s4496 + $0x4] sm:$0xf]
        %v4499 = vld [vmem:[%s4496 + $0x8] sm:$0xf]
        %v4500 = vld [vmem:[%s4496 + $0xc] sm:$0xf]
        %v4501 = vld [vmem:[%s4496 + $0x10] sm:$0xf]
        %v4502 = vld [vmem:[%s4496 + $0x14] sm:$0xf]
        %v4503 = vld [vmem:[%s4496 + $0x18] sm:$0xf]
        %v4504 = vld [vmem:[%s4496 + $0x1c] sm:$0xf]
        %v4505 = vld [vmem:[%s4496 + $0x20] sm:$0xf]
        %v4506 = vld [vmem:[%s4496 + $0x24] sm:$0xf]
        %v4507 = vld [vmem:[%s4496 + $0x28] sm:$0xf]
        %v4508 = vld [vmem:[%s4496 + $0x2c] sm:$0xf]
        %v4509 = vld [vmem:[%s4496 + $0x30] sm:$0xf]
        %v4510 = vld [vmem:[%s4496 + $0x34] sm:$0xf]
        %v4511 = vld [vmem:[%s4496 + $0x38] sm:$0xf]
        %v4512 = vld [vmem:[%s4496 + $0x3c] sm:$0xf]
        %v4513 = vld [vmem:[%s4496 + $0x40] sm:$0xf]
        %v4514 = vld [vmem:[%s4496 + $0x44] sm:$0xf]
        %v4515 = vld [vmem:[%s4496 + $0x48] sm:$0xf]
        %v4516 = vld [vmem:[%s4496 + $0x4c] sm:$0xf]
        %v4517 = vld [vmem:[%s4496 + $0x50] sm:$0xf]
        %v4518 = vld [vmem:[%s4496 + $0x54] sm:$0xf]
        %v4519 = vld [vmem:[%s4496 + $0x58] sm:$0xf]
        %v4520 = vld [vmem:[%s4496 + $0x5c] sm:$0xf]
        %v4521 = vld [vmem:[%s4496 + $0x60] sm:$0xf]
        %v4522 = vld [vmem:[%s4496 + $0x64] sm:$0xf]
        %v4523 = vld [vmem:[%s4496 + $0x68] sm:$0xf]
        %v4524 = vld [vmem:[%s4496 + $0x6c] sm:$0xf]
        %v4525 = vld [vmem:[%s4496 + $0x70] sm:$0xf]
        %v4526 = vld [vmem:[%s4496 + $0x74] sm:$0xf]
        %v4527 = vld [vmem:[%s4496 + $0x78] sm:$0xf]
        %v4528 = vld [vmem:[%s4496 + $0x7c] sm:$0xf]
        %s4529 = scalar_lea.vmem [#allocation16], 3
        %v4530 = vld [vmem:[%s4529] sm:$0x1]
        %v4532 = vlaneseq
        %v4533 = vshrl.u32 %v4532, 7
        %v4534 = vsub.s32 0, %v4533
        %v4535 = vrot.slane %v4530, %v4534
        %v4569 = vunpack.c.l.b16 %v4497
        %v4570 = vunpack.c.l.b16 %v4498
        %v4571 = vunpack.c.l.b16 %v4499
        %v4572 = vunpack.c.l.b16 %v4500
        %v4573 = vunpack.c.l.b16 %v4501
        %v4574 = vunpack.c.l.b16 %v4502
        %v4575 = vunpack.c.l.b16 %v4503
        %v4576 = vunpack.c.l.b16 %v4504
        %v4577 = vunpack.c.l.b16 %v4505
        %v4578 = vunpack.c.l.b16 %v4506
        %v4579 = vunpack.c.l.b16 %v4507
        %v4580 = vunpack.c.l.b16 %v4508
        %v4581 = vunpack.c.l.b16 %v4509
        %v4582 = vunpack.c.l.b16 %v4510
        %v4583 = vunpack.c.l.b16 %v4511
        %v4584 = vunpack.c.l.b16 %v4512
        %v4585 = vunpack.c.l.b16 %v4513
        %v4586 = vunpack.c.l.b16 %v4514
        %v4587 = vunpack.c.l.b16 %v4515
        %v4588 = vunpack.c.l.b16 %v4516
        %v4589 = vunpack.c.l.b16 %v4517
        %v4590 = vunpack.c.l.b16 %v4518
        %v4591 = vunpack.c.l.b16 %v4519
        %v4592 = vunpack.c.l.b16 %v4520
        %v4593 = vunpack.c.l.b16 %v4521
        %v4594 = vunpack.c.l.b16 %v4522
        %v4595 = vunpack.c.l.b16 %v4523
        %v4596 = vunpack.c.l.b16 %v4524
        %v4597 = vunpack.c.l.b16 %v4525
        %v4598 = vunpack.c.l.b16 %v4526
        %v4599 = vunpack.c.l.b16 %v4527
        %v4600 = vunpack.c.l.b16 %v4528
        %v4601 = vpack.c.b16 %v4570, %v4569
        %v4602 = vpack.c.b16 %v4572, %v4571
        %v4603 = vpack.c.b16 %v4574, %v4573
        %v4604 = vpack.c.b16 %v4576, %v4575
        %v4605 = vpack.c.b16 %v4578, %v4577
        %v4606 = vpack.c.b16 %v4580, %v4579
        %v4607 = vpack.c.b16 %v4582, %v4581
        %v4608 = vpack.c.b16 %v4584, %v4583
        %v4609 = vpack.c.b16 %v4586, %v4585
        %v4610 = vpack.c.b16 %v4588, %v4587
        %v4611 = vpack.c.b16 %v4590, %v4589
        %v4612 = vpack.c.b16 %v4592, %v4591
        %v4613 = vpack.c.b16 %v4594, %v4593
        %v4614 = vpack.c.b16 %v4596, %v4595
        %v4615 = vpack.c.b16 %v4598, %v4597
        %v4616 = vpack.c.b16 %v4600, %v4599
        %4633 = vmatprep.subr.bf16.mxu0 0
        %4634 = vmatpush1.bf16.msra.mxu0 %v4608
        %4635 = vmatprep.subr.bf16.mxu0 0
        %4636 = vmatpush1.bf16.msra.mxu0 %v4607
        %4637 = vmatprep.subr.bf16.mxu0 0
        %4638 = vmatpush1.bf16.msra.mxu0 %v4606
        %4639 = vmatprep.subr.bf16.mxu0 0
        %4640 = vmatpush1.bf16.msra.mxu0 %v4605
        %4641 = vmatprep.subr.bf16.mxu0 0
        %4642 = vmatpush1.bf16.msra.mxu0 %v4604
        %4643 = vmatprep.subr.bf16.mxu0 0
        %4644 = vmatpush1.bf16.msra.mxu0 %v4603
        %4645 = vmatprep.subr.bf16.mxu0 0
        %4646 = vmatpush1.bf16.msra.mxu0 %v4602
        %4647 = vmatprep.subr.bf16.mxu0 0
        %4648 = vmatpush1.bf16.msra.mxu0 %v4601
        %4649 = vmatprep.subr.bf16.mxu0 0
        %4650 = vmatpush2.bf16.msra.mxu0 %v4616
        %4651 = vmatprep.subr.bf16.mxu0 0
        %4652 = vmatpush2.bf16.msra.mxu0 %v4615
        %4653 = vmatprep.subr.bf16.mxu0 0
        %4654 = vmatpush2.bf16.msra.mxu0 %v4614
        %4655 = vmatprep.subr.bf16.mxu0 0
        %4656 = vmatpush2.bf16.msra.mxu0 %v4613
        %4657 = vmatprep.subr.bf16.mxu0 0
        %4658 = vmatpush2.bf16.msra.mxu0 %v4612
        %4659 = vmatprep.subr.bf16.mxu0 0
        %4660 = vmatpush2.bf16.msra.mxu0 %v4611
        %4661 = vmatprep.subr.bf16.mxu0 0
        %4662 = vmatpush2.bf16.msra.mxu0 %v4610
        %4663 = vmatprep.subr.bf16.mxu0 0
        %4664 = vmatpush2.bf16.msra.mxu0 %v4609
        %4665 = vmatprep.mubr.bf16.mxu0 %v4495
        %4666 = vmatmul.mubr.bf16.gmra.mxu0 %v4494
        %v4667 = vpop.f32.mrf.mxu0
        %v4668 = vadd.f32 %v4535, %v4667
        %v4669 = vpop.f32.mrf.mxu0
        %v4670 = vpop.f32.mrf.mxu0
        %v4671 = vadd.f32 %v4535, %v4670
        %v4672 = vpop.f32.mrf.mxu0
        %4673 = vdwg.mxu0
        %v4674 = vadd.f32 %v4334, %v4668
        %v4675 = vadd.f32 %v4335, %v4671
        %s4676 = scalar_lea.vmem [#allocation19], 3
        %v4677 = vld [vmem:[%s4676] sm:$0x1]
        %s4678 = scalar_lea.vmem [#allocation21], 3
        %v4679 = vld [vmem:[%s4678] sm:$0x1]
        %4680 = vadd.xlane.f32.xlu0 %v4674
        %v4681 = vpop.xlane.xlu0 %4680
        %4682 = vadd.xlane.f32.xlu0 %v4675
        %v4683 = vpop.xlane.xlu0 %4682
        %v4684 = vmul.f32 %v4681, %v1421
        %v4685 = vmul.f32 %v4683, %v1421
        %v4686 = vsub.f32 %v4674, %v4684
        %v4687 = vsub.f32 %v4675, %v4685
        %v4688 = vmul.f32 %v4686, %v4686
        %v4689 = vmul.f32 %v4687, %v4687
        %4690 = vadd.xlane.f32.xlu0 %v4688
        %v4691 = vpop.xlane.xlu0 %4690
        %4692 = vadd.xlane.f32.xlu0 %v4689
        %v4693 = vpop.xlane.xlu0 %4692
        %v4694 = vmul.f32 %v4691, %v1421
        %v4695 = vmul.f32 %v4693, %v1421
        %v4696 = vadd.f32 %v4694, 1e-05
        %v4697 = vadd.f32 %v4695, 1e-05
        %v4698 = vrsqrt.pop %v4696
        %v4699 = vrsqrt.pop %v4697
        %v4700 = vmul.f32 %v4686, %v4698
        %v4701 = vmul.f32 %v4687, %v4699
        %v4703 = vlaneseq
        %v4704 = vshrl.u32 %v4703, 7
        %v4705 = vsub.s32 0, %v4704
        %v4706 = vrot.slane %v4677, %v4705
        %v4708 = vmul.f32 %v4700, %v4706
        %v4709 = vmul.f32 %v4701, %v4706
        %v4711 = vlaneseq
        %v4712 = vshrl.u32 %v4711, 7
        %v4713 = vsub.s32 0, %v4712
        %v4714 = vrot.slane %v4679, %v4713
        %v4716 = vadd.f32 %v4708, %v4714
        %v4717 = vadd.f32 %v4709, %v4714
        %v4718 = vadd.f32 %v4716, %v4717
        %v4719 = vrot.slane %v4718, 4
        %v4720 = vadd.f32 %v4718, %v4719
        %v4721 = vrot.slane %v4720, 2
        %v4722 = vadd.f32 %v4720, %v4721
        %v4723 = vrot.slane %v4722, 1
        %v4724 = vadd.f32 %v4722, %v4723
        %v4725 = vrcp.pop 16.0
        %v4726 = vmul.f32 %v4724, %v4725
        %4727 = vst [vmem:[%s740] sm:$0xff] %v4726
        %p4728 = scmp.lt.s32.totalorder %s37, 1
        %s4729 = scalar_select %p4728, %s37, 1
        %s4730 = smul.addr %s4729, 8
        %s4731 = scalar_lea.vmem %s17, %s4730
        // Predicated region
        $region141: #{forward.1} parent=87 // pred_check
          %p4732 = pneg %p417
        $region142: #{forward.1} parent=87 // pred_check_branch
          %4734 = sbr.rel (%p4732) target = $region144
        $region143: #{forward.1} parent=87 // pred_region
          _
        $region144: #{forward.1} parent=87 // pred_fallthru
          _
      $region88: #{forward.1} parent=5 // pred_fallthru
        _
      %p4735 = scmp.le.s32.totalorder 2, %s32
      // Predicated region
      $region145: #{forward.1} parent=5 // pred_check
        %p4736 = pneg %p4735
      $region146: #{forward.1} parent=5 // pred_check_branch
        %4738 = sbr.rel (%p4736) target = $region148
      $region147: #{forward.1} parent=5 // pred_region
        %s4739 = ssub.s32 %s32, 2
        // Predicated region
        $region149: #{forward.1} parent=147 // pred_check
          %p4740 = pneg %p423
        $region150: #{forward.1} parent=147 // pred_check_branch
          %4742 = sbr.rel (%p4740) target = $region152
        $region151: #{forward.1} parent=147 // pred_region
          %p4743 = scmp.lt.s32.totalorder %s38, 1
          %s4744 = scalar_select %p4743, %s38, 1
          %s4745 = smul.addr %s4744, 8
          %s4746 = scalar_lea.vmem %s17, %s4745
        $region152: #{forward.1} parent=147 // pred_fallthru
          _
      $region148: #{forward.1} parent=5 // pred_fallthru
        _
    $region6: #{forward.1} parent=1 // loop_footer
      %s36 = sadd.s32 1, %s32
    $region7: #{forward.1} parent=1 // loop_footer_branch
      %31 = sbr.rel target = $region3
    $region8: #{forward.1} parent=1 // loop_exit
      _
    %4747 = vsyncpa [#allocation3], 1
    %s4748 = scalar_lea.sflag [#allocation3], 1
    %4749 = vsyncpa %s4748, 1
    %4750 = vsyncpa [#allocation5], 1
    %4751 = vsyncpa [#allocation8], 1
    %4752 = vsyncpa [#allocation11], 1
    %4753 = vsyncpa [#allocation14], 1
    %4754 = vsyncpa [#allocation17], 1
    %4755 = vsyncpa [#allocation20], 1

</llo_original>
